<compile_context>
chip_gen: v5e
topology: v5e:2x2
jax: 0.10.0
libtpu: 0.0.40
codegen_flags: <defaults>
</compile_context>

<pallas_src>
import functools

import jax
import jax.numpy as jnp
import numpy as np
from jax import lax
from jax.experimental import pallas as pl
from jax.experimental.pallas import tpu as pltpu

NUM_HEADS = 8
LN_EPS = 1e-5
MXU_DTYPE = jnp.bfloat16          # MXU operand dtype; accumulation stays f32
VMEM_LIMIT = 32 * 1024 * 1024     # scoped-VMEM budget, safe on v5e/v6e/v7x


def _ln(x, g, b, eps=LN_EPS):
    """LayerNorm over the last dim in f32 (matches nn.LayerNorm)."""
    mu = jnp.mean(x, axis=-1, keepdims=True)
    xc = x - mu
    var = jnp.mean(xc * xc, axis=-1, keepdims=True)
    return xc * lax.rsqrt(var + eps) * g + b


# ---------------------------------------------------------------------------
# Fused transformer stack kernel: grid=(B, L); all layers + final LN fused.
# Activations live in VMEM scratch across the layer axis.
# ---------------------------------------------------------------------------


def _layers_kernel(x_ref, wqkv_ref, bqkv_ref, wout_ref, bout_ref,
                   ln1g_ref, ln1b_ref, w1_ref, bf1_ref, w2_ref, bf2_ref,
                   ln2g_ref, ln2b_ref, lnfg_ref, lnfb_ref,
                   o_ref, h_sc, qkv_sc, ctx_sc, *, num_heads):
    l = pl.program_id(1)

    # Load this batch element's embeddings into the resident activation scratch
    # only at the first layer; subsequent layers reuse the carried VMEM state.
    @pl.when(l == 0)
    def _():
        h_sc[...] = x_ref[0]

    x = h_sc[...]                                  # (S, D) f32
    S, D = x.shape
    Dh = D // num_heads
    cdt = wqkv_ref.dtype                           # bf16 MXU operand dtype

    # Fused QKV projection (bf16 MXU, f32 accumulate + bias), stored bf16.
    # The 1/sqrt(Dh) scale is already folded into the Q weights/bias host-side.
    qkv = jnp.dot(x.astype(cdt), wqkv_ref[0],
                  preferred_element_type=jnp.float32) + bqkv_ref[0]
    qkv_sc[...] = qkv.astype(cdt)

    # Multi-head self-attention.  Each head's context goes into a column slice
    # of the (S, D) ctx scratch; the out-projection is then ONE K=D matmul.
    # TODO(synk): switch to a lax.fori_loop over heads + flash-style seq tiling
    #             once S is large enough that (S,S) scores stress vregs/VMEM.
    for hd in range(num_heads):
        qh = qkv_sc[:, pl.ds(hd * Dh, Dh)]                          # (S, Dh) bf16
        kh = qkv_sc[:, pl.ds(D + hd * Dh, Dh)]
        vh = qkv_sc[:, pl.ds(2 * D + hd * Dh, Dh)]
        # scores: contract last dims directly (no k transpose materialized)
        s = lax.dot_general(qh, kh, (((1,), (1,)), ((), ())),
                            preferred_element_type=jnp.float32)     # (S, S) f32
        m = jnp.max(s, axis=-1, keepdims=True)
        e = jnp.exp(s - m)
        r = pl.reciprocal(jnp.sum(e, axis=-1, keepdims=True), approx=True)
        ctx = jnp.dot(e.astype(cdt), vh,
                      preferred_element_type=jnp.float32) * r       # (S, Dh) f32
        ctx_sc[:, pl.ds(hd * Dh, Dh)] = ctx.astype(cdt)

    # Single full-width out-projection (K = D), then residual + post-LN1.
    attn = jnp.dot(ctx_sc[...], wout_ref[0],
                   preferred_element_type=jnp.float32) + bout_ref[0]
    h1 = _ln(x + attn, ln1g_ref[0], ln1b_ref[0])

    # Feed-forward (relu), bf16 MXU / f32 accumulate.
    ff = jnp.dot(h1.astype(cdt), w1_ref[0],
                 preferred_element_type=jnp.float32) + bf1_ref[0]
    ff = jnp.maximum(ff, 0.0)
    ff = jnp.dot(ff.astype(cdt), w2_ref[0],
                 preferred_element_type=jnp.float32) + bf2_ref[0]
    h2 = _ln(h1 + ff, ln2g_ref[0], ln2b_ref[0])

    h_sc[...] = h2                                 # carry to next layer

    # Final model LayerNorm fused into the last layer's epilogue.
    @pl.when(l == pl.num_programs(1) - 1)
    def _():
        o_ref[0] = _ln(h2, lnfg_ref[...], lnfb_ref[...]).astype(o_ref.dtype)


def transformer_stack(h, p, *, num_heads=NUM_HEADS):
    """All encoder layers + final LayerNorm in one pallas_call."""
    B, S, D = h.shape
    L = p["in_proj_w"].shape[0]
    F = p["w1"].shape[2]
    assert D % num_heads == 0 and S % 8 == 0 and D % 128 == 0 and F % 128 == 0

    def wspec(shape):                       # per-layer tensor, indexed by l
        return pl.BlockSpec((1,) + shape, lambda b, l: (l, 0, 0))

    def cspec(shape):                       # constant tensor (final LN)
        return pl.BlockSpec(shape, lambda b, l: (0,) * len(shape))

    step_flops = (2 * S * D * 3 * D + 4 * S * S * D
                  + 2 * S * D * D + 4 * S * D * F)
    flops = B * L * step_flops
    transcendentals = B * L * (num_heads * S * S + 3 * S)
    bytes_accessed = (8 * B * S * D                           # x in + out (f32)
                      + 2 * L * (3 * D * D + D * D + 2 * D * F)   # bf16 weights
                      + 4 * L * (3 * D + F + 8 * D)           # biases + LN params
                      + 8 * D)                                # final LN params

    return pl.pallas_call(
        functools.partial(_layers_kernel, num_heads=num_heads),
        out_shape=jax.ShapeDtypeStruct((B, S, D), jnp.float32),
        grid=(B, L),
        in_specs=[
            pl.BlockSpec((1, S, D), lambda b, l: (b, 0, 0)),   # embeddings
            wspec((D, 3 * D)), wspec((1, 3 * D)),              # in_proj w/b
            wspec((D, D)), wspec((1, D)),                      # out_proj w/b
            wspec((1, D)), wspec((1, D)),                      # ln1 g/b
            wspec((D, F)), wspec((1, F)),                      # ffn w1/b1
            wspec((F, D)), wspec((1, D)),                      # ffn w2/b2
            wspec((1, D)), wspec((1, D)),                      # ln2 g/b
            cspec((1, D)), cspec((1, D)),                      # final ln g/b
        ],
        out_specs=pl.BlockSpec((1, S, D), lambda b, l: (b, 0, 0)),
        scratch_shapes=[pltpu.VMEM((S, D), jnp.float32),       # resident h
                        pltpu.VMEM((S, 3 * D), MXU_DTYPE),     # qkv (bf16)
                        pltpu.VMEM((S, D), MXU_DTYPE)],        # ctx (bf16)
        compiler_params=pltpu.CompilerParams(
            dimension_semantics=("parallel", "arbitrary"),
            vmem_limit_bytes=VMEM_LIMIT),
        cost_estimate=pl.CostEstimate(
            flops=flops, transcendentals=transcendentals,
            bytes_accessed=bytes_accessed),
    )(
        h,
        p["in_proj_w"], p["in_proj_b"].reshape(L, 1, 3 * D),
        p["out_proj_w"], p["out_proj_b"].reshape(L, 1, D),
        p["ln1_g"].reshape(L, 1, D), p["ln1_b"].reshape(L, 1, D),
        p["w1"], p["b1"].reshape(L, 1, F),
        p["w2"], p["b2"].reshape(L, 1, D),
        p["ln2_g"].reshape(L, 1, D), p["ln2_b"].reshape(L, 1, D),
        p["ln_f_g"].reshape(1, D), p["ln_f_b"].reshape(1, D),
    )


# ---------------------------------------------------------------------------
# lm_head: vocab axis outermost so the (D, bn) weight tile streams once.
# ---------------------------------------------------------------------------


def _lm_head_kernel(x_ref, w_ref, b_ref, o_ref):
    cdt = w_ref.dtype
    o_ref[...] = (jnp.dot(x_ref[...].astype(cdt), w_ref[...],
                          preferred_element_type=jnp.float32)
                  + b_ref[...]).astype(o_ref.dtype)


def lm_head(x, w, b, *, max_rows=512, max_cols=1024):
    N, D = x.shape
    V = w.shape[1]
    bm = N if N <= max_rows else max_rows
    assert N % bm == 0 and (bm % 8 == 0 or bm == N) and D % 128 == 0
    bn = next((c for c in (max_cols, 512, 256, 128)
               if c <= max_cols and V % c == 0), V)
    return pl.pallas_call(
        _lm_head_kernel,
        out_shape=jax.ShapeDtypeStruct((N, V), jnp.float32),
        grid=(V // bn, N // bm),               # vocab outermost, rows fastest
        in_specs=[pl.BlockSpec((bm, D), lambda j, i: (i, 0)),
                  pl.BlockSpec((D, bn), lambda j, i: (0, j)),
                  pl.BlockSpec((1, bn), lambda j, i: (0, j))],
        out_specs=pl.BlockSpec((bm, bn), lambda j, i: (i, j)),
        compiler_params=pltpu.CompilerParams(
            dimension_semantics=("parallel", "parallel"),
            vmem_limit_bytes=VMEM_LIMIT),
        cost_estimate=pl.CostEstimate(
            flops=2 * N * D * V, transcendentals=0,
            bytes_accessed=4 * N * D * (V // bn) + 2 * D * V + 4 * N * V + 4 * V),
    )(x, w, b.reshape(1, V))


# ---------------------------------------------------------------------------
# Parameter init (deterministic, synthetic; matmul weights stored in bf16,
# per-layer tensors stacked with a leading L dim) + host-side preparation.
# ---------------------------------------------------------------------------


def init_params(key, vocab_size, hidden_size, num_layers):
    D = hidden_size
    F = 4 * hidden_size
    L = num_layers
    keys = jax.random.split(key, 6)

    def dense(k, *shape):
        return (0.02 * jax.random.normal(k, shape, jnp.float32)).astype(MXU_DTYPE)

    return {
        "embedding": 0.02 * jax.random.normal(keys[0], (vocab_size, D), jnp.float32),
        "lm_head_w": dense(keys[1], D, vocab_size),
        "lm_head_b": jnp.zeros((vocab_size,), jnp.float32),
        "ln_f_g": jnp.ones((D,), jnp.float32),
        "ln_f_b": jnp.zeros((D,), jnp.float32),
        "in_proj_w": dense(keys[2], L, D, 3 * D),
        "in_proj_b": jnp.zeros((L, 3 * D), jnp.float32),
        "out_proj_w": dense(keys[3], L, D, D),
        "out_proj_b": jnp.zeros((L, D), jnp.float32),
        "ln1_g": jnp.ones((L, D), jnp.float32),
        "ln1_b": jnp.zeros((L, D), jnp.float32),
        "w1": dense(keys[4], L, D, F),
        "b1": jnp.zeros((L, F), jnp.float32),
        "w2": dense(keys[5], L, F, D),
        "b2": jnp.zeros((L, D), jnp.float32),
        "ln2_g": jnp.ones((L, D), jnp.float32),
        "ln2_b": jnp.zeros((L, D), jnp.float32),
    }


def prepare_params(params, num_heads=NUM_HEADS):
    """Fold the 1/sqrt(Dh) attention scale into the Q projection (free, host-side)."""
    D = params["embedding"].shape[1]
    Dh = D // num_heads
    scale = 1.0 / float(np.sqrt(Dh))
    wqkv, bqkv = params["in_proj_w"], params["in_proj_b"]
    p = dict(params)
    p["in_proj_w"] = jnp.concatenate([wqkv[..., :D] * scale, wqkv[..., D:]], axis=-1)
    p["in_proj_b"] = jnp.concatenate([bqkv[..., :D] * scale, bqkv[..., D:]], axis=-1)
    return p


# ---------------------------------------------------------------------------
# Forward pass (Pallas-backed): 2 pallas_calls total.
# ---------------------------------------------------------------------------


def forward(params, input_ids):
    B, S = input_ids.shape
    D = params["embedding"].shape[1]

    # Embedding lookup (gather) stays in plain JAX.
    # TODO(synk): a scalar-prefetch DMA-gather Pallas kernel could fuse this too.
    h = jnp.take(params["embedding"], input_ids, axis=0)       # (B, S, D) f32

    hidden = transformer_stack(h, params)                      # layers + final LN
    logits = lm_head(hidden.reshape(B * S, D),
                     params["lm_head_w"], params["lm_head_b"])

    return {"logits": logits.reshape(B, S, -1),
            "loss": None,                                      # labels not provided
            "hidden_states": hidden,
            "last_hidden_state": hidden}


# ---------------------------------------------------------------------------
# Pure-JAX reference (mirrors the kernels' bf16-MXU / f32-accumulate numerics,
# but with explicit post-projection q scaling and exact softmax divide).
# ---------------------------------------------------------------------------


def forward_ref(params, input_ids):
    B, S = input_ids.shape
    D = params["embedding"].shape[1]
    H = NUM_HEADS
    Dh = D // H
    L = params["in_proj_w"].shape[0]
    scale = 1.0 / float(np.sqrt(Dh))
    cdt = MXU_DTYPE

    def mm(a, b):
        return jnp.dot(a.astype(cdt), b.astype(cdt),
                       preferred_element_type=jnp.float32)

    h = jnp.take(params["embedding"], input_ids, axis=0)        # (B, S, D)
    for li in range(L):
        x = h.reshape(B * S, D)
        qkv = mm(x, params["in_proj_w"][li]) + params["in_proj_b"][li]
        q, k, v = jnp.split(qkv, 3, axis=-1)

        def heads(t):
            return t.reshape(B, S, H, Dh).transpose(0, 2, 1, 3)

        s = jnp.einsum("bhqd,bhkd->bhqk", heads(q * scale).astype(cdt),
                       heads(k).astype(cdt), preferred_element_type=jnp.float32)
        e = jnp.exp(s - jnp.max(s, axis=-1, keepdims=True))
        ctx = jnp.einsum("bhqk,bhkd->bhqd", e.astype(cdt), heads(v).astype(cdt),
                         preferred_element_type=jnp.float32)
        ctx = ctx / jnp.sum(e, axis=-1, keepdims=True)
        ctx = ctx.transpose(0, 2, 1, 3).reshape(B * S, D)
        attn_out = mm(ctx, params["out_proj_w"][li]) + params["out_proj_b"][li]
        h1 = _ln(x + attn_out, params["ln1_g"][li], params["ln1_b"][li])
        ff = jnp.maximum(mm(h1, params["w1"][li]) + params["b1"][li], 0.0)
        ff = mm(ff, params["w2"][li]) + params["b2"][li]
        h = _ln(h1 + ff, params["ln2_g"][li], params["ln2_b"][li]).reshape(B, S, D)

    hid = _ln(h.reshape(B * S, D), params["ln_f_g"], params["ln_f_b"])
    logits = mm(hid, params["lm_head_w"]) + params["lm_head_b"]
    return logits.reshape(B, S, -1), hid.reshape(B, S, D)


# ---------------------------------------------------------------------------


if __name__ == "__main__":
    VOCAB = 256
    HIDDEN = 128   # divisible by nhead=8 and by the 128-lane width
    LAYERS = 2
    B, S = 2, 8

    key = jax.random.PRNGKey(0)
    pkey, ikey = jax.random.split(key)
    raw_params = init_params(pkey, VOCAB, HIDDEN, LAYERS)
    params = prepare_params(raw_params)
    input_ids = jax.random.randint(ikey, (B, S), 0, VOCAB, dtype=jnp.int32)

    fwd = jax.jit(forward)
    out = fwd(params, input_ids)
    logits = jax.block_until_ready(out["logits"])
    hidden = jax.block_until_ready(out["hidden_states"])

    ref_logits, ref_hidden = forward_ref(raw_params, input_ids)
    np.testing.assert_allclose(np.asarray(logits), np.asarray(ref_logits),
                               rtol=5e-3, atol=5e-3)
    np.testing.assert_allclose(np.asarray(hidden), np.asarray(ref_hidden),
                               rtol=5e-3, atol=5e-3)

    assert logits.shape == (B, S, VOCAB)
    assert hidden.shape == (B, S, HIDDEN)
    assert out["loss"] is None
    print("KERNEL_OK")
</pallas_src>

<mosaic_0001>
module attributes {stable_mosaic.version = 11 : i64} {
  func.func @_layers_kernel(%arg0: i32, %arg1: i32, %arg2: memref<1x8x128xf32, #tpu.memory_space<vmem>>, %arg3: memref<1x128x384xbf16, #tpu.memory_space<vmem>>, %arg4: memref<1x1x384xf32, #tpu.memory_space<vmem>>, %arg5: memref<1x128x128xbf16, #tpu.memory_space<vmem>>, %arg6: memref<1x1x128xf32, #tpu.memory_space<vmem>>, %arg7: memref<1x1x128xf32, #tpu.memory_space<vmem>>, %arg8: memref<1x1x128xf32, #tpu.memory_space<vmem>>, %arg9: memref<1x128x512xbf16, #tpu.memory_space<vmem>>, %arg10: memref<1x1x512xf32, #tpu.memory_space<vmem>>, %arg11: memref<1x512x128xbf16, #tpu.memory_space<vmem>>, %arg12: memref<1x1x128xf32, #tpu.memory_space<vmem>>, %arg13: memref<1x1x128xf32, #tpu.memory_space<vmem>>, %arg14: memref<1x1x128xf32, #tpu.memory_space<vmem>>, %arg15: memref<1x128xf32, #tpu.memory_space<vmem>>, %arg16: memref<1x128xf32, #tpu.memory_space<vmem>>, %arg17: memref<1x8x128xf32, #tpu.memory_space<vmem>>, %arg18: memref<8x128xf32, #tpu.memory_space<vmem>>, %arg19: memref<8x384xbf16, #tpu.memory_space<vmem>>, %arg20: memref<8x128xbf16, #tpu.memory_space<vmem>>) attributes {dimension_semantics = [#tpu.dimension_semantics<parallel>, #tpu.dimension_semantics<arbitrary>], iteration_bounds = array<i64: 2, 2>, scalar_prefetch = 0 : i64, scratch_operands = 3 : i64, tpu.core_type = #tpu.core_type<tc>, window_params = [{transform_indices = @transform_0, window_bounds = array<i64: 1, 8, 128>}, {transform_indices = @transform_1, window_bounds = array<i64: 1, 128, 384>}, {transform_indices = @transform_2, window_bounds = array<i64: 1, 1, 384>}, {transform_indices = @transform_3, window_bounds = array<i64: 1, 128, 128>}, {transform_indices = @transform_4, window_bounds = array<i64: 1, 1, 128>}, {transform_indices = @transform_5, window_bounds = array<i64: 1, 1, 128>}, {transform_indices = @transform_6, window_bounds = array<i64: 1, 1, 128>}, {transform_indices = @transform_7, window_bounds = array<i64: 1, 128, 512>}, {transform_indices = @transform_8, window_bounds = array<i64: 1, 1, 512>}, {transform_indices = @transform_9, window_bounds = array<i64: 1, 512, 128>}, {transform_indices = @transform_10, window_bounds = array<i64: 1, 1, 128>}, {transform_indices = @transform_11, window_bounds = array<i64: 1, 1, 128>}, {transform_indices = @transform_12, window_bounds = array<i64: 1, 1, 128>}, {pipeline_mode = #tpu.pipeline_mode<synchronous>, transform_indices = @transform_13, window_bounds = array<i64: 1, 128>}, {pipeline_mode = #tpu.pipeline_mode<synchronous>, transform_indices = @transform_14, window_bounds = array<i64: 1, 128>}, {transform_indices = @transform_15, window_bounds = array<i64: 1, 8, 128>}]} {
    %c0_i32 = arith.constant 0 : i32
    %0 = arith.cmpi eq, %arg1, %c0_i32 : i32
    %1 = arith.extui %0 : i1 to i32
    %c0_i32_0 = arith.constant 0 : i32
    %2 = arith.cmpi ne, %1, %c0_i32_0 : i32
    scf.if %2 {
      %c0_132 = arith.constant 0 : index
      %c0_133 = arith.constant 0 : index
      %c0_134 = arith.constant 0 : index
      %238 = vector.load %arg2[%c0_132, %c0_133, %c0_134] : memref<1x8x128xf32, #tpu.memory_space<vmem>>, vector<1x8x128xf32>
      %239 = vector.shape_cast %238 : vector<1x8x128xf32> to vector<8x128xf32>
      %c0_135 = arith.constant 0 : index
      %c0_136 = arith.constant 0 : index
      %240 = vector.load %arg18[%c0_135, %c0_136] : memref<8x128xf32, #tpu.memory_space<vmem>>, vector<8x128xf32>
      tpu.vector_store %arg18[%c0_135, %c0_136], %239 {strides = array<i32>} : memref<8x128xf32, #tpu.memory_space<vmem>>, vector<8x128xf32>,
    } else {
    }
    %c0 = arith.constant 0 : index
    %c0_1 = arith.constant 0 : index
    %3 = vector.load %arg18[%c0, %c0_1] : memref<8x128xf32, #tpu.memory_space<vmem>>, vector<8x128xf32>
    %4 = arith.truncf %3 : vector<8x128xf32> to vector<8x128xbf16>
    %c0_2 = arith.constant 0 : index
    %c0_3 = arith.constant 0 : index
    %c0_4 = arith.constant 0 : index
    %5 = vector.load %arg3[%c0_2, %c0_3, %c0_4] : memref<1x128x384xbf16, #tpu.memory_space<vmem>>, vector<1x128x384xbf16>
    %6 = vector.shape_cast %5 : vector<1x128x384xbf16> to vector<128x384xbf16>
    %cst = arith.constant dense<0.000000e+00> : vector<8x384xf32>
    %7 = tpu.matmul %4, %6, %cst {dimension_numbers = #tpu.dot_dimension_numbers<[1], [0], [0], [1], [0, 0, 1, 1], [], []>} : vector<8x128xbf16>, vector<128x384xbf16>, vector<8x384xf32> -> vector<8x384xf32>
    %c0_5 = arith.constant 0 : index
    %c0_6 = arith.constant 0 : index
    %c0_7 = arith.constant 0 : index
    %8 = vector.load %arg4[%c0_5, %c0_6, %c0_7] : memref<1x1x384xf32, #tpu.memory_space<vmem>>, vector<1x1x384xf32>
    %9 = vector.shape_cast %8 : vector<1x1x384xf32> to vector<1x384xf32>
    %10 = vector.broadcast %9 : vector<1x384xf32> to vector<8x384xf32>
    %11 = arith.addf %7, %10 : vector<8x384xf32>
    %12 = arith.truncf %11 : vector<8x384xf32> to vector<8x384xbf16>
    %c0_8 = arith.constant 0 : index
    %c0_9 = arith.constant 0 : index
    %13 = vector.load %arg19[%c0_8, %c0_9] : memref<8x384xbf16, #tpu.memory_space<vmem>>, vector<8x384xbf16>
    tpu.vector_store %arg19[%c0_8, %c0_9], %12 {strides = array<i32>} : memref<8x384xbf16, #tpu.memory_space<vmem>>, vector<8x384xbf16>,
    %c0_10 = arith.constant 0 : index
    %c0_11 = arith.constant 0 : index
    %14 = vector.load %arg19[%c0_10, %c0_11] : memref<8x384xbf16, #tpu.memory_space<vmem>>, vector<8x16xbf16>
    %c0_12 = arith.constant 0 : index
    %c128 = arith.constant 128 : index
    %15 = vector.load %arg19[%c0_12, %c128] : memref<8x384xbf16, #tpu.memory_space<vmem>>, vector<8x16xbf16>
    %c0_13 = arith.constant 0 : index
    %c256 = arith.constant 256 : index
    %16 = vector.load %arg19[%c0_13, %c256] : memref<8x384xbf16, #tpu.memory_space<vmem>>, vector<8x16xbf16>
    %cst_14 = arith.constant dense<0.000000e+00> : vector<8x8xf32>
    %17 = tpu.matmul %14, %15, %cst_14 {dimension_numbers = #tpu.dot_dimension_numbers<[1], [1], [0], [0], [0, 0, 1, 0], [], []>} : vector<8x16xbf16>, vector<8x16xbf16>, vector<8x8xf32> -> vector<8x8xf32>
    %cst_15 = arith.constant dense<0xFF800000> : vector<8xf32>
    %18 = vector.multi_reduction <maximumf>, %17, %cst_15 [1] : vector<8x8xf32> to vector<8xf32>
    %19 = vector.shape_cast %18 : vector<8xf32> to vector<8x1xf32>
    %20 = vector.broadcast %19 : vector<8x1xf32> to vector<8x8xf32>
    %21 = arith.subf %17, %20 : vector<8x8xf32>
    %22 = math.exp %21 : vector<8x8xf32>
    %cst_16 = arith.constant dense<0.000000e+00> : vector<8xf32>
    %23 = vector.multi_reduction <add>, %22, %cst_16 [1] : vector<8x8xf32> to vector<8xf32>
    %24 = vector.shape_cast %23 : vector<8xf32> to vector<8x1xf32>
    %25 = tpu.reciprocal %24 {approx = true} : vector<8x1xf32> -> vector<8x1xf32>
    %26 = arith.truncf %22 : vector<8x8xf32> to vector<8x8xbf16>
    %cst_17 = arith.constant dense<0.000000e+00> : vector<8x16xf32>
    %27 = tpu.matmul %26, %16, %cst_17 {dimension_numbers = #tpu.dot_dimension_numbers<[1], [0], [0], [1], [0, 0, 1, 1], [], []>} : vector<8x8xbf16>, vector<8x16xbf16>, vector<8x16xf32> -> vector<8x16xf32>
    %28 = vector.broadcast %25 : vector<8x1xf32> to vector<8x16xf32>
    %29 = arith.mulf %27, %28 : vector<8x16xf32>
    %30 = arith.truncf %29 : vector<8x16xf32> to vector<8x16xbf16>
    %c0_18 = arith.constant 0 : index
    %c0_19 = arith.constant 0 : index
    %31 = vector.load %arg20[%c0_18, %c0_19] : memref<8x128xbf16, #tpu.memory_space<vmem>>, vector<8x16xbf16>
    tpu.vector_store %arg20[%c0_18, %c0_19], %30 {strides = array<i32>} : memref<8x128xbf16, #tpu.memory_space<vmem>>, vector<8x16xbf16>,
    %c0_20 = arith.constant 0 : index
    %c16 = arith.constant 16 : index
    %32 = vector.load %arg19[%c0_20, %c16] : memref<8x384xbf16, #tpu.memory_space<vmem>>, vector<8x16xbf16>
    %c0_21 = arith.constant 0 : index
    %c144 = arith.constant 144 : index
    %33 = vector.load %arg19[%c0_21, %c144] : memref<8x384xbf16, #tpu.memory_space<vmem>>, vector<8x16xbf16>
    %c0_22 = arith.constant 0 : index
    %c272 = arith.constant 272 : index
    %34 = vector.load %arg19[%c0_22, %c272] : memref<8x384xbf16, #tpu.memory_space<vmem>>, vector<8x16xbf16>
    %cst_23 = arith.constant dense<0.000000e+00> : vector<8x8xf32>
    %35 = tpu.matmul %32, %33, %cst_23 {dimension_numbers = #tpu.dot_dimension_numbers<[1], [1], [0], [0], [0, 0, 1, 0], [], []>} : vector<8x16xbf16>, vector<8x16xbf16>, vector<8x8xf32> -> vector<8x8xf32>
    %cst_24 = arith.constant dense<0xFF800000> : vector<8xf32>
    %36 = vector.multi_reduction <maximumf>, %35, %cst_24 [1] : vector<8x8xf32> to vector<8xf32>
    %37 = vector.shape_cast %36 : vector<8xf32> to vector<8x1xf32>
    %38 = vector.broadcast %37 : vector<8x1xf32> to vector<8x8xf32>
    %39 = arith.subf %35, %38 : vector<8x8xf32>
    %40 = math.exp %39 : vector<8x8xf32>
    %cst_25 = arith.constant dense<0.000000e+00> : vector<8xf32>
    %41 = vector.multi_reduction <add>, %40, %cst_25 [1] : vector<8x8xf32> to vector<8xf32>
    %42 = vector.shape_cast %41 : vector<8xf32> to vector<8x1xf32>
    %43 = tpu.reciprocal %42 {approx = true} : vector<8x1xf32> -> vector<8x1xf32>
    %44 = arith.truncf %40 : vector<8x8xf32> to vector<8x8xbf16>
    %cst_26 = arith.constant dense<0.000000e+00> : vector<8x16xf32>
    %45 = tpu.matmul %44, %34, %cst_26 {dimension_numbers = #tpu.dot_dimension_numbers<[1], [0], [0], [1], [0, 0, 1, 1], [], []>} : vector<8x8xbf16>, vector<8x16xbf16>, vector<8x16xf32> -> vector<8x16xf32>
    %46 = vector.broadcast %43 : vector<8x1xf32> to vector<8x16xf32>
    %47 = arith.mulf %45, %46 : vector<8x16xf32>
    %48 = arith.truncf %47 : vector<8x16xf32> to vector<8x16xbf16>
    %c0_27 = arith.constant 0 : index
    %c16_28 = arith.constant 16 : index
    %49 = vector.load %arg20[%c0_27, %c16_28] : memref<8x128xbf16, #tpu.memory_space<vmem>>, vector<8x16xbf16>
    tpu.vector_store %arg20[%c0_27, %c16_28], %48 {strides = array<i32>} : memref<8x128xbf16, #tpu.memory_space<vmem>>, vector<8x16xbf16>,
    %c0_29 = arith.constant 0 : index
    %c32 = arith.constant 32 : index
    %50 = vector.load %arg19[%c0_29, %c32] : memref<8x384xbf16, #tpu.memory_space<vmem>>, vector<8x16xbf16>
    %c0_30 = arith.constant 0 : index
    %c160 = arith.constant 160 : index
    %51 = vector.load %arg19[%c0_30, %c160] : memref<8x384xbf16, #tpu.memory_space<vmem>>, vector<8x16xbf16>
    %c0_31 = arith.constant 0 : index
    %c288 = arith.constant 288 : index
    %52 = vector.load %arg19[%c0_31, %c288] : memref<8x384xbf16, #tpu.memory_space<vmem>>, vector<8x16xbf16>
    %cst_32 = arith.constant dense<0.000000e+00> : vector<8x8xf32>
    %53 = tpu.matmul %50, %51, %cst_32 {dimension_numbers = #tpu.dot_dimension_numbers<[1], [1], [0], [0], [0, 0, 1, 0], [], []>} : vector<8x16xbf16>, vector<8x16xbf16>, vector<8x8xf32> -> vector<8x8xf32>
    %cst_33 = arith.constant dense<0xFF800000> : vector<8xf32>
    %54 = vector.multi_reduction <maximumf>, %53, %cst_33 [1] : vector<8x8xf32> to vector<8xf32>
    %55 = vector.shape_cast %54 : vector<8xf32> to vector<8x1xf32>
    %56 = vector.broadcast %55 : vector<8x1xf32> to vector<8x8xf32>
    %57 = arith.subf %53, %56 : vector<8x8xf32>
    %58 = math.exp %57 : vector<8x8xf32>
    %cst_34 = arith.constant dense<0.000000e+00> : vector<8xf32>
    %59 = vector.multi_reduction <add>, %58, %cst_34 [1] : vector<8x8xf32> to vector<8xf32>
    %60 = vector.shape_cast %59 : vector<8xf32> to vector<8x1xf32>
    %61 = tpu.reciprocal %60 {approx = true} : vector<8x1xf32> -> vector<8x1xf32>
    %62 = arith.truncf %58 : vector<8x8xf32> to vector<8x8xbf16>
    %cst_35 = arith.constant dense<0.000000e+00> : vector<8x16xf32>
    %63 = tpu.matmul %62, %52, %cst_35 {dimension_numbers = #tpu.dot_dimension_numbers<[1], [0], [0], [1], [0, 0, 1, 1], [], []>} : vector<8x8xbf16>, vector<8x16xbf16>, vector<8x16xf32> -> vector<8x16xf32>
    %64 = vector.broadcast %61 : vector<8x1xf32> to vector<8x16xf32>
    %65 = arith.mulf %63, %64 : vector<8x16xf32>
    %66 = arith.truncf %65 : vector<8x16xf32> to vector<8x16xbf16>
    %c0_36 = arith.constant 0 : index
    %c32_37 = arith.constant 32 : index
    %67 = vector.load %arg20[%c0_36, %c32_37] : memref<8x128xbf16, #tpu.memory_space<vmem>>, vector<8x16xbf16>
    tpu.vector_store %arg20[%c0_36, %c32_37], %66 {strides = array<i32>} : memref<8x128xbf16, #tpu.memory_space<vmem>>, vector<8x16xbf16>,
    %c0_38 = arith.constant 0 : index
    %c48 = arith.constant 48 : index
    %68 = vector.load %arg19[%c0_38, %c48] : memref<8x384xbf16, #tpu.memory_space<vmem>>, vector<8x16xbf16>
    %c0_39 = arith.constant 0 : index
    %c176 = arith.constant 176 : index
    %69 = vector.load %arg19[%c0_39, %c176] : memref<8x384xbf16, #tpu.memory_space<vmem>>, vector<8x16xbf16>
    %c0_40 = arith.constant 0 : index
    %c304 = arith.constant 304 : index
    %70 = vector.load %arg19[%c0_40, %c304] : memref<8x384xbf16, #tpu.memory_space<vmem>>, vector<8x16xbf16>
    %cst_41 = arith.constant dense<0.000000e+00> : vector<8x8xf32>
    %71 = tpu.matmul %68, %69, %cst_41 {dimension_numbers = #tpu.dot_dimension_numbers<[1], [1], [0], [0], [0, 0, 1, 0], [], []>} : vector<8x16xbf16>, vector<8x16xbf16>, vector<8x8xf32> -> vector<8x8xf32>
    %cst_42 = arith.constant dense<0xFF800000> : vector<8xf32>
    %72 = vector.multi_reduction <maximumf>, %71, %cst_42 [1] : vector<8x8xf32> to vector<8xf32>
    %73 = vector.shape_cast %72 : vector<8xf32> to vector<8x1xf32>
    %74 = vector.broadcast %73 : vector<8x1xf32> to vector<8x8xf32>
    %75 = arith.subf %71, %74 : vector<8x8xf32>
    %76 = math.exp %75 : vector<8x8xf32>
    %cst_43 = arith.constant dense<0.000000e+00> : vector<8xf32>
    %77 = vector.multi_reduction <add>, %76, %cst_43 [1] : vector<8x8xf32> to vector<8xf32>
    %78 = vector.shape_cast %77 : vector<8xf32> to vector<8x1xf32>
    %79 = tpu.reciprocal %78 {approx = true} : vector<8x1xf32> -> vector<8x1xf32>
    %80 = arith.truncf %76 : vector<8x8xf32> to vector<8x8xbf16>
    %cst_44 = arith.constant dense<0.000000e+00> : vector<8x16xf32>
    %81 = tpu.matmul %80, %70, %cst_44 {dimension_numbers = #tpu.dot_dimension_numbers<[1], [0], [0], [1], [0, 0, 1, 1], [], []>} : vector<8x8xbf16>, vector<8x16xbf16>, vector<8x16xf32> -> vector<8x16xf32>
    %82 = vector.broadcast %79 : vector<8x1xf32> to vector<8x16xf32>
    %83 = arith.mulf %81, %82 : vector<8x16xf32>
    %84 = arith.truncf %83 : vector<8x16xf32> to vector<8x16xbf16>
    %c0_45 = arith.constant 0 : index
    %c48_46 = arith.constant 48 : index
    %85 = vector.load %arg20[%c0_45, %c48_46] : memref<8x128xbf16, #tpu.memory_space<vmem>>, vector<8x16xbf16>
    tpu.vector_store %arg20[%c0_45, %c48_46], %84 {strides = array<i32>} : memref<8x128xbf16, #tpu.memory_space<vmem>>, vector<8x16xbf16>,
    %c0_47 = arith.constant 0 : index
    %c64 = arith.constant 64 : index
    %86 = vector.load %arg19[%c0_47, %c64] : memref<8x384xbf16, #tpu.memory_space<vmem>>, vector<8x16xbf16>
    %c0_48 = arith.constant 0 : index
    %c192 = arith.constant 192 : index
    %87 = vector.load %arg19[%c0_48, %c192] : memref<8x384xbf16, #tpu.memory_space<vmem>>, vector<8x16xbf16>
    %c0_49 = arith.constant 0 : index
    %c320 = arith.constant 320 : index
    %88 = vector.load %arg19[%c0_49, %c320] : memref<8x384xbf16, #tpu.memory_space<vmem>>, vector<8x16xbf16>
    %cst_50 = arith.constant dense<0.000000e+00> : vector<8x8xf32>
    %89 = tpu.matmul %86, %87, %cst_50 {dimension_numbers = #tpu.dot_dimension_numbers<[1], [1], [0], [0], [0, 0, 1, 0], [], []>} : vector<8x16xbf16>, vector<8x16xbf16>, vector<8x8xf32> -> vector<8x8xf32>
    %cst_51 = arith.constant dense<0xFF800000> : vector<8xf32>
    %90 = vector.multi_reduction <maximumf>, %89, %cst_51 [1] : vector<8x8xf32> to vector<8xf32>
    %91 = vector.shape_cast %90 : vector<8xf32> to vector<8x1xf32>
    %92 = vector.broadcast %91 : vector<8x1xf32> to vector<8x8xf32>
    %93 = arith.subf %89, %92 : vector<8x8xf32>
    %94 = math.exp %93 : vector<8x8xf32>
    %cst_52 = arith.constant dense<0.000000e+00> : vector<8xf32>
    %95 = vector.multi_reduction <add>, %94, %cst_52 [1] : vector<8x8xf32> to vector<8xf32>
    %96 = vector.shape_cast %95 : vector<8xf32> to vector<8x1xf32>
    %97 = tpu.reciprocal %96 {approx = true} : vector<8x1xf32> -> vector<8x1xf32>
    %98 = arith.truncf %94 : vector<8x8xf32> to vector<8x8xbf16>
    %cst_53 = arith.constant dense<0.000000e+00> : vector<8x16xf32>
    %99 = tpu.matmul %98, %88, %cst_53 {dimension_numbers = #tpu.dot_dimension_numbers<[1], [0], [0], [1], [0, 0, 1, 1], [], []>} : vector<8x8xbf16>, vector<8x16xbf16>, vector<8x16xf32> -> vector<8x16xf32>
    %100 = vector.broadcast %97 : vector<8x1xf32> to vector<8x16xf32>
    %101 = arith.mulf %99, %100 : vector<8x16xf32>
    %102 = arith.truncf %101 : vector<8x16xf32> to vector<8x16xbf16>
    %c0_54 = arith.constant 0 : index
    %c64_55 = arith.constant 64 : index
    %103 = vector.load %arg20[%c0_54, %c64_55] : memref<8x128xbf16, #tpu.memory_space<vmem>>, vector<8x16xbf16>
    tpu.vector_store %arg20[%c0_54, %c64_55], %102 {strides = array<i32>} : memref<8x128xbf16, #tpu.memory_space<vmem>>, vector<8x16xbf16>,
    %c0_56 = arith.constant 0 : index
    %c80 = arith.constant 80 : index
    %104 = vector.load %arg19[%c0_56, %c80] : memref<8x384xbf16, #tpu.memory_space<vmem>>, vector<8x16xbf16>
    %c0_57 = arith.constant 0 : index
    %c208 = arith.constant 208 : index
    %105 = vector.load %arg19[%c0_57, %c208] : memref<8x384xbf16, #tpu.memory_space<vmem>>, vector<8x16xbf16>
    %c0_58 = arith.constant 0 : index
    %c336 = arith.constant 336 : index
    %106 = vector.load %arg19[%c0_58, %c336] : memref<8x384xbf16, #tpu.memory_space<vmem>>, vector<8x16xbf16>
    %cst_59 = arith.constant dense<0.000000e+00> : vector<8x8xf32>
    %107 = tpu.matmul %104, %105, %cst_59 {dimension_numbers = #tpu.dot_dimension_numbers<[1], [1], [0], [0], [0, 0, 1, 0], [], []>} : vector<8x16xbf16>, vector<8x16xbf16>, vector<8x8xf32> -> vector<8x8xf32>
    %cst_60 = arith.constant dense<0xFF800000> : vector<8xf32>
    %108 = vector.multi_reduction <maximumf>, %107, %cst_60 [1] : vector<8x8xf32> to vector<8xf32>
    %109 = vector.shape_cast %108 : vector<8xf32> to vector<8x1xf32>
    %110 = vector.broadcast %109 : vector<8x1xf32> to vector<8x8xf32>
    %111 = arith.subf %107, %110 : vector<8x8xf32>
    %112 = math.exp %111 : vector<8x8xf32>
    %cst_61 = arith.constant dense<0.000000e+00> : vector<8xf32>
    %113 = vector.multi_reduction <add>, %112, %cst_61 [1] : vector<8x8xf32> to vector<8xf32>
    %114 = vector.shape_cast %113 : vector<8xf32> to vector<8x1xf32>
    %115 = tpu.reciprocal %114 {approx = true} : vector<8x1xf32> -> vector<8x1xf32>
    %116 = arith.truncf %112 : vector<8x8xf32> to vector<8x8xbf16>
    %cst_62 = arith.constant dense<0.000000e+00> : vector<8x16xf32>
    %117 = tpu.matmul %116, %106, %cst_62 {dimension_numbers = #tpu.dot_dimension_numbers<[1], [0], [0], [1], [0, 0, 1, 1], [], []>} : vector<8x8xbf16>, vector<8x16xbf16>, vector<8x16xf32> -> vector<8x16xf32>
    %118 = vector.broadcast %115 : vector<8x1xf32> to vector<8x16xf32>
    %119 = arith.mulf %117, %118 : vector<8x16xf32>
    %120 = arith.truncf %119 : vector<8x16xf32> to vector<8x16xbf16>
    %c0_63 = arith.constant 0 : index
    %c80_64 = arith.constant 80 : index
    %121 = vector.load %arg20[%c0_63, %c80_64] : memref<8x128xbf16, #tpu.memory_space<vmem>>, vector<8x16xbf16>
    tpu.vector_store %arg20[%c0_63, %c80_64], %120 {strides = array<i32>} : memref<8x128xbf16, #tpu.memory_space<vmem>>, vector<8x16xbf16>,
    %c0_65 = arith.constant 0 : index
    %c96 = arith.constant 96 : index
    %122 = vector.load %arg19[%c0_65, %c96] : memref<8x384xbf16, #tpu.memory_space<vmem>>, vector<8x16xbf16>
    %c0_66 = arith.constant 0 : index
    %c224 = arith.constant 224 : index
    %123 = vector.load %arg19[%c0_66, %c224] : memref<8x384xbf16, #tpu.memory_space<vmem>>, vector<8x16xbf16>
    %c0_67 = arith.constant 0 : index
    %c352 = arith.constant 352 : index
    %124 = vector.load %arg19[%c0_67, %c352] : memref<8x384xbf16, #tpu.memory_space<vmem>>, vector<8x16xbf16>
    %cst_68 = arith.constant dense<0.000000e+00> : vector<8x8xf32>
    %125 = tpu.matmul %122, %123, %cst_68 {dimension_numbers = #tpu.dot_dimension_numbers<[1], [1], [0], [0], [0, 0, 1, 0], [], []>} : vector<8x16xbf16>, vector<8x16xbf16>, vector<8x8xf32> -> vector<8x8xf32>
    %cst_69 = arith.constant dense<0xFF800000> : vector<8xf32>
    %126 = vector.multi_reduction <maximumf>, %125, %cst_69 [1] : vector<8x8xf32> to vector<8xf32>
    %127 = vector.shape_cast %126 : vector<8xf32> to vector<8x1xf32>
    %128 = vector.broadcast %127 : vector<8x1xf32> to vector<8x8xf32>
    %129 = arith.subf %125, %128 : vector<8x8xf32>
    %130 = math.exp %129 : vector<8x8xf32>
    %cst_70 = arith.constant dense<0.000000e+00> : vector<8xf32>
    %131 = vector.multi_reduction <add>, %130, %cst_70 [1] : vector<8x8xf32> to vector<8xf32>
    %132 = vector.shape_cast %131 : vector<8xf32> to vector<8x1xf32>
    %133 = tpu.reciprocal %132 {approx = true} : vector<8x1xf32> -> vector<8x1xf32>
    %134 = arith.truncf %130 : vector<8x8xf32> to vector<8x8xbf16>
    %cst_71 = arith.constant dense<0.000000e+00> : vector<8x16xf32>
    %135 = tpu.matmul %134, %124, %cst_71 {dimension_numbers = #tpu.dot_dimension_numbers<[1], [0], [0], [1], [0, 0, 1, 1], [], []>} : vector<8x8xbf16>, vector<8x16xbf16>, vector<8x16xf32> -> vector<8x16xf32>
    %136 = vector.broadcast %133 : vector<8x1xf32> to vector<8x16xf32>
    %137 = arith.mulf %135, %136 : vector<8x16xf32>
    %138 = arith.truncf %137 : vector<8x16xf32> to vector<8x16xbf16>
    %c0_72 = arith.constant 0 : index
    %c96_73 = arith.constant 96 : index
    %139 = vector.load %arg20[%c0_72, %c96_73] : memref<8x128xbf16, #tpu.memory_space<vmem>>, vector<8x16xbf16>
    tpu.vector_store %arg20[%c0_72, %c96_73], %138 {strides = array<i32>} : memref<8x128xbf16, #tpu.memory_space<vmem>>, vector<8x16xbf16>,
    %c0_74 = arith.constant 0 : index
    %c112 = arith.constant 112 : index
    %140 = vector.load %arg19[%c0_74, %c112] : memref<8x384xbf16, #tpu.memory_space<vmem>>, vector<8x16xbf16>
    %c0_75 = arith.constant 0 : index
    %c240 = arith.constant 240 : index
    %141 = vector.load %arg19[%c0_75, %c240] : memref<8x384xbf16, #tpu.memory_space<vmem>>, vector<8x16xbf16>
    %c0_76 = arith.constant 0 : index
    %c368 = arith.constant 368 : index
    %142 = vector.load %arg19[%c0_76, %c368] : memref<8x384xbf16, #tpu.memory_space<vmem>>, vector<8x16xbf16>
    %cst_77 = arith.constant dense<0.000000e+00> : vector<8x8xf32>
    %143 = tpu.matmul %140, %141, %cst_77 {dimension_numbers = #tpu.dot_dimension_numbers<[1], [1], [0], [0], [0, 0, 1, 0], [], []>} : vector<8x16xbf16>, vector<8x16xbf16>, vector<8x8xf32> -> vector<8x8xf32>
    %cst_78 = arith.constant dense<0xFF800000> : vector<8xf32>
    %144 = vector.multi_reduction <maximumf>, %143, %cst_78 [1] : vector<8x8xf32> to vector<8xf32>
    %145 = vector.shape_cast %144 : vector<8xf32> to vector<8x1xf32>
    %146 = vector.broadcast %145 : vector<8x1xf32> to vector<8x8xf32>
    %147 = arith.subf %143, %146 : vector<8x8xf32>
    %148 = math.exp %147 : vector<8x8xf32>
    %cst_79 = arith.constant dense<0.000000e+00> : vector<8xf32>
    %149 = vector.multi_reduction <add>, %148, %cst_79 [1] : vector<8x8xf32> to vector<8xf32>
    %150 = vector.shape_cast %149 : vector<8xf32> to vector<8x1xf32>
    %151 = tpu.reciprocal %150 {approx = true} : vector<8x1xf32> -> vector<8x1xf32>
    %152 = arith.truncf %148 : vector<8x8xf32> to vector<8x8xbf16>
    %cst_80 = arith.constant dense<0.000000e+00> : vector<8x16xf32>
    %153 = tpu.matmul %152, %142, %cst_80 {dimension_numbers = #tpu.dot_dimension_numbers<[1], [0], [0], [1], [0, 0, 1, 1], [], []>} : vector<8x8xbf16>, vector<8x16xbf16>, vector<8x16xf32> -> vector<8x16xf32>
    %154 = vector.broadcast %151 : vector<8x1xf32> to vector<8x16xf32>
    %155 = arith.mulf %153, %154 : vector<8x16xf32>
    %156 = arith.truncf %155 : vector<8x16xf32> to vector<8x16xbf16>
    %c0_81 = arith.constant 0 : index
    %c112_82 = arith.constant 112 : index
    %157 = vector.load %arg20[%c0_81, %c112_82] : memref<8x128xbf16, #tpu.memory_space<vmem>>, vector<8x16xbf16>
    tpu.vector_store %arg20[%c0_81, %c112_82], %156 {strides = array<i32>} : memref<8x128xbf16, #tpu.memory_space<vmem>>, vector<8x16xbf16>,
    %c0_83 = arith.constant 0 : index
    %c0_84 = arith.constant 0 : index
    %158 = vector.load %arg20[%c0_83, %c0_84] : memref<8x128xbf16, #tpu.memory_space<vmem>>, vector<8x128xbf16>
    %c0_85 = arith.constant 0 : index
    %c0_86 = arith.constant 0 : index
    %c0_87 = arith.constant 0 : index
    %159 = vector.load %arg5[%c0_85, %c0_86, %c0_87] : memref<1x128x128xbf16, #tpu.memory_space<vmem>>, vector<1x128x128xbf16>
    %160 = vector.shape_cast %159 : vector<1x128x128xbf16> to vector<128x128xbf16>
    %cst_88 = arith.constant dense<0.000000e+00> : vector<8x128xf32>
    %161 = tpu.matmul %158, %160, %cst_88 {dimension_numbers = #tpu.dot_dimension_numbers<[1], [0], [0], [1], [0, 0, 1, 1], [], []>} : vector<8x128xbf16>, vector<128x128xbf16>, vector<8x128xf32> -> vector<8x128xf32>
    %c0_89 = arith.constant 0 : index
    %c0_90 = arith.constant 0 : index
    %c0_91 = arith.constant 0 : index
    %162 = vector.load %arg6[%c0_89, %c0_90, %c0_91] : memref<1x1x128xf32, #tpu.memory_space<vmem>>, vector<1x1x128xf32>
    %163 = vector.shape_cast %162 : vector<1x1x128xf32> to vector<1x128xf32>
    %164 = vector.broadcast %163 : vector<1x128xf32> to vector<8x128xf32>
    %165 = arith.addf %161, %164 : vector<8x128xf32>
    %166 = arith.addf %3, %165 : vector<8x128xf32>
    %c0_92 = arith.constant 0 : index
    %c0_93 = arith.constant 0 : index
    %c0_94 = arith.constant 0 : index
    %167 = vector.load %arg7[%c0_92, %c0_93, %c0_94] : memref<1x1x128xf32, #tpu.memory_space<vmem>>, vector<1x1x128xf32>
    %168 = vector.shape_cast %167 : vector<1x1x128xf32> to vector<1x128xf32>
    %c0_95 = arith.constant 0 : index
    %c0_96 = arith.constant 0 : index
    %c0_97 = arith.constant 0 : index
    %169 = vector.load %arg8[%c0_95, %c0_96, %c0_97] : memref<1x1x128xf32, #tpu.memory_space<vmem>>, vector<1x1x128xf32>
    %170 = vector.shape_cast %169 : vector<1x1x128xf32> to vector<1x128xf32>
    %cst_98 = arith.constant dense<0.000000e+00> : vector<8xf32>
    %171 = vector.multi_reduction <add>, %166, %cst_98 [1] : vector<8x128xf32> to vector<8xf32>
    %172 = vector.shape_cast %171 : vector<8xf32> to vector<8x1xf32>
    %cst_99 = arith.constant 1.280000e+02 : f32
    %173 = vector.broadcast %cst_99 : f32 to vector<8x1xf32>
    %174 = arith.divf %172, %173 : vector<8x1xf32>
    %175 = vector.broadcast %174 : vector<8x1xf32> to vector<8x128xf32>
    %176 = arith.subf %166, %175 : vector<8x128xf32>
    %177 = arith.mulf %176, %176 : vector<8x128xf32>
    %cst_100 = arith.constant dense<0.000000e+00> : vector<8xf32>
    %178 = vector.multi_reduction <add>, %177, %cst_100 [1] : vector<8x128xf32> to vector<8xf32>
    %179 = vector.shape_cast %178 : vector<8xf32> to vector<8x1xf32>
    %cst_101 = arith.constant 1.280000e+02 : f32
    %180 = vector.broadcast %cst_101 : f32 to vector<8x1xf32>
    %181 = arith.divf %179, %180 : vector<8x1xf32>
    %cst_102 = arith.constant 9.99999974E-6 : f32
    %182 = vector.broadcast %cst_102 : f32 to vector<8x1xf32>
    %183 = arith.addf %181, %182 : vector<8x1xf32>
    %184 = math.rsqrt %183 : vector<8x1xf32>
    %185 = vector.broadcast %184 : vector<8x1xf32> to vector<8x128xf32>
    %186 = arith.mulf %176, %185 : vector<8x128xf32>
    %187 = vector.broadcast %168 : vector<1x128xf32> to vector<8x128xf32>
    %188 = arith.mulf %186, %187 : vector<8x128xf32>
    %189 = vector.broadcast %170 : vector<1x128xf32> to vector<8x128xf32>
    %190 = arith.addf %188, %189 : vector<8x128xf32>
    %191 = arith.truncf %190 : vector<8x128xf32> to vector<8x128xbf16>
    %c0_103 = arith.constant 0 : index
    %c0_104 = arith.constant 0 : index
    %c0_105 = arith.constant 0 : index
    %192 = vector.load %arg9[%c0_103, %c0_104, %c0_105] : memref<1x128x512xbf16, #tpu.memory_space<vmem>>, vector<1x128x512xbf16>
    %193 = vector.shape_cast %192 : vector<1x128x512xbf16> to vector<128x512xbf16>
    %cst_106 = arith.constant dense<0.000000e+00> : vector<8x512xf32>
    %194 = tpu.matmul %191, %193, %cst_106 {dimension_numbers = #tpu.dot_dimension_numbers<[1], [0], [0], [1], [0, 0, 1, 1], [], []>} : vector<8x128xbf16>, vector<128x512xbf16>, vector<8x512xf32> -> vector<8x512xf32>
    %c0_107 = arith.constant 0 : index
    %c0_108 = arith.constant 0 : index
    %c0_109 = arith.constant 0 : index
    %195 = vector.load %arg10[%c0_107, %c0_108, %c0_109] : memref<1x1x512xf32, #tpu.memory_space<vmem>>, vector<1x1x512xf32>
    %196 = vector.shape_cast %195 : vector<1x1x512xf32> to vector<1x512xf32>
    %197 = vector.broadcast %196 : vector<1x512xf32> to vector<8x512xf32>
    %198 = arith.addf %194, %197 : vector<8x512xf32>
    %cst_110 = arith.constant 0.000000e+00 : f32
    %199 = vector.broadcast %cst_110 : f32 to vector<8x512xf32>
    %200 = arith.maximumf %198, %199 : vector<8x512xf32>
    %201 = arith.truncf %200 : vector<8x512xf32> to vector<8x512xbf16>
    %c0_111 = arith.constant 0 : index
    %c0_112 = arith.constant 0 : index
    %c0_113 = arith.constant 0 : index
    %202 = vector.load %arg11[%c0_111, %c0_112, %c0_113] : memref<1x512x128xbf16, #tpu.memory_space<vmem>>, vector<1x512x128xbf16>
    %203 = vector.shape_cast %202 : vector<1x512x128xbf16> to vector<512x128xbf16>
    %cst_114 = arith.constant dense<0.000000e+00> : vector<8x128xf32>
    %204 = tpu.matmul %201, %203, %cst_114 {dimension_numbers = #tpu.dot_dimension_numbers<[1], [0], [0], [1], [0, 0, 1, 1], [], []>} : vector<8x512xbf16>, vector<512x128xbf16>, vector<8x128xf32> -> vector<8x128xf32>
    %c0_115 = arith.constant 0 : index
    %c0_116 = arith.constant 0 : index
    %c0_117 = arith.constant 0 : index
    %205 = vector.load %arg12[%c0_115, %c0_116, %c0_117] : memref<1x1x128xf32, #tpu.memory_space<vmem>>, vector<1x1x128xf32>
    %206 = vector.shape_cast %205 : vector<1x1x128xf32> to vector<1x128xf32>
    %207 = vector.broadcast %206 : vector<1x128xf32> to vector<8x128xf32>
    %208 = arith.addf %204, %207 : vector<8x128xf32>
    %209 = arith.addf %190, %208 : vector<8x128xf32>
    %c0_118 = arith.constant 0 : index
    %c0_119 = arith.constant 0 : index
    %c0_120 = arith.constant 0 : index
    %210 = vector.load %arg13[%c0_118, %c0_119, %c0_120] : memref<1x1x128xf32, #tpu.memory_space<vmem>>, vector<1x1x128xf32>
    %211 = vector.shape_cast %210 : vector<1x1x128xf32> to vector<1x128xf32>
    %c0_121 = arith.constant 0 : index
    %c0_122 = arith.constant 0 : index
    %c0_123 = arith.constant 0 : index
    %212 = vector.load %arg14[%c0_121, %c0_122, %c0_123] : memref<1x1x128xf32, #tpu.memory_space<vmem>>, vector<1x1x128xf32>
    %213 = vector.shape_cast %212 : vector<1x1x128xf32> to vector<1x128xf32>
    %cst_124 = arith.constant dense<0.000000e+00> : vector<8xf32>
    %214 = vector.multi_reduction <add>, %209, %cst_124 [1] : vector<8x128xf32> to vector<8xf32>
    %215 = vector.shape_cast %214 : vector<8xf32> to vector<8x1xf32>
    %cst_125 = arith.constant 1.280000e+02 : f32
    %216 = vector.broadcast %cst_125 : f32 to vector<8x1xf32>
    %217 = arith.divf %215, %216 : vector<8x1xf32>
    %218 = vector.broadcast %217 : vector<8x1xf32> to vector<8x128xf32>
    %219 = arith.subf %209, %218 : vector<8x128xf32>
    %220 = arith.mulf %219, %219 : vector<8x128xf32>
    %cst_126 = arith.constant dense<0.000000e+00> : vector<8xf32>
    %221 = vector.multi_reduction <add>, %220, %cst_126 [1] : vector<8x128xf32> to vector<8xf32>
    %222 = vector.shape_cast %221 : vector<8xf32> to vector<8x1xf32>
    %cst_127 = arith.constant 1.280000e+02 : f32
    %223 = vector.broadcast %cst_127 : f32 to vector<8x1xf32>
    %224 = arith.divf %222, %223 : vector<8x1xf32>
    %cst_128 = arith.constant 9.99999974E-6 : f32
    %225 = vector.broadcast %cst_128 : f32 to vector<8x1xf32>
    %226 = arith.addf %224, %225 : vector<8x1xf32>
    %227 = math.rsqrt %226 : vector<8x1xf32>
    %228 = vector.broadcast %227 : vector<8x1xf32> to vector<8x128xf32>
    %229 = arith.mulf %219, %228 : vector<8x128xf32>
    %230 = vector.broadcast %211 : vector<1x128xf32> to vector<8x128xf32>
    %231 = arith.mulf %229, %230 : vector<8x128xf32>
    %232 = vector.broadcast %213 : vector<1x128xf32> to vector<8x128xf32>
    %233 = arith.addf %231, %232 : vector<8x128xf32>
    %c0_129 = arith.constant 0 : index
    %c0_130 = arith.constant 0 : index
    %234 = vector.load %arg18[%c0_129, %c0_130] : memref<8x128xf32, #tpu.memory_space<vmem>>, vector<8x128xf32>
    tpu.vector_store %arg18[%c0_129, %c0_130], %233 {strides = array<i32>} : memref<8x128xf32, #tpu.memory_space<vmem>>, vector<8x128xf32>,
    %c1_i32 = arith.constant 1 : i32
    %235 = arith.cmpi eq, %arg1, %c1_i32 : i32
    %236 = arith.extui %235 : i1 to i32
    %c0_i32_131 = arith.constant 0 : i32
    %237 = arith.cmpi ne, %236, %c0_i32_131 : i32
    scf.if %237 {
      %c0_132 = arith.constant 0 : index
      %c0_133 = arith.constant 0 : index
      %238 = vector.load %arg15[%c0_132, %c0_133] : memref<1x128xf32, #tpu.memory_space<vmem>>, vector<1x128xf32>
      %c0_134 = arith.constant 0 : index
      %c0_135 = arith.constant 0 : index
      %239 = vector.load %arg16[%c0_134, %c0_135] : memref<1x128xf32, #tpu.memory_space<vmem>>, vector<1x128xf32>
      %cst_136 = arith.constant dense<0.000000e+00> : vector<8xf32>
      %240 = vector.multi_reduction <add>, %233, %cst_136 [1] : vector<8x128xf32> to vector<8xf32>
      %241 = vector.shape_cast %240 : vector<8xf32> to vector<8x1xf32>
      %cst_137 = arith.constant 1.280000e+02 : f32
      %242 = vector.broadcast %cst_137 : f32 to vector<8x1xf32>
      %243 = arith.divf %241, %242 : vector<8x1xf32>
      %244 = vector.broadcast %243 : vector<8x1xf32> to vector<8x128xf32>
      %245 = arith.subf %233, %244 : vector<8x128xf32>
      %246 = arith.mulf %245, %245 : vector<8x128xf32>
      %cst_138 = arith.constant dense<0.000000e+00> : vector<8xf32>
      %247 = vector.multi_reduction <add>, %246, %cst_138 [1] : vector<8x128xf32> to vector<8xf32>
      %248 = vector.shape_cast %247 : vector<8xf32> to vector<8x1xf32>
      %cst_139 = arith.constant 1.280000e+02 : f32
      %249 = vector.broadcast %cst_139 : f32 to vector<8x1xf32>
      %250 = arith.divf %248, %249 : vector<8x1xf32>
      %cst_140 = arith.constant 9.99999974E-6 : f32
      %251 = vector.broadcast %cst_140 : f32 to vector<8x1xf32>
      %252 = arith.addf %250, %251 : vector<8x1xf32>
      %253 = math.rsqrt %252 : vector<8x1xf32>
      %254 = vector.broadcast %253 : vector<8x1xf32> to vector<8x128xf32>
      %255 = arith.mulf %245, %254 : vector<8x128xf32>
      %256 = vector.broadcast %238 : vector<1x128xf32> to vector<8x128xf32>
      %257 = arith.mulf %255, %256 : vector<8x128xf32>
      %258 = vector.broadcast %239 : vector<1x128xf32> to vector<8x128xf32>
      %259 = arith.addf %257, %258 : vector<8x128xf32>
      %c0_141 = arith.constant 0 : index
      %c0_142 = arith.constant 0 : index
      %c0_143 = arith.constant 0 : index
      %260 = vector.load %arg17[%c0_141, %c0_142, %c0_143] : memref<1x8x128xf32, #tpu.memory_space<vmem>>, vector<1x8x128xf32>
      %261 = vector.shape_cast %260 : vector<1x8x128xf32> to vector<8x128xf32>
      %262 = vector.shape_cast %259 : vector<8x128xf32> to vector<1x8x128xf32>
      tpu.vector_store %arg17[%c0_141, %c0_142, %c0_143], %262 {strides = array<i32>} : memref<1x8x128xf32, #tpu.memory_space<vmem>>, vector<1x8x128xf32>,
    } else {
    }
    return
  }
  func.func @transform_0(%arg0: i32, %arg1: i32) -> (i32, i32, i32) {
    %c0_i32 = arith.constant 0 : i32
    %c0_i32_0 = arith.constant 0 : i32
    %c0_i32_1 = arith.constant 0 : i32
    return %arg0, %c0_i32, %c0_i32_0 : i32, i32, i32
  }
  func.func @transform_1(%arg0: i32, %arg1: i32) -> (i32, i32, i32) {
    %c0_i32 = arith.constant 0 : i32
    %c0_i32_0 = arith.constant 0 : i32
    %c0_i32_1 = arith.constant 0 : i32
    return %arg1, %c0_i32, %c0_i32_0 : i32, i32, i32
  }
  func.func @transform_2(%arg0: i32, %arg1: i32) -> (i32, i32, i32) {
    %c0_i32 = arith.constant 0 : i32
    %c0_i32_0 = arith.constant 0 : i32
    %c0_i32_1 = arith.constant 0 : i32
    return %arg1, %c0_i32, %c0_i32_0 : i32, i32, i32
  }
  func.func @transform_3(%arg0: i32, %arg1: i32) -> (i32, i32, i32) {
    %c0_i32 = arith.constant 0 : i32
    %c0_i32_0 = arith.constant 0 : i32
    %c0_i32_1 = arith.constant 0 : i32
    return %arg1, %c0_i32, %c0_i32_0 : i32, i32, i32
  }
  func.func @transform_4(%arg0: i32, %arg1: i32) -> (i32, i32, i32) {
    %c0_i32 = arith.constant 0 : i32
    %c0_i32_0 = arith.constant 0 : i32
    %c0_i32_1 = arith.constant 0 : i32
    return %arg1, %c0_i32, %c0_i32_0 : i32, i32, i32
  }
  func.func @transform_5(%arg0: i32, %arg1: i32) -> (i32, i32, i32) {
    %c0_i32 = arith.constant 0 : i32
    %c0_i32_0 = arith.constant 0 : i32
    %c0_i32_1 = arith.constant 0 : i32
    return %arg1, %c0_i32, %c0_i32_0 : i32, i32, i32
  }
  func.func @transform_6(%arg0: i32, %arg1: i32) -> (i32, i32, i32) {
    %c0_i32 = arith.constant 0 : i32
    %c0_i32_0 = arith.constant 0 : i32
    %c0_i32_1 = arith.constant 0 : i32
    return %arg1, %c0_i32, %c0_i32_0 : i32, i32, i32
  }
  func.func @transform_7(%arg0: i32, %arg1: i32) -> (i32, i32, i32) {
    %c0_i32 = arith.constant 0 : i32
    %c0_i32_0 = arith.constant 0 : i32
    %c0_i32_1 = arith.constant 0 : i32
    return %arg1, %c0_i32, %c0_i32_0 : i32, i32, i32
  }
  func.func @transform_8(%arg0: i32, %arg1: i32) -> (i32, i32, i32) {
    %c0_i32 = arith.constant 0 : i32
    %c0_i32_0 = arith.constant 0 : i32
    %c0_i32_1 = arith.constant 0 : i32
    return %arg1, %c0_i32, %c0_i32_0 : i32, i32, i32
  }
  func.func @transform_9(%arg0: i32, %arg1: i32) -> (i32, i32, i32) {
    %c0_i32 = arith.constant 0 : i32
    %c0_i32_0 = arith.constant 0 : i32
    %c0_i32_1 = arith.constant 0 : i32
    return %arg1, %c0_i32, %c0_i32_0 : i32, i32, i32
  }
  func.func @transform_10(%arg0: i32, %arg1: i32) -> (i32, i32, i32) {
    %c0_i32 = arith.constant 0 : i32
    %c0_i32_0 = arith.constant 0 : i32
    %c0_i32_1 = arith.constant 0 : i32
    return %arg1, %c0_i32, %c0_i32_0 : i32, i32, i32
  }
  func.func @transform_11(%arg0: i32, %arg1: i32) -> (i32, i32, i32) {
    %c0_i32 = arith.constant 0 : i32
    %c0_i32_0 = arith.constant 0 : i32
    %c0_i32_1 = arith.constant 0 : i32
    return %arg1, %c0_i32, %c0_i32_0 : i32, i32, i32
  }
  func.func @transform_12(%arg0: i32, %arg1: i32) -> (i32, i32, i32) {
    %c0_i32 = arith.constant 0 : i32
    %c0_i32_0 = arith.constant 0 : i32
    %c0_i32_1 = arith.constant 0 : i32
    return %arg1, %c0_i32, %c0_i32_0 : i32, i32, i32
  }
  func.func @transform_13(%arg0: i32, %arg1: i32) -> (i32, i32) {
    %c0_i32 = arith.constant 0 : i32
    %c0_i32_0 = arith.constant 0 : i32
    %c0_i32_1 = arith.constant 0 : i32
    return %c0_i32, %c0_i32_0 : i32, i32
  }
  func.func @transform_14(%arg0: i32, %arg1: i32) -> (i32, i32) {
    %c0_i32 = arith.constant 0 : i32
    %c0_i32_0 = arith.constant 0 : i32
    %c0_i32_1 = arith.constant 0 : i32
    return %c0_i32, %c0_i32_0 : i32, i32
  }
  func.func @transform_15(%arg0: i32, %arg1: i32) -> (i32, i32, i32) {
    %c0_i32 = arith.constant 0 : i32
    %c0_i32_0 = arith.constant 0 : i32
    %c0_i32_1 = arith.constant 0 : i32
    return %arg0, %c0_i32, %c0_i32_0 : i32, i32, i32
  }
}

module attributes {stable_mosaic.version = 11 : i64} {
  func.func @_lm_head_kernel(%arg0: i32, %arg1: i32, %arg2: memref<16x128xf32, #tpu.memory_space<vmem>>, %arg3: memref<128x256xbf16, #tpu.memory_space<vmem>>, %arg4: memref<1x256xf32, #tpu.memory_space<vmem>>, %arg5: memref<16x256xf32, #tpu.memory_space<vmem>>) attributes {dimension_semantics = [#tpu.dimension_semantics<parallel>, #tpu.dimension_semantics<parallel>], iteration_bounds = array<i64: 1, 1>, scalar_prefetch = 0 : i64, scratch_operands = 0 : i64, tpu.core_type = #tpu.core_type<tc>, window_params = [{transform_indices = @transform_0, window_bounds = array<i64: 16, 128>}, {transform_indices = @transform_1, window_bounds = array<i64: 128, 256>}, {transform_indices = @transform_2, window_bounds = array<i64: 1, 256>}, {transform_indices = @transform_3, window_bounds = array<i64: 16, 256>}]} {
    %c0 = arith.constant 0 : index
    %c0_0 = arith.constant 0 : index
    %0 = vector.load %arg2[%c0, %c0_0] : memref<16x128xf32, #tpu.memory_space<vmem>>, vector<16x128xf32>
    %1 = arith.truncf %0 : vector<16x128xf32> to vector<16x128xbf16>
    %c0_1 = arith.constant 0 : index
    %c0_2 = arith.constant 0 : index
    %2 = vector.load %arg3[%c0_1, %c0_2] : memref<128x256xbf16, #tpu.memory_space<vmem>>, vector<128x256xbf16>
    %cst = arith.constant dense<0.000000e+00> : vector<16x256xf32>
    %3 = tpu.matmul %1, %2, %cst {dimension_numbers = #tpu.dot_dimension_numbers<[1], [0], [0], [1], [0, 0, 1, 1], [], []>} : vector<16x128xbf16>, vector<128x256xbf16>, vector<16x256xf32> -> vector<16x256xf32>
    %c0_3 = arith.constant 0 : index
    %c0_4 = arith.constant 0 : index
    %4 = vector.load %arg4[%c0_3, %c0_4] : memref<1x256xf32, #tpu.memory_space<vmem>>, vector<1x256xf32>
    %5 = vector.broadcast %4 : vector<1x256xf32> to vector<16x256xf32>
    %6 = arith.addf %3, %5 : vector<16x256xf32>
    %c0_5 = arith.constant 0 : index
    %c0_6 = arith.constant 0 : index
    %7 = vector.load %arg5[%c0_5, %c0_6] : memref<16x256xf32, #tpu.memory_space<vmem>>, vector<16x256xf32>
    tpu.vector_store %arg5[%c0_5, %c0_6], %6 {strides = array<i32>} : memref<16x256xf32, #tpu.memory_space<vmem>>, vector<16x256xf32>,
    return
  }
  func.func @transform_0(%arg0: i32, %arg1: i32) -> (i32, i32) {
    %c0_i32 = arith.constant 0 : i32
    %c0_i32_0 = arith.constant 0 : i32
    return %arg1, %c0_i32 : i32, i32
  }
  func.func @transform_1(%arg0: i32, %arg1: i32) -> (i32, i32) {
    %c0_i32 = arith.constant 0 : i32
    %c0_i32_0 = arith.constant 0 : i32
    return %c0_i32, %arg0 : i32, i32
  }
  func.func @transform_2(%arg0: i32, %arg1: i32) -> (i32, i32) {
    %c0_i32 = arith.constant 0 : i32
    %c0_i32_0 = arith.constant 0 : i32
    return %c0_i32, %arg0 : i32, i32
  }
  func.func @transform_3(%arg0: i32, %arg1: i32) -> (i32, i32) {
    %c0_i32 = arith.constant 0 : i32
    return %arg1, %arg0 : i32, i32
  }
}

</mosaic_0001>

<llo_original>
// kernel: forward.3
$region0: #{forward.3}
  #allocation0 [shape = 'u32[]', space=smem, size = 0x4, offset = 0x4, fixed_abs, tag = 'smem constant byte address 0x4 - core index']
  #allocation1 [shape = 'u32[72,128]{1,0:T(1,128)}', space=vmem, size = 0x9000, scoped, tag = 'internal scratch']
  %s0 = inlined_call_operand.vmem [shape: f32[16,128], index: 0, kind: input, shape index: {}]
  %s1 = inlined_call_operand.vmem [shape: bf16[128,256], index: 1, kind: input, shape index: {}]
  %s2 = inlined_call_operand.vmem [shape: f32[1,256], index: 2, kind: input, shape index: {}]
  %s3 = inlined_call_operand.hbm [shape: f32[16,256], index: 3, kind: output, shape index: {}]
  %s4 = sld [smem:[#allocation0]]
  $region22: #{forward.3} parent=0
    _
  %s6 = ssub.s32 1, %s4
  %s7 = scalar_select 0, %s6, %s4
  $region1: #{forward.3} parent=0
    #allocation2 [shape = 'u8[16384]{0}', space=vmem, size = 0x4000, scoped, tag = 'output window, operand 0, single buffered']
    #allocation3 [shape = 's32[1]{0}', space=sflag, size = 0x4, scoped, tag = 'scoped memory for forward.3']
    %8 = vsyncpa [#allocation3], 0
    // Predicated region
    $region2: #{forward.3} parent=1 // pred_check
      _
    $region3: #{forward.3} parent=1 // pred_check_branch
      %10 = sbr.rel (0) target = $region5
    $region4: #{forward.3} parent=1 // pred_region
      _
    $region5: #{forward.3} parent=1 // pred_fallthru
      _
    // Predicated region
    $region6: #{forward.3} parent=1 // pred_check
      _
    $region7: #{forward.3} parent=1 // pred_check_branch
      %12 = sbr.rel (0) target = $region9
    $region8: #{forward.3} parent=1 // pred_region
      _
    $region9: #{forward.3} parent=1 // pred_fallthru
      _
    // Predicated region
    $region10: #{forward.3} parent=1 // pred_check
      _
    $region11: #{forward.3} parent=1 // pred_check_branch
      %14 = sbr.rel (0) target = $region13
    $region12: #{forward.3} parent=1 // pred_region
      _
    $region13: #{forward.3} parent=1 // pred_fallthru
      _
    %v15 = vld [vmem:[%s0] sm:$0xff]
    %v16 = vld [vmem:[%s0 + $0x8] sm:$0xff]
    %v17 = vpack.c.bf16 %v16, %v15
    %v18 = vld [vmem:[%s1] sm:$0xff]
    %v19 = vld [vmem:[%s1 + $0x8] sm:$0xff]
    %v20 = vld [vmem:[%s1 + $0x10] sm:$0xff]
    %v21 = vld [vmem:[%s1 + $0x18] sm:$0xff]
    %v22 = vld [vmem:[%s1 + $0x20] sm:$0xff]
    %v23 = vld [vmem:[%s1 + $0x28] sm:$0xff]
    %v24 = vld [vmem:[%s1 + $0x30] sm:$0xff]
    %v25 = vld [vmem:[%s1 + $0x38] sm:$0xff]
    %v26 = vld [vmem:[%s1 + $0x40] sm:$0xff]
    %v27 = vld [vmem:[%s1 + $0x48] sm:$0xff]
    %v28 = vld [vmem:[%s1 + $0x50] sm:$0xff]
    %v29 = vld [vmem:[%s1 + $0x58] sm:$0xff]
    %v30 = vld [vmem:[%s1 + $0x60] sm:$0xff]
    %v31 = vld [vmem:[%s1 + $0x68] sm:$0xff]
    %v32 = vld [vmem:[%s1 + $0x70] sm:$0xff]
    %v33 = vld [vmem:[%s1 + $0x78] sm:$0xff]
    %v34 = vld [vmem:[%s2] sm:$0x3]
    %v36 = vperm.slane %v34, 0
    %v37 = vperm.slane %v34, 1
    %v56 = vunpack.c.l.b16 %v18
    %v57 = vunpack.c.h.b16 %v18
    %v58 = vunpack.c.l.b16 %v19
    %v59 = vunpack.c.h.b16 %v19
    %v60 = vunpack.c.l.b16 %v20
    %v61 = vunpack.c.h.b16 %v20
    %v62 = vunpack.c.l.b16 %v21
    %v63 = vunpack.c.h.b16 %v21
    %v64 = vunpack.c.l.b16 %v22
    %v65 = vunpack.c.h.b16 %v22
    %v66 = vunpack.c.l.b16 %v23
    %v67 = vunpack.c.h.b16 %v23
    %v68 = vunpack.c.l.b16 %v24
    %v69 = vunpack.c.h.b16 %v24
    %v70 = vunpack.c.l.b16 %v25
    %v71 = vunpack.c.h.b16 %v25
    %v72 = vunpack.c.l.b16 %v26
    %v73 = vunpack.c.h.b16 %v26
    %v74 = vunpack.c.l.b16 %v27
    %v75 = vunpack.c.h.b16 %v27
    %v76 = vunpack.c.l.b16 %v28
    %v77 = vunpack.c.h.b16 %v28
    %v78 = vunpack.c.l.b16 %v29
    %v79 = vunpack.c.h.b16 %v29
    %v80 = vunpack.c.l.b16 %v30
    %v81 = vunpack.c.h.b16 %v30
    %v82 = vunpack.c.l.b16 %v31
    %v83 = vunpack.c.h.b16 %v31
    %v84 = vunpack.c.l.b16 %v32
    %v85 = vunpack.c.h.b16 %v32
    %v86 = vunpack.c.l.b16 %v33
    %v87 = vunpack.c.h.b16 %v33
    %v88 = vpack.c.b16 %v58, %v56
    %v89 = vpack.c.b16 %v59, %v57
    %v90 = vpack.c.b16 %v62, %v60
    %v91 = vpack.c.b16 %v63, %v61
    %v92 = vpack.c.b16 %v66, %v64
    %v93 = vpack.c.b16 %v67, %v65
    %v94 = vpack.c.b16 %v70, %v68
    %v95 = vpack.c.b16 %v71, %v69
    %v96 = vpack.c.b16 %v74, %v72
    %v97 = vpack.c.b16 %v75, %v73
    %v98 = vpack.c.b16 %v78, %v76
    %v99 = vpack.c.b16 %v79, %v77
    %v100 = vpack.c.b16 %v82, %v80
    %v101 = vpack.c.b16 %v83, %v81
    %v102 = vpack.c.b16 %v86, %v84
    %v103 = vpack.c.b16 %v87, %v85
    %120 = vmatpush.bf16.msra.mxu0 %v102
    %121 = vmatpush.bf16.msra.mxu0 %v100
    %122 = vmatpush.bf16.msra.mxu0 %v98
    %123 = vmatpush.bf16.msra.mxu0 %v96
    %124 = vmatpush.bf16.msra.mxu0 %v94
    %125 = vmatpush.bf16.msra.mxu0 %v92
    %126 = vmatpush.bf16.msra.mxu0 %v90
    %127 = vmatpush.bf16.msra.mxu0 %v88
    %128 = vmatmul.bf16.gmra.mxu0 %v17
    %v129 = vpop.f32.mrf.mxu0
    %v130 = vadd.f32 %v36, %v129
    %v131 = vpop.f32.mrf.mxu0
    %v132 = vadd.f32 %v36, %v131
    %133 = vdwg.mxu0
    %134 = vmatpush.bf16.msra.mxu0 %v103
    %135 = vmatpush.bf16.msra.mxu0 %v101
    %136 = vmatpush.bf16.msra.mxu0 %v99
    %137 = vmatpush.bf16.msra.mxu0 %v97
    %138 = vmatpush.bf16.msra.mxu0 %v95
    %139 = vmatpush.bf16.msra.mxu0 %v93
    %140 = vmatpush.bf16.msra.mxu0 %v91
    %141 = vmatpush.bf16.msra.mxu0 %v89
    %142 = vmatmul.bf16.gmra.mxu0 %v17
    %v143 = vpop.f32.mrf.mxu0
    %v144 = vadd.f32 %v37, %v143
    %v145 = vpop.f32.mrf.mxu0
    %v146 = vadd.f32 %v37, %v145
    %147 = vdwg.mxu0
    %148 = vst [vmem:[#allocation2] sm:$0xff] %v130
    %149 = vst [vmem:[#allocation2 + $0x8] sm:$0xff] %v144
    %150 = vst [vmem:[#allocation2 + $0x10] sm:$0xff] %v132
    %151 = vst [vmem:[#allocation2 + $0x18] sm:$0xff] %v146
    // Predicated region
    $region14: #{forward.3} parent=1 // pred_check
      _
    $region15: #{forward.3} parent=1 // pred_check_branch
      %153 = sbr.rel (0) target = $region17
    $region16: #{forward.3} parent=1 // pred_region
      %155 = vsyncadd [#allocation3], 0
      %s156 = sshll.u32 [#allocation2], 4
      %s157 = int_to_ptr.vmem [resolvable:$true] %s156
      %s158 = sshll.u32 %s3, 4
      %s159 = int_to_ptr.hbm [resolvable:$true] %s158
      %164 = dma.vmem_to_hbm [thread:$0]  %s157, 512, %s159, [#allocation3], 256, 256, 16
    $region17: #{forward.3} parent=1 // pred_fallthru
      _
    // Predicated region
    $region18: #{forward.3} parent=1 // pred_check
      _
    $region19: #{forward.3} parent=1 // pred_check_branch
      %166 = sbr.rel (0) target = $region21
    $region20: #{forward.3} parent=1 // pred_region
      %168 = dma.done [#allocation3], 512
    $region21: #{forward.3} parent=1 // pred_fallthru
      _
    %169 = vsyncpa [#allocation3], 1

// kernel: forward.2
$region0: #{forward.2}
  #allocation0 [shape = 'u32[]', space=smem, size = 0x4, offset = 0x4, fixed_abs, tag = 'smem constant byte address 0x4 - core index']
  #allocation1 [shape = 'u32[72,128]{1,0:T(1,128)}', space=vmem, size = 0x9000, scoped, tag = 'internal scratch']
  #allocation2 [shape = 'f32[8,128]{1,0:T(8,128)}', space=vmem, size = 0x1000, scoped, tag = 'scratch operand']
  #allocation3 [shape = 'bf16[8,384]{1,0:T(8,128)(2,1)}', space=vmem, size = 0x1800, scoped, tag = 'scratch operand']
  #allocation4 [shape = 'bf16[8,128]{1,0:T(8,128)(2,1)}', space=vmem, size = 0x800, scoped, tag = 'scratch operand']
  %s0 = inlined_call_operand.vmem [shape: f32[2,8,128], index: 0, kind: input, shape index: {}]
  %s1 = inlined_call_operand.hbm [shape: bf16[2,128,384], index: 1, kind: input, shape index: {}]
  %s2 = inlined_call_operand.vmem [shape: f32[2,1,384], index: 2, kind: input, shape index: {}]
  %s3 = inlined_call_operand.vmem [shape: bf16[2,128,128], index: 3, kind: input, shape index: {}]
  %s4 = inlined_call_operand.vmem [shape: f32[2,1,128], index: 4, kind: input, shape index: {}]
  %s5 = inlined_call_operand.vmem [shape: f32[2,1,128], index: 5, kind: input, shape index: {}]
  %s6 = inlined_call_operand.vmem [shape: f32[2,1,128], index: 6, kind: input, shape index: {}]
  %s7 = inlined_call_operand.hbm [shape: bf16[2,128,512], index: 7, kind: input, shape index: {}]
  %s8 = inlined_call_operand.vmem [shape: f32[2,1,512], index: 8, kind: input, shape index: {}]
  %s9 = inlined_call_operand.hbm [shape: bf16[2,512,128], index: 9, kind: input, shape index: {}]
  %s10 = inlined_call_operand.vmem [shape: f32[2,1,128], index: 10, kind: input, shape index: {}]
  %s11 = inlined_call_operand.vmem [shape: f32[2,1,128], index: 11, kind: input, shape index: {}]
  %s12 = inlined_call_operand.vmem [shape: f32[2,1,128], index: 12, kind: input, shape index: {}]
  %s13 = inlined_call_operand.vmem [shape: f32[1,128], index: 13, kind: input, shape index: {}]
  %s14 = inlined_call_operand.vmem [shape: f32[1,128], index: 14, kind: input, shape index: {}]
  %s15 = inlined_call_operand.vmem [shape: f32[2,8,128], index: 15, kind: output, shape index: {}]
  %s16 = sld [smem:[#allocation0]]
  $region113: #{forward.2} parent=0
    _
  %s18 = ssub.s32 1, %s16
  %s19 = scalar_select 0, %s18, %s16
  $region1: #{forward.2} parent=0
    #allocation5 [shape = 'u8[196608]{0}', space=vmem, size = 0x30000, scoped, tag = 'input window, operand 1']
    #allocation6 [shape = 's32[2]{0}', space=sflag, size = 0x8, scoped, tag = 'scoped memory for forward.2']
    #allocation7 [shape = 'u8[262144]{0}', space=vmem, size = 0x40000, scoped, tag = 'input window, operand 7']
    #allocation8 [shape = 's32[2]{0}', space=sflag, size = 0x8, scoped, tag = 'scoped memory for forward.2']
    #allocation9 [shape = 'u8[262144]{0}', space=vmem, size = 0x40000, scoped, tag = 'input window, operand 9']
    %20 = vsyncpa [#allocation6], 0
    %s21 = scalar_lea.sflag [#allocation6], 1
    %22 = vsyncpa %s21, 0
    %23 = vsyncpa [#allocation8], 0
    %s24 = scalar_lea.sflag [#allocation8], 1
    %25 = vsyncpa %s24, 0
    loop: start=0, step=1, limit=6
    $region2: #{forward.2} parent=1 // loop_pre_header
      _
    $region3: #{forward.2} parent=1 // loop_header
      %s27 = sphi 0, %s31
      %p28 = scmp.ge.s32.totalorder %s27, 6
      %s34 = sphi 0, %s46
      %s35 = sphi 0, %s42
      %s36 = sphi 0, %s34
      %s37 = sphi 0, %s35
      %s38 = sphi 0, %s36
      %s39 = sphi 0, %s37
      %s49 = sphi 0, %s51
      %s52 = sphi 0, %s49
      %s53 = sphi 0, %s52
      %s69 = sphi 0, %s53
      %s75 = sphi 0, %s77
      %s78 = sphi 0, %s75
      %s79 = sphi 0, %s78
      %s95 = sphi 0, %s79
      %s101 = sphi 0, %s103
      %s104 = sphi 0, %s101
      %s105 = sphi 0, %s104
      %s121 = sphi 0, %s105
      %s127 = sphi 0, %s129
      %s130 = sphi 0, %s127
      %s131 = sphi 0, %s130
      %s147 = sphi 0, %s131
      %s153 = sphi 0, %s155
      %s156 = sphi 0, %s153
      %s157 = sphi 0, %s156
      %s173 = sphi 0, %s157
      %s179 = sphi 0, %s181
      %s182 = sphi 0, %s179
      %s183 = sphi 0, %s182
      %s199 = sphi 0, %s183
      %s205 = sphi 0, %s207
      %s208 = sphi 0, %s205
      %s209 = sphi 0, %s208
      %s225 = sphi 0, %s209
      %s231 = sphi 0, %s233
      %s234 = sphi 0, %s231
      %s235 = sphi 0, %s234
      %s251 = sphi 0, %s235
      %s257 = sphi 0, %s259
      %s260 = sphi 0, %s257
      %s261 = sphi 0, %s260
      %s277 = sphi 0, %s261
      %s283 = sphi 0, %s285
      %s286 = sphi 0, %s283
      %s287 = sphi 0, %s286
      %s303 = sphi 0, %s287
      %s309 = sphi 0, %s311
      %s312 = sphi 0, %s309
      %s313 = sphi 0, %s312
      %s329 = sphi 0, %s313
      %s335 = sphi 0, %s337
      %s338 = sphi 0, %s335
      %s339 = sphi 0, %s338
      %s355 = sphi 0, %s339
      %s361 = sphi 0, %s363
      %s364 = sphi 0, %s361
      %s365 = sphi 0, %s364
      %s381 = sphi 0, %s365
      %s385 = sphi 0, %s385
      %s387 = sphi 0, %s385
      %s388 = sphi 0, %s387
      %s402 = sphi 0, %s388
      %s406 = sphi 0, %s406
      %s408 = sphi 0, %s406
      %s409 = sphi 0, %s408
      %s423 = sphi 0, %s409
      %s429 = sphi 0, %s431
      %s432 = sphi 0, %s429
      %s433 = sphi 0, %s432
      %s449 = sphi 0, %s433
    $region4: #{forward.2} parent=1 // loop_header_branch
      %30 = sbr.rel (%p28) target = $region8
    $region5: #{forward.2} parent=1 // loop_body
      %s32 = ssub.s32 %s27, 1
      %s33 = ssub.s32 %s27, 2
      %s40 = sadd.s32 1, %s35
      %p41 = scmp.ge.s32.totalorder %s40, 2
      %s42 = scalar_select %p41, 0, %s40
      %s43 = sadd.s32 1, %s34
      %s44 = scalar_select %p41, %s43, %s34
      %p45 = scmp.ge.s32.totalorder %s44, 2
      %s46 = scalar_select %p45, 0, %s44
      %s47 = ssub.s32 %s34, %s46
      %p48 = scmp.eq.s32.totalorder %s47, 0
      %s50 = sadd.s32 %s49, 1
      %s51 = scalar_select %p48, %s49, %s50
      %p54 = pneg %p48
      %p55 = scmp.eq.s32.totalorder %s27, 3
      %p56 = por %p54, %p55
      %p57 = scmp.ne.s32.totalorder %s49, %s52
      %p58 = scmp.eq.s32.totalorder %s27, 0
      %p59 = por %p57, %p58
      %p60 = scmp.ne.s32.totalorder %s49, %s52
      %p61 = scmp.eq.s32.totalorder %s32, 3
      %p62 = por %p60, %p61
      %p63 = scmp.ne.s32.totalorder %s52, %s53
      %p64 = scmp.eq.s32.totalorder %s32, 0
      %p65 = por %p63, %p64
      %p66 = scmp.ne.s32.totalorder %s52, %s53
      %p67 = scmp.eq.s32.totalorder %s33, 3
      %p68 = por %p66, %p67
      %p70 = scmp.ne.s32.totalorder %s53, %s69
      %p71 = scmp.eq.s32.totalorder %s33, 0
      %p72 = por %p70, %p71
      %s73 = ssub.s32 %s35, %s42
      %p74 = scmp.eq.s32.totalorder %s73, 0
      %s76 = sadd.s32 %s75, 1
      %s77 = scalar_select %p74, %s75, %s76
      %p80 = pneg %p74
      %p81 = scmp.eq.s32.totalorder %s27, 3
      %p82 = por %p80, %p81
      %p83 = scmp.ne.s32.totalorder %s75, %s78
      %p84 = scmp.eq.s32.totalorder %s27, 0
      %p85 = por %p83, %p84
      %p86 = scmp.ne.s32.totalorder %s75, %s78
      %p87 = scmp.eq.s32.totalorder %s32, 3
      %p88 = por %p86, %p87
      %p89 = scmp.ne.s32.totalorder %s78, %s79
      %p90 = scmp.eq.s32.totalorder %s32, 0
      %p91 = por %p89, %p90
      %p92 = scmp.ne.s32.totalorder %s78, %s79
      %p93 = scmp.eq.s32.totalorder %s33, 3
      %p94 = por %p92, %p93
      %p96 = scmp.ne.s32.totalorder %s79, %s95
      %p97 = scmp.eq.s32.totalorder %s33, 0
      %p98 = por %p96, %p97
      %s99 = ssub.s32 %s35, %s42
      %p100 = scmp.eq.s32.totalorder %s99, 0
      %s102 = sadd.s32 %s101, 1
      %s103 = scalar_select %p100, %s101, %s102
      %p106 = pneg %p100
      %p107 = scmp.eq.s32.totalorder %s27, 3
      %p108 = por %p106, %p107
      %p109 = scmp.ne.s32.totalorder %s101, %s104
      %p110 = scmp.eq.s32.totalorder %s27, 0
      %p111 = por %p109, %p110
      %p112 = scmp.ne.s32.totalorder %s101, %s104
      %p113 = scmp.eq.s32.totalorder %s32, 3
      %p114 = por %p112, %p113
      %p115 = scmp.ne.s32.totalorder %s104, %s105
      %p116 = scmp.eq.s32.totalorder %s32, 0
      %p117 = por %p115, %p116
      %p118 = scmp.ne.s32.totalorder %s104, %s105
      %p119 = scmp.eq.s32.totalorder %s33, 3
      %p120 = por %p118, %p119
      %p122 = scmp.ne.s32.totalorder %s105, %s121
      %p123 = scmp.eq.s32.totalorder %s33, 0
      %p124 = por %p122, %p123
      %s125 = ssub.s32 %s35, %s42
      %p126 = scmp.eq.s32.totalorder %s125, 0
      %s128 = sadd.s32 %s127, 1
      %s129 = scalar_select %p126, %s127, %s128
      %p132 = pneg %p126
      %p133 = scmp.eq.s32.totalorder %s27, 3
      %p134 = por %p132, %p133
      %p135 = scmp.ne.s32.totalorder %s127, %s130
      %p136 = scmp.eq.s32.totalorder %s27, 0
      %p137 = por %p135, %p136
      %p138 = scmp.ne.s32.totalorder %s127, %s130
      %p139 = scmp.eq.s32.totalorder %s32, 3
      %p140 = por %p138, %p139
      %p141 = scmp.ne.s32.totalorder %s130, %s131
      %p142 = scmp.eq.s32.totalorder %s32, 0
      %p143 = por %p141, %p142
      %p144 = scmp.ne.s32.totalorder %s130, %s131
      %p145 = scmp.eq.s32.totalorder %s33, 3
      %p146 = por %p144, %p145
      %p148 = scmp.ne.s32.totalorder %s131, %s147
      %p149 = scmp.eq.s32.totalorder %s33, 0
      %p150 = por %p148, %p149
      %s151 = ssub.s32 %s35, %s42
      %p152 = scmp.eq.s32.totalorder %s151, 0
      %s154 = sadd.s32 %s153, 1
      %s155 = scalar_select %p152, %s153, %s154
      %p158 = pneg %p152
      %p159 = scmp.eq.s32.totalorder %s27, 3
      %p160 = por %p158, %p159
      %p161 = scmp.ne.s32.totalorder %s153, %s156
      %p162 = scmp.eq.s32.totalorder %s27, 0
      %p163 = por %p161, %p162
      %p164 = scmp.ne.s32.totalorder %s153, %s156
      %p165 = scmp.eq.s32.totalorder %s32, 3
      %p166 = por %p164, %p165
      %p167 = scmp.ne.s32.totalorder %s156, %s157
      %p168 = scmp.eq.s32.totalorder %s32, 0
      %p169 = por %p167, %p168
      %p170 = scmp.ne.s32.totalorder %s156, %s157
      %p171 = scmp.eq.s32.totalorder %s33, 3
      %p172 = por %p170, %p171
      %p174 = scmp.ne.s32.totalorder %s157, %s173
      %p175 = scmp.eq.s32.totalorder %s33, 0
      %p176 = por %p174, %p175
      %s177 = ssub.s32 %s35, %s42
      %p178 = scmp.eq.s32.totalorder %s177, 0
      %s180 = sadd.s32 %s179, 1
      %s181 = scalar_select %p178, %s179, %s180
      %p184 = pneg %p178
      %p185 = scmp.eq.s32.totalorder %s27, 3
      %p186 = por %p184, %p185
      %p187 = scmp.ne.s32.totalorder %s179, %s182
      %p188 = scmp.eq.s32.totalorder %s27, 0
      %p189 = por %p187, %p188
      %p190 = scmp.ne.s32.totalorder %s179, %s182
      %p191 = scmp.eq.s32.totalorder %s32, 3
      %p192 = por %p190, %p191
      %p193 = scmp.ne.s32.totalorder %s182, %s183
      %p194 = scmp.eq.s32.totalorder %s32, 0
      %p195 = por %p193, %p194
      %p196 = scmp.ne.s32.totalorder %s182, %s183
      %p197 = scmp.eq.s32.totalorder %s33, 3
      %p198 = por %p196, %p197
      %p200 = scmp.ne.s32.totalorder %s183, %s199
      %p201 = scmp.eq.s32.totalorder %s33, 0
      %p202 = por %p200, %p201
      %s203 = ssub.s32 %s35, %s42
      %p204 = scmp.eq.s32.totalorder %s203, 0
      %s206 = sadd.s32 %s205, 1
      %s207 = scalar_select %p204, %s205, %s206
      %p210 = pneg %p204
      %p211 = scmp.eq.s32.totalorder %s27, 3
      %p212 = por %p210, %p211
      %p213 = scmp.ne.s32.totalorder %s205, %s208
      %p214 = scmp.eq.s32.totalorder %s27, 0
      %p215 = por %p213, %p214
      %p216 = scmp.ne.s32.totalorder %s205, %s208
      %p217 = scmp.eq.s32.totalorder %s32, 3
      %p218 = por %p216, %p217
      %p219 = scmp.ne.s32.totalorder %s208, %s209
      %p220 = scmp.eq.s32.totalorder %s32, 0
      %p221 = por %p219, %p220
      %p222 = scmp.ne.s32.totalorder %s208, %s209
      %p223 = scmp.eq.s32.totalorder %s33, 3
      %p224 = por %p222, %p223
      %p226 = scmp.ne.s32.totalorder %s209, %s225
      %p227 = scmp.eq.s32.totalorder %s33, 0
      %p228 = por %p226, %p227
      %s229 = ssub.s32 %s35, %s42
      %p230 = scmp.eq.s32.totalorder %s229, 0
      %s232 = sadd.s32 %s231, 1
      %s233 = scalar_select %p230, %s231, %s232
      %p236 = pneg %p230
      %p237 = scmp.eq.s32.totalorder %s27, 3
      %p238 = por %p236, %p237
      %p239 = scmp.ne.s32.totalorder %s231, %s234
      %p240 = scmp.eq.s32.totalorder %s27, 0
      %p241 = por %p239, %p240
      %p242 = scmp.ne.s32.totalorder %s231, %s234
      %p243 = scmp.eq.s32.totalorder %s32, 3
      %p244 = por %p242, %p243
      %p245 = scmp.ne.s32.totalorder %s234, %s235
      %p246 = scmp.eq.s32.totalorder %s32, 0
      %p247 = por %p245, %p246
      %p248 = scmp.ne.s32.totalorder %s234, %s235
      %p249 = scmp.eq.s32.totalorder %s33, 3
      %p250 = por %p248, %p249
      %p252 = scmp.ne.s32.totalorder %s235, %s251
      %p253 = scmp.eq.s32.totalorder %s33, 0
      %p254 = por %p252, %p253
      %s255 = ssub.s32 %s35, %s42
      %p256 = scmp.eq.s32.totalorder %s255, 0
      %s258 = sadd.s32 %s257, 1
      %s259 = scalar_select %p256, %s257, %s258
      %p262 = pneg %p256
      %p263 = scmp.eq.s32.totalorder %s27, 3
      %p264 = por %p262, %p263
      %p265 = scmp.ne.s32.totalorder %s257, %s260
      %p266 = scmp.eq.s32.totalorder %s27, 0
      %p267 = por %p265, %p266
      %p268 = scmp.ne.s32.totalorder %s257, %s260
      %p269 = scmp.eq.s32.totalorder %s32, 3
      %p270 = por %p268, %p269
      %p271 = scmp.ne.s32.totalorder %s260, %s261
      %p272 = scmp.eq.s32.totalorder %s32, 0
      %p273 = por %p271, %p272
      %p274 = scmp.ne.s32.totalorder %s260, %s261
      %p275 = scmp.eq.s32.totalorder %s33, 3
      %p276 = por %p274, %p275
      %p278 = scmp.ne.s32.totalorder %s261, %s277
      %p279 = scmp.eq.s32.totalorder %s33, 0
      %p280 = por %p278, %p279
      %s281 = ssub.s32 %s35, %s42
      %p282 = scmp.eq.s32.totalorder %s281, 0
      %s284 = sadd.s32 %s283, 1
      %s285 = scalar_select %p282, %s283, %s284
      %p288 = pneg %p282
      %p289 = scmp.eq.s32.totalorder %s27, 3
      %p290 = por %p288, %p289
      %p291 = scmp.ne.s32.totalorder %s283, %s286
      %p292 = scmp.eq.s32.totalorder %s27, 0
      %p293 = por %p291, %p292
      %p294 = scmp.ne.s32.totalorder %s283, %s286
      %p295 = scmp.eq.s32.totalorder %s32, 3
      %p296 = por %p294, %p295
      %p297 = scmp.ne.s32.totalorder %s286, %s287
      %p298 = scmp.eq.s32.totalorder %s32, 0
      %p299 = por %p297, %p298
      %p300 = scmp.ne.s32.totalorder %s286, %s287
      %p301 = scmp.eq.s32.totalorder %s33, 3
      %p302 = por %p300, %p301
      %p304 = scmp.ne.s32.totalorder %s287, %s303
      %p305 = scmp.eq.s32.totalorder %s33, 0
      %p306 = por %p304, %p305
      %s307 = ssub.s32 %s35, %s42
      %p308 = scmp.eq.s32.totalorder %s307, 0
      %s310 = sadd.s32 %s309, 1
      %s311 = scalar_select %p308, %s309, %s310
      %p314 = pneg %p308
      %p315 = scmp.eq.s32.totalorder %s27, 3
      %p316 = por %p314, %p315
      %p317 = scmp.ne.s32.totalorder %s309, %s312
      %p318 = scmp.eq.s32.totalorder %s27, 0
      %p319 = por %p317, %p318
      %p320 = scmp.ne.s32.totalorder %s309, %s312
      %p321 = scmp.eq.s32.totalorder %s32, 3
      %p322 = por %p320, %p321
      %p323 = scmp.ne.s32.totalorder %s312, %s313
      %p324 = scmp.eq.s32.totalorder %s32, 0
      %p325 = por %p323, %p324
      %p326 = scmp.ne.s32.totalorder %s312, %s313
      %p327 = scmp.eq.s32.totalorder %s33, 3
      %p328 = por %p326, %p327
      %p330 = scmp.ne.s32.totalorder %s313, %s329
      %p331 = scmp.eq.s32.totalorder %s33, 0
      %p332 = por %p330, %p331
      %s333 = ssub.s32 %s35, %s42
      %p334 = scmp.eq.s32.totalorder %s333, 0
      %s336 = sadd.s32 %s335, 1
      %s337 = scalar_select %p334, %s335, %s336
      %p340 = pneg %p334
      %p341 = scmp.eq.s32.totalorder %s27, 3
      %p342 = por %p340, %p341
      %p343 = scmp.ne.s32.totalorder %s335, %s338
      %p344 = scmp.eq.s32.totalorder %s27, 0
      %p345 = por %p343, %p344
      %p346 = scmp.ne.s32.totalorder %s335, %s338
      %p347 = scmp.eq.s32.totalorder %s32, 3
      %p348 = por %p346, %p347
      %p349 = scmp.ne.s32.totalorder %s338, %s339
      %p350 = scmp.eq.s32.totalorder %s32, 0
      %p351 = por %p349, %p350
      %p352 = scmp.ne.s32.totalorder %s338, %s339
      %p353 = scmp.eq.s32.totalorder %s33, 3
      %p354 = por %p352, %p353
      %p356 = scmp.ne.s32.totalorder %s339, %s355
      %p357 = scmp.eq.s32.totalorder %s33, 0
      %p358 = por %p356, %p357
      %s359 = ssub.s32 %s35, %s42
      %p360 = scmp.eq.s32.totalorder %s359, 0
      %s362 = sadd.s32 %s361, 1
      %s363 = scalar_select %p360, %s361, %s362
      %p366 = pneg %p360
      %p367 = scmp.eq.s32.totalorder %s27, 3
      %p368 = por %p366, %p367
      %p369 = scmp.ne.s32.totalorder %s361, %s364
      %p370 = scmp.eq.s32.totalorder %s27, 0
      %p371 = por %p369, %p370
      %p372 = scmp.ne.s32.totalorder %s361, %s364
      %p373 = scmp.eq.s32.totalorder %s32, 3
      %p374 = por %p372, %p373
      %p375 = scmp.ne.s32.totalorder %s364, %s365
      %p376 = scmp.eq.s32.totalorder %s32, 0
      %p377 = por %p375, %p376
      %p378 = scmp.ne.s32.totalorder %s364, %s365
      %p379 = scmp.eq.s32.totalorder %s33, 3
      %p380 = por %p378, %p379
      %p382 = scmp.ne.s32.totalorder %s365, %s381
      %p383 = scmp.eq.s32.totalorder %s33, 0
      %p384 = por %p382, %p383
      %s386 = sadd.s32 %s385, 1
      %p389 = scmp.eq.s32.totalorder %s27, 3
      %p390 = scmp.ne.s32.totalorder %s385, %s387
      %p391 = scmp.eq.s32.totalorder %s27, 0
      %p392 = por %p390, %p391
      %p393 = scmp.ne.s32.totalorder %s385, %s387
      %p394 = scmp.eq.s32.totalorder %s32, 3
      %p395 = por %p393, %p394
      %p396 = scmp.ne.s32.totalorder %s387, %s388
      %p397 = scmp.eq.s32.totalorder %s32, 0
      %p398 = por %p396, %p397
      %p399 = scmp.ne.s32.totalorder %s387, %s388
      %p400 = scmp.eq.s32.totalorder %s33, 3
      %p401 = por %p399, %p400
      %p403 = scmp.ne.s32.totalorder %s388, %s402
      %p404 = scmp.eq.s32.totalorder %s33, 0
      %p405 = por %p403, %p404
      %s407 = sadd.s32 %s406, 1
      %p410 = scmp.eq.s32.totalorder %s27, 3
      %p411 = scmp.ne.s32.totalorder %s406, %s408
      %p412 = scmp.eq.s32.totalorder %s27, 0
      %p413 = por %p411, %p412
      %p414 = scmp.ne.s32.totalorder %s406, %s408
      %p415 = scmp.eq.s32.totalorder %s32, 3
      %p416 = por %p414, %p415
      %p417 = scmp.ne.s32.totalorder %s408, %s409
      %p418 = scmp.eq.s32.totalorder %s32, 0
      %p419 = por %p417, %p418
      %p420 = scmp.ne.s32.totalorder %s408, %s409
      %p421 = scmp.eq.s32.totalorder %s33, 3
      %p422 = por %p420, %p421
      %p424 = scmp.ne.s32.totalorder %s409, %s423
      %p425 = scmp.eq.s32.totalorder %s33, 0
      %p426 = por %p424, %p425
      %s427 = ssub.s32 %s34, %s46
      %p428 = scmp.eq.s32.totalorder %s427, 0
      %s430 = sadd.s32 %s429, 1
      %s431 = scalar_select %p428, %s429, %s430
      %p434 = pneg %p428
      %p435 = scmp.eq.s32.totalorder %s27, 3
      %p436 = por %p434, %p435
      %p437 = scmp.ne.s32.totalorder %s429, %s432
      %p438 = scmp.eq.s32.totalorder %s27, 0
      %p439 = por %p437, %p438
      %p440 = scmp.ne.s32.totalorder %s429, %s432
      %p441 = scmp.eq.s32.totalorder %s32, 3
      %p442 = por %p440, %p441
      %p443 = scmp.ne.s32.totalorder %s432, %s433
      %p444 = scmp.eq.s32.totalorder %s32, 0
      %p445 = por %p443, %p444
      %p446 = scmp.ne.s32.totalorder %s432, %s433
      %p447 = scmp.eq.s32.totalorder %s33, 3
      %p448 = por %p446, %p447
      %p450 = scmp.ne.s32.totalorder %s433, %s449
      %p451 = scmp.eq.s32.totalorder %s33, 0
      %p452 = por %p450, %p451
      %p453 = scmp.le.s32.totalorder 1, %s27
      %p454 = scmp.lt.s32.totalorder %s27, 5
      %p455 = pnand %p453, %p454
      %p456 = pneg %p455
      // Predicated region
      $region9: #{forward.2} parent=5 // pred_check
        _
      $region10: #{forward.2} parent=5 // pred_check_branch
        %458 = sbr.rel (%p455) target = $region12
      $region11: #{forward.2} parent=5 // pred_region
        %s459 = ssub.s32 %s27, 1
        // Predicated region
        $region13: #{forward.2} parent=11 // pred_check
          %p460 = pneg %p398
        $region14: #{forward.2} parent=11 // pred_check_branch
          %462 = sbr.rel (%p460) target = $region16
        $region15: #{forward.2} parent=11 // pred_region
          _
        $region16: #{forward.2} parent=11 // pred_fallthru
          _
        // Predicated region
        $region17: #{forward.2} parent=11 // pred_check
          %p463 = pneg %p419
        $region18: #{forward.2} parent=11 // pred_check_branch
          %465 = sbr.rel (%p463) target = $region20
        $region19: #{forward.2} parent=11 // pred_region
          _
        $region20: #{forward.2} parent=11 // pred_fallthru
          _
      $region12: #{forward.2} parent=5 // pred_fallthru
        _
      %p466 = scmp.lt.s32.totalorder %s27, 4
      // Predicated region
      $region21: #{forward.2} parent=5 // pred_check
        %p467 = pneg %p466
      $region22: #{forward.2} parent=5 // pred_check_branch
        %469 = sbr.rel (%p467) target = $region24
      $region23: #{forward.2} parent=5 // pred_region
        // Predicated region
        $region25: #{forward.2} parent=23 // pred_check
          %p470 = pneg %p59
        $region26: #{forward.2} parent=23 // pred_check_branch
          %472 = sbr.rel (%p470) target = $region28
        $region27: #{forward.2} parent=23 // pred_region
          %p473 = scmp.lt.s32.totalorder %s34, 1
          %s474 = scalar_select %p473, %s34, 1
          %s475 = smul.addr %s474, 8
          %s476 = scalar_lea.vmem %s0, %s475
        $region28: #{forward.2} parent=23 // pred_fallthru
          _
        // Predicated region
        $region29: #{forward.2} parent=23 // pred_check
          %p477 = pneg %p85
        $region30: #{forward.2} parent=23 // pred_check_branch
          %479 = sbr.rel (%p477) target = $region32
        $region31: #{forward.2} parent=23 // pred_region
          %s480 = sand.u32 %s75, 1
          %s481 = scalar_lea.sflag [#allocation6], %s480
          %s482 = sand.u32 %s75, 1
          %s483 = smul.addr %s482, 192
          %s484 = scalar_lea.vmem [#allocation5], %s483
          %486 = vsyncadd %s481, 0
          %s487 = smul.addr %s35, 48
          %s488 = smul.addr %s487, 4
          %s489 = scalar_lea.hbm %s1, %s488
          %s490 = sshll.u32 %s489, 4
          %s491 = int_to_ptr.hbm [resolvable:$true] %s490
          %s492 = sshll.u32 %s484, 4
          %s493 = int_to_ptr.vmem [resolvable:$true] %s492
          %498 = dma.hbm_to_vmem [thread:$0]  %s491, 3072, %s493, %s481, 192, 192, 12
        $region32: #{forward.2} parent=23 // pred_fallthru
          _
        // Predicated region
        $region33: #{forward.2} parent=23 // pred_check
          %p499 = pneg %p111
        $region34: #{forward.2} parent=23 // pred_check_branch
          %501 = sbr.rel (%p499) target = $region36
        $region35: #{forward.2} parent=23 // pred_region
          %p502 = scmp.lt.s32.totalorder %s35, 1
          %s503 = scalar_select %p502, %s35, 1
          %s504 = smul.addr %s503, 3
          %s505 = scalar_lea.vmem %s2, %s504
        $region36: #{forward.2} parent=23 // pred_fallthru
          _
        // Predicated region
        $region37: #{forward.2} parent=23 // pred_check
          %p506 = pneg %p137
        $region38: #{forward.2} parent=23 // pred_check_branch
          %508 = sbr.rel (%p506) target = $region40
        $region39: #{forward.2} parent=23 // pred_region
          %p509 = scmp.lt.s32.totalorder %s35, 1
          %s510 = scalar_select %p509, %s35, 1
          %s511 = smul.addr %s510, 16
          %s512 = smul.addr %s511, 4
          %s513 = scalar_lea.vmem %s3, %s512
        $region40: #{forward.2} parent=23 // pred_fallthru
          _
        // Predicated region
        $region41: #{forward.2} parent=23 // pred_check
          %p514 = pneg %p163
        $region42: #{forward.2} parent=23 // pred_check_branch
          %516 = sbr.rel (%p514) target = $region44
        $region43: #{forward.2} parent=23 // pred_region
          %p517 = scmp.lt.s32.totalorder %s35, 1
          %s518 = scalar_select %p517, %s35, 1
          %s519 = scalar_lea.vmem %s4, %s518
        $region44: #{forward.2} parent=23 // pred_fallthru
          _
        // Predicated region
        $region45: #{forward.2} parent=23 // pred_check
          %p520 = pneg %p189
        $region46: #{forward.2} parent=23 // pred_check_branch
          %522 = sbr.rel (%p520) target = $region48
        $region47: #{forward.2} parent=23 // pred_region
          %p523 = scmp.lt.s32.totalorder %s35, 1
          %s524 = scalar_select %p523, %s35, 1
          %s525 = scalar_lea.vmem %s5, %s524
        $region48: #{forward.2} parent=23 // pred_fallthru
          _
        // Predicated region
        $region49: #{forward.2} parent=23 // pred_check
          %p526 = pneg %p215
        $region50: #{forward.2} parent=23 // pred_check_branch
          %528 = sbr.rel (%p526) target = $region52
        $region51: #{forward.2} parent=23 // pred_region
          %p529 = scmp.lt.s32.totalorder %s35, 1
          %s530 = scalar_select %p529, %s35, 1
          %s531 = scalar_lea.vmem %s6, %s530
        $region52: #{forward.2} parent=23 // pred_fallthru
          _
        // Predicated region
        $region53: #{forward.2} parent=23 // pred_check
          %p532 = pneg %p241
        $region54: #{forward.2} parent=23 // pred_check_branch
          %534 = sbr.rel (%p532) target = $region56
        $region55: #{forward.2} parent=23 // pred_region
          %s535 = sand.u32 %s27, 1
          %s536 = scalar_lea.sflag [#allocation8], %s535
          %s537 = sand.u32 %s231, 1
          %s538 = smul.addr %s537, 256
          %s539 = scalar_lea.vmem [#allocation7], %s538
          %541 = vsyncadd %s536, 0
          %s542 = smul.addr %s35, 64
          %s543 = smul.addr %s542, 4
          %s544 = scalar_lea.hbm %s7, %s543
          %s545 = sshll.u32 %s544, 4
          %s546 = int_to_ptr.hbm [resolvable:$true] %s545
          %s547 = sshll.u32 %s539, 4
          %s548 = int_to_ptr.vmem [resolvable:$true] %s547
          %553 = dma.hbm_to_vmem [thread:$0]  %s546, 4096, %s548, %s536, 256, 256, 16
        $region56: #{forward.2} parent=23 // pred_fallthru
          _
        // Predicated region
        $region57: #{forward.2} parent=23 // pred_check
          %p554 = pneg %p267
        $region58: #{forward.2} parent=23 // pred_check_branch
          %556 = sbr.rel (%p554) target = $region60
        $region59: #{forward.2} parent=23 // pred_region
          %p557 = scmp.lt.s32.totalorder %s35, 1
          %s558 = scalar_select %p557, %s35, 1
          %s559 = smul.addr %s558, 4
          %s560 = scalar_lea.vmem %s8, %s559
        $region60: #{forward.2} parent=23 // pred_fallthru
          _
        // Predicated region
        $region61: #{forward.2} parent=23 // pred_check
          %p561 = pneg %p293
        $region62: #{forward.2} parent=23 // pred_check_branch
          %563 = sbr.rel (%p561) target = $region64
        $region63: #{forward.2} parent=23 // pred_region
          %s564 = sand.u32 %s27, 1
          %s565 = scalar_lea.sflag [#allocation8], %s564
          %s566 = sand.u32 %s283, 1
          %s567 = smul.addr %s566, 256
          %s568 = scalar_lea.vmem [#allocation9], %s567
          %570 = vsyncadd %s565, 0
          %s571 = smul.addr %s35, 64
          %s572 = smul.addr %s571, 4
          %s573 = scalar_lea.hbm %s9, %s572
          %s574 = sshll.u32 %s573, 4
          %s575 = int_to_ptr.hbm [resolvable:$true] %s574
          %s576 = sshll.u32 %s568, 4
          %s577 = int_to_ptr.vmem [resolvable:$true] %s576
          %582 = dma.hbm_to_vmem [thread:$0]  %s575, 4096, %s577, %s565, 64, 64, 4
        $region64: #{forward.2} parent=23 // pred_fallthru
          _
        // Predicated region
        $region65: #{forward.2} parent=23 // pred_check
          %p583 = pneg %p319
        $region66: #{forward.2} parent=23 // pred_check_branch
          %585 = sbr.rel (%p583) target = $region68
        $region67: #{forward.2} parent=23 // pred_region
          %p586 = scmp.lt.s32.totalorder %s35, 1
          %s587 = scalar_select %p586, %s35, 1
          %s588 = scalar_lea.vmem %s10, %s587
        $region68: #{forward.2} parent=23 // pred_fallthru
          _
        // Predicated region
        $region69: #{forward.2} parent=23 // pred_check
          %p589 = pneg %p345
        $region70: #{forward.2} parent=23 // pred_check_branch
          %591 = sbr.rel (%p589) target = $region72
        $region71: #{forward.2} parent=23 // pred_region
          %p592 = scmp.lt.s32.totalorder %s35, 1
          %s593 = scalar_select %p592, %s35, 1
          %s594 = scalar_lea.vmem %s11, %s593
        $region72: #{forward.2} parent=23 // pred_fallthru
          _
        // Predicated region
        $region73: #{forward.2} parent=23 // pred_check
          %p595 = pneg %p371
        $region74: #{forward.2} parent=23 // pred_check_branch
          %597 = sbr.rel (%p595) target = $region76
        $region75: #{forward.2} parent=23 // pred_region
          %p598 = scmp.lt.s32.totalorder %s35, 1
          %s599 = scalar_select %p598, %s35, 1
          %s600 = scalar_lea.vmem %s12, %s599
        $region76: #{forward.2} parent=23 // pred_fallthru
          _
      $region24: #{forward.2} parent=5 // pred_fallthru
        _
      %p601 = scmp.le.s32.totalorder 1, %s27
      %p602 = scmp.lt.s32.totalorder %s27, 5
      %p603 = pnand %p601, %p602
      %p604 = pneg %p603
      // Predicated region
      $region77: #{forward.2} parent=5 // pred_check
        _
      $region78: #{forward.2} parent=5 // pred_check_branch
        %606 = sbr.rel (%p603) target = $region80
      $region79: #{forward.2} parent=5 // pred_region
        %s607 = ssub.s32 %s27, 1
        %s608 = sand.u32 %s78, 1
        %s609 = scalar_lea.sflag [#allocation6], %s608
        %s610 = sand.u32 %s78, 1
        %s611 = smul.addr %s610, 192
        %s612 = scalar_lea.vmem [#allocation5], %s611
        // Predicated region
        $region81: #{forward.2} parent=79 // pred_check
          %p613 = pneg %p91
        $region82: #{forward.2} parent=79 // pred_check_branch
          %615 = sbr.rel (%p613) target = $region84
        $region83: #{forward.2} parent=79 // pred_region
          %617 = dma.done %s609, 3072
        $region84: #{forward.2} parent=79 // pred_fallthru
          _
        %s618 = sand.u32 %s32, 1
        %s619 = scalar_lea.sflag [#allocation8], %s618
        %s620 = sand.u32 %s234, 1
        %s621 = smul.addr %s620, 256
        %s622 = scalar_lea.vmem [#allocation7], %s621
        // Predicated region
        $region85: #{forward.2} parent=79 // pred_check
          %p623 = pneg %p247
        $region86: #{forward.2} parent=79 // pred_check_branch
          %625 = sbr.rel (%p623) target = $region88
        $region87: #{forward.2} parent=79 // pred_region
          %627 = dma.done %s619, 4096
        $region88: #{forward.2} parent=79 // pred_fallthru
          _
        %s628 = sand.u32 %s32, 1
        %s629 = scalar_lea.sflag [#allocation8], %s628
        %s630 = sand.u32 %s286, 1
        %s631 = smul.addr %s630, 256
        %s632 = scalar_lea.vmem [#allocation9], %s631
        // Predicated region
        $region89: #{forward.2} parent=79 // pred_check
          %p633 = pneg %p299
        $region90: #{forward.2} parent=79 // pred_check_branch
          %635 = sbr.rel (%p633) target = $region92
        $region91: #{forward.2} parent=79 // pred_region
          %637 = dma.done %s629, 4096
        $region92: #{forward.2} parent=79 // pred_fallthru
          _
        %p638 = scmp.lt.s32.totalorder %s36, 1
        %s639 = scalar_select %p638, %s36, 1
        %s640 = smul.addr %s639, 8
        %s641 = scalar_lea.vmem %s0, %s640
        %p642 = pneg %p65
        %p643 = pneg %p62
        %s644 = sand.u32 %s78, 1
        %s645 = scalar_lea.sflag [#allocation6], %s644
        %s646 = sand.u32 %s78, 1
        %s647 = smul.addr %s646, 192
        %s648 = scalar_lea.vmem [#allocation5], %s647
        %p649 = pneg %p91
        %p650 = pneg %p88
        %p651 = scmp.lt.s32.totalorder %s37, 1
        %s652 = scalar_select %p651, %s37, 1
        %s653 = smul.addr %s652, 3
        %s654 = scalar_lea.vmem %s2, %s653
        %p655 = pneg %p117
        %p656 = pneg %p114
        %p657 = scmp.lt.s32.totalorder %s37, 1
        %s658 = scalar_select %p657, %s37, 1
        %s659 = smul.addr %s658, 16
        %s660 = smul.addr %s659, 4
        %s661 = scalar_lea.vmem %s3, %s660
        %p662 = pneg %p143
        %p663 = pneg %p140
        %p664 = scmp.lt.s32.totalorder %s37, 1
        %s665 = scalar_select %p664, %s37, 1
        %s666 = scalar_lea.vmem %s4, %s665
        %p667 = pneg %p169
        %p668 = pneg %p166
        %p669 = scmp.lt.s32.totalorder %s37, 1
        %s670 = scalar_select %p669, %s37, 1
        %s671 = scalar_lea.vmem %s5, %s670
        %p672 = pneg %p195
        %p673 = pneg %p192
        %p674 = scmp.lt.s32.totalorder %s37, 1
        %s675 = scalar_select %p674, %s37, 1
        %s676 = scalar_lea.vmem %s6, %s675
        %p677 = pneg %p221
        %p678 = pneg %p218
        %s679 = sand.u32 %s32, 1
        %s680 = scalar_lea.sflag [#allocation8], %s679
        %s681 = sand.u32 %s234, 1
        %s682 = smul.addr %s681, 256
        %s683 = scalar_lea.vmem [#allocation7], %s682
        %p684 = pneg %p247
        %p685 = pneg %p244
        %p686 = scmp.lt.s32.totalorder %s37, 1
        %s687 = scalar_select %p686, %s37, 1
        %s688 = smul.addr %s687, 4
        %s689 = scalar_lea.vmem %s8, %s688
        %p690 = pneg %p273
        %p691 = pneg %p270
        %s692 = sand.u32 %s32, 1
        %s693 = scalar_lea.sflag [#allocation8], %s692
        %s694 = sand.u32 %s286, 1
        %s695 = smul.addr %s694, 256
        %s696 = scalar_lea.vmem [#allocation9], %s695
        %p697 = pneg %p299
        %p698 = pneg %p296
        %p699 = scmp.lt.s32.totalorder %s37, 1
        %s700 = scalar_select %p699, %s37, 1
        %s701 = scalar_lea.vmem %s10, %s700
        %p702 = pneg %p325
        %p703 = pneg %p322
        %p704 = scmp.lt.s32.totalorder %s37, 1
        %s705 = scalar_select %p704, %s37, 1
        %s706 = scalar_lea.vmem %s11, %s705
        %p707 = pneg %p351
        %p708 = pneg %p348
        %p709 = scmp.lt.s32.totalorder %s37, 1
        %s710 = scalar_select %p709, %s37, 1
        %s711 = scalar_lea.vmem %s12, %s710
        %p712 = pneg %p377
        %p713 = pneg %p374
        %p714 = pneg %p398
        %p715 = pneg %p395
        %p716 = pneg %p419
        %p717 = pneg %p416
        %p718 = pneg %p445
        %p719 = pneg %p442
        %p720 = scmp.lt.s32.totalorder %s36, 1
        %s721 = scalar_select %p720, %s36, 1
        %s722 = smul.addr %s721, 8
        %s723 = scalar_lea.vmem %s15, %s722
        %p724 = scmp.lt.s32.totalorder %s36, 1
        %s725 = scalar_select %p724, %s36, 1
        %s726 = smul.addr %s725, 8
        %s727 = scalar_lea.vmem %s0, %s726
        %p728 = scmp.lt.s32.totalorder %s37, 1
        %s729 = scalar_select %p728, %s37, 1
        %s730 = smul.addr %s729, 3
        %s731 = scalar_lea.vmem %s2, %s730
        %p732 = scmp.lt.s32.totalorder %s37, 1
        %s733 = scalar_select %p732, %s37, 1
        %s734 = smul.addr %s733, 16
        %s735 = smul.addr %s734, 4
        %s736 = scalar_lea.vmem %s3, %s735
        %p737 = scmp.lt.s32.totalorder %s37, 1
        %s738 = scalar_select %p737, %s37, 1
        %s739 = scalar_lea.vmem %s4, %s738
        %p740 = scmp.lt.s32.totalorder %s37, 1
        %s741 = scalar_select %p740, %s37, 1
        %s742 = scalar_lea.vmem %s5, %s741
        %p743 = scmp.lt.s32.totalorder %s37, 1
        %s744 = scalar_select %p743, %s37, 1
        %s745 = scalar_lea.vmem %s6, %s744
        %p746 = scmp.lt.s32.totalorder %s37, 1
        %s747 = scalar_select %p746, %s37, 1
        %s748 = smul.addr %s747, 4
        %s749 = scalar_lea.vmem %s8, %s748
        %p750 = scmp.lt.s32.totalorder %s37, 1
        %s751 = scalar_select %p750, %s37, 1
        %s752 = scalar_lea.vmem %s10, %s751
        %p753 = scmp.lt.s32.totalorder %s37, 1
        %s754 = scalar_select %p753, %s37, 1
        %s755 = scalar_lea.vmem %s11, %s754
        %p756 = scmp.lt.s32.totalorder %s37, 1
        %s757 = scalar_select %p756, %s37, 1
        %s758 = scalar_lea.vmem %s12, %s757
        %p759 = scmp.lt.s32.totalorder %s36, 1
        %s760 = scalar_select %p759, %s36, 1
        %s761 = smul.addr %s760, 8
        %s762 = scalar_lea.vmem %s15, %s761
        %p764 = scmp.eq.s32.totalorder %s37, 0
        // Predicated region
        $region93: #{forward.2} parent=79 // pred_check
          %p765 = pneg %p764
        $region94: #{forward.2} parent=79 // pred_check_branch
          %767 = sbr.rel (%p765) target = $region96
        $region95: #{forward.2} parent=79 // pred_region
          %v768 = vld [vmem:[%s727] sm:$0xff]
          %769 = vst [vmem:[#allocation2] sm:$0xff] %v768
        $region96: #{forward.2} parent=79 // pred_fallthru
          _
        %v770 = vld [vmem:[#allocation2] sm:$0xff]
        %v771 = vpack.c.bf16 %v770, %v770
        %v772 = vld [vmem:[%s612] sm:$0xff]
        %v773 = vld [vmem:[%s612 + $0x8] sm:$0xf]
        %v774 = vld [vmem:[%s612 + $0xc] sm:$0xff]
        %v775 = vld [vmem:[%s612 + $0x14] sm:$0xf]
        %v776 = vld [vmem:[%s612 + $0x18] sm:$0xff]
        %v777 = vld [vmem:[%s612 + $0x20] sm:$0xf]
        %v778 = vld [vmem:[%s612 + $0x24] sm:$0xff]
        %v779 = vld [vmem:[%s612 + $0x2c] sm:$0xf]
        %v780 = vld [vmem:[%s612 + $0x30] sm:$0xff]
        %v781 = vld [vmem:[%s612 + $0x38] sm:$0xf]
        %v782 = vld [vmem:[%s612 + $0x3c] sm:$0xff]
        %v783 = vld [vmem:[%s612 + $0x44] sm:$0xf]
        %v784 = vld [vmem:[%s612 + $0x48] sm:$0xff]
        %v785 = vld [vmem:[%s612 + $0x50] sm:$0xf]
        %v786 = vld [vmem:[%s612 + $0x54] sm:$0xff]
        %v787 = vld [vmem:[%s612 + $0x5c] sm:$0xf]
        %v788 = vld [vmem:[%s612 + $0x60] sm:$0xff]
        %v789 = vld [vmem:[%s612 + $0x68] sm:$0xf]
        %v790 = vld [vmem:[%s612 + $0x6c] sm:$0xff]
        %v791 = vld [vmem:[%s612 + $0x74] sm:$0xf]
        %v792 = vld [vmem:[%s612 + $0x78] sm:$0xff]
        %v793 = vld [vmem:[%s612 + $0x80] sm:$0xf]
        %v794 = vld [vmem:[%s612 + $0x84] sm:$0xff]
        %v795 = vld [vmem:[%s612 + $0x8c] sm:$0xf]
        %v796 = vld [vmem:[%s612 + $0x90] sm:$0xff]
        %v797 = vld [vmem:[%s612 + $0x98] sm:$0xf]
        %v798 = vld [vmem:[%s612 + $0x9c] sm:$0xff]
        %v799 = vld [vmem:[%s612 + $0xa4] sm:$0xf]
        %v800 = vld [vmem:[%s612 + $0xa8] sm:$0xff]
        %v801 = vld [vmem:[%s612 + $0xb0] sm:$0xf]
        %v802 = vld [vmem:[%s612 + $0xb4] sm:$0xff]
        %v803 = vld [vmem:[%s612 + $0xbc] sm:$0xf]
        %v804 = vld [vmem:[%s731] sm:$0x7]
        %v806 = vperm.slane %v804, 0
        %v807 = vperm.slane %v804, 1
        %v808 = vperm.slane %v804, 2
        %v844 = vunpack.c.l.b16 %v772
        %v845 = vunpack.c.h.b16 %v772
        %v846 = vunpack.c.l.b16 %v773
        %v847 = vunpack.c.l.b16 %v774
        %v848 = vunpack.c.h.b16 %v774
        %v849 = vunpack.c.l.b16 %v775
        %v850 = vunpack.c.l.b16 %v776
        %v851 = vunpack.c.h.b16 %v776
        %v852 = vunpack.c.l.b16 %v777
        %v853 = vunpack.c.l.b16 %v778
        %v854 = vunpack.c.h.b16 %v778
        %v855 = vunpack.c.l.b16 %v779
        %v856 = vunpack.c.l.b16 %v780
        %v857 = vunpack.c.h.b16 %v780
        %v858 = vunpack.c.l.b16 %v781
        %v859 = vunpack.c.l.b16 %v782
        %v860 = vunpack.c.h.b16 %v782
        %v861 = vunpack.c.l.b16 %v783
        %v862 = vunpack.c.l.b16 %v784
        %v863 = vunpack.c.h.b16 %v784
        %v864 = vunpack.c.l.b16 %v785
        %v865 = vunpack.c.l.b16 %v786
        %v866 = vunpack.c.h.b16 %v786
        %v867 = vunpack.c.l.b16 %v787
        %v868 = vunpack.c.l.b16 %v788
        %v869 = vunpack.c.h.b16 %v788
        %v870 = vunpack.c.l.b16 %v789
        %v871 = vunpack.c.l.b16 %v790
        %v872 = vunpack.c.h.b16 %v790
        %v873 = vunpack.c.l.b16 %v791
        %v874 = vunpack.c.l.b16 %v792
        %v875 = vunpack.c.h.b16 %v792
        %v876 = vunpack.c.l.b16 %v793
        %v877 = vunpack.c.l.b16 %v794
        %v878 = vunpack.c.h.b16 %v794
        %v879 = vunpack.c.l.b16 %v795
        %v880 = vunpack.c.l.b16 %v796
        %v881 = vunpack.c.h.b16 %v796
        %v882 = vunpack.c.l.b16 %v797
        %v883 = vunpack.c.l.b16 %v798
        %v884 = vunpack.c.h.b16 %v798
        %v885 = vunpack.c.l.b16 %v799
        %v886 = vunpack.c.l.b16 %v800
        %v887 = vunpack.c.h.b16 %v800
        %v888 = vunpack.c.l.b16 %v801
        %v889 = vunpack.c.l.b16 %v802
        %v890 = vunpack.c.h.b16 %v802
        %v891 = vunpack.c.l.b16 %v803
        %v892 = vpack.c.b16 %v847, %v844
        %v893 = vpack.c.b16 %v848, %v845
        %v894 = vpack.c.b16 %v849, %v846
        %v895 = vpack.c.b16 %v853, %v850
        %v896 = vpack.c.b16 %v854, %v851
        %v897 = vpack.c.b16 %v855, %v852
        %v898 = vpack.c.b16 %v859, %v856
        %v899 = vpack.c.b16 %v860, %v857
        %v900 = vpack.c.b16 %v861, %v858
        %v901 = vpack.c.b16 %v865, %v862
        %v902 = vpack.c.b16 %v866, %v863
        %v903 = vpack.c.b16 %v867, %v864
        %v904 = vpack.c.b16 %v871, %v868
        %v905 = vpack.c.b16 %v872, %v869
        %v906 = vpack.c.b16 %v873, %v870
        %v907 = vpack.c.b16 %v877, %v874
        %v908 = vpack.c.b16 %v878, %v875
        %v909 = vpack.c.b16 %v879, %v876
        %v910 = vpack.c.b16 %v883, %v880
        %v911 = vpack.c.b16 %v884, %v881
        %v912 = vpack.c.b16 %v885, %v882
        %v913 = vpack.c.b16 %v889, %v886
        %v914 = vpack.c.b16 %v890, %v887
        %v915 = vpack.c.b16 %v891, %v888
        %940 = vmatpush.bf16.msra.mxu0 %v913
        %941 = vmatpush.bf16.msra.mxu0 %v910
        %942 = vmatpush.bf16.msra.mxu0 %v907
        %943 = vmatpush.bf16.msra.mxu0 %v904
        %944 = vmatpush.bf16.msra.mxu0 %v901
        %945 = vmatpush.bf16.msra.mxu0 %v898
        %946 = vmatpush.bf16.msra.mxu0 %v895
        %947 = vmatpush.bf16.msra.mxu0 %v892
        %948 = vmatmul.bf16.gmra.mxu0 %v771
        %v949 = vpop.f32.mrf.mxu0
        %v950 = vadd.f32 %v806, %v949
        %v951 = vpop.f32.mrf.mxu0
        %952 = vdwg.mxu0
        %953 = vmatpush.bf16.msra.mxu0 %v914
        %954 = vmatpush.bf16.msra.mxu0 %v911
        %955 = vmatpush.bf16.msra.mxu0 %v908
        %956 = vmatpush.bf16.msra.mxu0 %v905
        %957 = vmatpush.bf16.msra.mxu0 %v902
        %958 = vmatpush.bf16.msra.mxu0 %v899
        %959 = vmatpush.bf16.msra.mxu0 %v896
        %960 = vmatpush.bf16.msra.mxu0 %v893
        %961 = vmatmul.bf16.gmra.mxu0 %v771
        %v962 = vpop.f32.mrf.mxu0
        %v963 = vadd.f32 %v807, %v962
        %v964 = vpop.f32.mrf.mxu0
        %965 = vdwg.mxu0
        %966 = vmatpush.bf16.msra.mxu0 %v915
        %967 = vmatpush.bf16.msra.mxu0 %v912
        %968 = vmatpush.bf16.msra.mxu0 %v909
        %969 = vmatpush.bf16.msra.mxu0 %v906
        %970 = vmatpush.bf16.msra.mxu0 %v903
        %971 = vmatpush.bf16.msra.mxu0 %v900
        %972 = vmatpush.bf16.msra.mxu0 %v897
        %973 = vmatpush.bf16.msra.mxu0 %v894
        %974 = vmatmul.bf16.gmra.mxu0 %v771
        %v975 = vpop.f32.mrf.mxu0
        %v976 = vadd.f32 %v808, %v975
        %v977 = vpop.f32.mrf.mxu0
        %978 = vdwg.mxu0
        %v979 = vpack.c.bf16 %v963, %v950
        %v980 = vpack.c.bf16 %v976, %v976
        %981 = vst [vmem:[#allocation3] sm:$0xff] %v979
        %982 = vst [vmem:[#allocation3 + $0x8] sm:$0xf] %v980
        %v983 = vld [vmem:[#allocation3] sm:$0xf]
        %v984 = vld [vmem:[#allocation3 + $0x4] sm:$0xf]
        %v985 = vld [vmem:[#allocation3 + $0x8] sm:$0xf]
        %vm986 = vcmask 130048
        %v988 = vsel %vm986, %v983, 0
        %v991 = vsel %vm986, %v984, 0
        %993 = vmatpush.bf16.xpose.msra.mxu0 0
        %994 = vmatpush.bf16.xpose.msra.mxu0 0
        %995 = vmatpush.bf16.xpose.msra.mxu0 0
        %996 = vmatpush.bf16.xpose.msra.mxu0 0
        %997 = vmatpush.bf16.xpose.msra.mxu0 0
        %998 = vmatpush.bf16.xpose.msra.mxu0 0
        %999 = vmatpush.bf16.xpose.msra.mxu0 0
        %1000 = vmatpush.bf16.xpose.msra.mxu0 %v991
        %1001 = vmatmul.bf16.gmra.mxu0 %v988
        %v1002 = vpop.f32.mrf.mxu0
        %v1003 = vadd.f32 0.0, %v1002
        %v1004 = vpop.f32.mrf.mxu0
        %1005 = vdwg.mxu0
        %vm1006 = vcmask 64512
        %v1007 = vsel %vm1006, %v1003, -inf
        %1008 = vmax.xlane.f32.xlu0 %v1007
        %v1009 = vpop.xlane.xlu0 %1008
        %v1010 = vsub.f32 %v1003, %v1009
        %v1011 = vmul.f32 %v1010, 1.442695
        %v1012 = vpow.pop %v1011
        %v1013 = vsel %vm1006, %v1012, 0.0
        %1014 = vadd.xlane.f32.xlu0 %v1013
        %v1015 = vpop.xlane.xlu0 %1014
        %v1016 = vrcp.pop %v1015
        %v1017 = vpack.c.bf16 %v1012, %v1012
        %v1019 = vsel %vm1006, %v1017, 0
        %vm1021 = vcmask 1043456
        %v1023 = vsel %vm1021, %v985, 0
        %1025 = vmatpush.bf16.msra.mxu0 0
        %1026 = vmatpush.bf16.msra.mxu0 0
        %1027 = vmatpush.bf16.msra.mxu0 0
        %1028 = vmatpush.bf16.msra.mxu0 0
        %1029 = vmatpush.bf16.msra.mxu0 0
        %1030 = vmatpush.bf16.msra.mxu0 0
        %1031 = vmatpush.bf16.msra.mxu0 0
        %1032 = vmatpush.bf16.msra.mxu0 %v1023
        %1033 = vmatmul.bf16.gmra.mxu0 %v1019
        %v1034 = vpop.f32.mrf.mxu0
        %v1035 = vadd.f32 0.0, %v1034
        %v1036 = vpop.f32.mrf.mxu0
        %1037 = vdwg.mxu0
        %v1038 = vmul.f32 %v1035, %v1016
        %v1039 = vpack.c.bf16 %v1038, %v1038
        %vm1040 = vcmask 125952
        %1041 = vst.msk [vmem:[#allocation4] sm:$0xf] %vm1040, %v1039
        %v1042 = vld [vmem:[#allocation3] sm:$0xf]
        %v1043 = vld [vmem:[#allocation3 + $0x4] sm:$0xf]
        %v1044 = vld [vmem:[#allocation3 + $0x8] sm:$0xf]
        %v1046 = vunpack.c.l.b16 %v1042
        %v1047 = vpack.c.b16 %v1046, %v1046
        %1048 = vrot.lane.b32.xlu0 %v1047, 112
        %v1049 = vpop.permute.xlu0 %1048
        %v1051 = vunpack.c.l.b16 %v1043
        %v1052 = vpack.c.b16 %v1051, %v1051
        %1053 = vrot.lane.b32.xlu0 %v1052, 112
        %v1054 = vpop.permute.xlu0 %1053
        %v1056 = vsel %vm986, %v1049, 0
        %v1059 = vsel %vm986, %v1054, 0
        %1061 = vmatpush.bf16.xpose.msra.mxu0 0
        %1062 = vmatpush.bf16.xpose.msra.mxu0 0
        %1063 = vmatpush.bf16.xpose.msra.mxu0 0
        %1064 = vmatpush.bf16.xpose.msra.mxu0 0
        %1065 = vmatpush.bf16.xpose.msra.mxu0 0
        %1066 = vmatpush.bf16.xpose.msra.mxu0 0
        %1067 = vmatpush.bf16.xpose.msra.mxu0 0
        %1068 = vmatpush.bf16.xpose.msra.mxu0 %v1059
        %1069 = vmatmul.bf16.gmra.mxu0 %v1056
        %v1070 = vpop.f32.mrf.mxu0
        %v1071 = vadd.f32 0.0, %v1070
        %v1072 = vpop.f32.mrf.mxu0
        %1073 = vdwg.mxu0
        %v1074 = vsel %vm1006, %v1071, -inf
        %1075 = vmax.xlane.f32.xlu0 %v1074
        %v1076 = vpop.xlane.xlu0 %1075
        %v1077 = vsub.f32 %v1071, %v1076
        %v1078 = vmul.f32 %v1077, 1.442695
        %v1079 = vpow.pop %v1078
        %v1080 = vsel %vm1006, %v1079, 0.0
        %1081 = vadd.xlane.f32.xlu0 %v1080
        %v1082 = vpop.xlane.xlu0 %1081
        %v1083 = vrcp.pop %v1082
        %v1084 = vpack.c.bf16 %v1079, %v1079
        %v1086 = vunpack.c.l.b16 %v1044
        %v1087 = vpack.c.b16 %v1086, %v1086
        %1088 = vrot.lane.b32.xlu0 %v1087, 112
        %v1089 = vpop.permute.xlu0 %1088
        %v1091 = vsel %vm1006, %v1084, 0
        %v1094 = vsel %vm1021, %v1089, 0
        %1096 = vmatpush.bf16.msra.mxu0 0
        %1097 = vmatpush.bf16.msra.mxu0 0
        %1098 = vmatpush.bf16.msra.mxu0 0
        %1099 = vmatpush.bf16.msra.mxu0 0
        %1100 = vmatpush.bf16.msra.mxu0 0
        %1101 = vmatpush.bf16.msra.mxu0 0
        %1102 = vmatpush.bf16.msra.mxu0 0
        %1103 = vmatpush.bf16.msra.mxu0 %v1094
        %1104 = vmatmul.bf16.gmra.mxu0 %v1091
        %v1105 = vpop.f32.mrf.mxu0
        %v1106 = vadd.f32 0.0, %v1105
        %v1107 = vpop.f32.mrf.mxu0
        %1108 = vdwg.mxu0
        %v1109 = vmul.f32 %v1106, %v1083
        %v1110 = vpack.c.bf16 %v1109, %v1109
        %1112 = vrot.lane.b32.xlu0 %v1110, 16
        %v1113 = vpop.permute.xlu0 %1112
        %vm1115 = vcmask 257152
        %1116 = vst.msk [vmem:[#allocation4] sm:$0xf] %vm1115, %v1113
        %v1117 = vld [vmem:[#allocation3] sm:$0xf]
        %v1118 = vld [vmem:[#allocation3 + $0x4] sm:$0xf]
        %v1119 = vld [vmem:[#allocation3 + $0x8] sm:$0xf]
        %v1121 = vunpack.c.l.b16 %v1117
        %v1122 = vpack.c.b16 %v1121, %v1121
        %1123 = vrot.lane.b32.xlu0 %v1122, 96
        %v1124 = vpop.permute.xlu0 %1123
        %v1126 = vunpack.c.l.b16 %v1118
        %v1127 = vpack.c.b16 %v1126, %v1126
        %1128 = vrot.lane.b32.xlu0 %v1127, 96
        %v1129 = vpop.permute.xlu0 %1128
        %v1131 = vsel %vm986, %v1124, 0
        %v1134 = vsel %vm986, %v1129, 0
        %1136 = vmatpush.bf16.xpose.msra.mxu0 0
        %1137 = vmatpush.bf16.xpose.msra.mxu0 0
        %1138 = vmatpush.bf16.xpose.msra.mxu0 0
        %1139 = vmatpush.bf16.xpose.msra.mxu0 0
        %1140 = vmatpush.bf16.xpose.msra.mxu0 0
        %1141 = vmatpush.bf16.xpose.msra.mxu0 0
        %1142 = vmatpush.bf16.xpose.msra.mxu0 0
        %1143 = vmatpush.bf16.xpose.msra.mxu0 %v1134
        %1144 = vmatmul.bf16.gmra.mxu0 %v1131
        %v1145 = vpop.f32.mrf.mxu0
        %v1146 = vadd.f32 0.0, %v1145
        %v1147 = vpop.f32.mrf.mxu0
        %1148 = vdwg.mxu0
        %v1149 = vsel %vm1006, %v1146, -inf
        %1150 = vmax.xlane.f32.xlu0 %v1149
        %v1151 = vpop.xlane.xlu0 %1150
        %v1152 = vsub.f32 %v1146, %v1151
        %v1153 = vmul.f32 %v1152, 1.442695
        %v1154 = vpow.pop %v1153
        %v1155 = vsel %vm1006, %v1154, 0.0
        %1156 = vadd.xlane.f32.xlu0 %v1155
        %v1157 = vpop.xlane.xlu0 %1156
        %v1158 = vrcp.pop %v1157
        %v1159 = vpack.c.bf16 %v1154, %v1154
        %v1161 = vunpack.c.l.b16 %v1119
        %v1162 = vpack.c.b16 %v1161, %v1161
        %1163 = vrot.lane.b32.xlu0 %v1162, 96
        %v1164 = vpop.permute.xlu0 %1163
        %v1166 = vsel %vm1006, %v1159, 0
        %v1169 = vsel %vm1021, %v1164, 0
        %1171 = vmatpush.bf16.msra.mxu0 0
        %1172 = vmatpush.bf16.msra.mxu0 0
        %1173 = vmatpush.bf16.msra.mxu0 0
        %1174 = vmatpush.bf16.msra.mxu0 0
        %1175 = vmatpush.bf16.msra.mxu0 0
        %1176 = vmatpush.bf16.msra.mxu0 0
        %1177 = vmatpush.bf16.msra.mxu0 0
        %1178 = vmatpush.bf16.msra.mxu0 %v1169
        %1179 = vmatmul.bf16.gmra.mxu0 %v1166
        %v1180 = vpop.f32.mrf.mxu0
        %v1181 = vadd.f32 0.0, %v1180
        %v1182 = vpop.f32.mrf.mxu0
        %1183 = vdwg.mxu0
        %v1184 = vmul.f32 %v1181, %v1158
        %v1185 = vpack.c.bf16 %v1184, %v1184
        %1187 = vrot.lane.b32.xlu0 %v1185, 32
        %v1188 = vpop.permute.xlu0 %1187
        %vm1190 = vcmask 388352
        %1191 = vst.msk [vmem:[#allocation4] sm:$0xf] %vm1190, %v1188
        %v1192 = vld [vmem:[#allocation3] sm:$0xf]
        %v1193 = vld [vmem:[#allocation3 + $0x4] sm:$0xf]
        %v1194 = vld [vmem:[#allocation3 + $0x8] sm:$0xf]
        %v1196 = vunpack.c.l.b16 %v1192
        %v1197 = vpack.c.b16 %v1196, %v1196
        %1198 = vrot.lane.b32.xlu0 %v1197, 80
        %v1199 = vpop.permute.xlu0 %1198
        %v1201 = vunpack.c.l.b16 %v1193
        %v1202 = vpack.c.b16 %v1201, %v1201
        %1203 = vrot.lane.b32.xlu0 %v1202, 80
        %v1204 = vpop.permute.xlu0 %1203
        %v1206 = vsel %vm986, %v1199, 0
        %v1209 = vsel %vm986, %v1204, 0
        %1211 = vmatpush.bf16.xpose.msra.mxu0 0
        %1212 = vmatpush.bf16.xpose.msra.mxu0 0
        %1213 = vmatpush.bf16.xpose.msra.mxu0 0
        %1214 = vmatpush.bf16.xpose.msra.mxu0 0
        %1215 = vmatpush.bf16.xpose.msra.mxu0 0
        %1216 = vmatpush.bf16.xpose.msra.mxu0 0
        %1217 = vmatpush.bf16.xpose.msra.mxu0 0
        %1218 = vmatpush.bf16.xpose.msra.mxu0 %v1209
        %1219 = vmatmul.bf16.gmra.mxu0 %v1206
        %v1220 = vpop.f32.mrf.mxu0
        %v1221 = vadd.f32 0.0, %v1220
        %v1222 = vpop.f32.mrf.mxu0
        %1223 = vdwg.mxu0
        %v1224 = vsel %vm1006, %v1221, -inf
        %1225 = vmax.xlane.f32.xlu0 %v1224
        %v1226 = vpop.xlane.xlu0 %1225
        %v1227 = vsub.f32 %v1221, %v1226
        %v1228 = vmul.f32 %v1227, 1.442695
        %v1229 = vpow.pop %v1228
        %v1230 = vsel %vm1006, %v1229, 0.0
        %1231 = vadd.xlane.f32.xlu0 %v1230
        %v1232 = vpop.xlane.xlu0 %1231
        %v1233 = vrcp.pop %v1232
        %v1234 = vpack.c.bf16 %v1229, %v1229
        %v1236 = vunpack.c.l.b16 %v1194
        %v1237 = vpack.c.b16 %v1236, %v1236
        %1238 = vrot.lane.b32.xlu0 %v1237, 80
        %v1239 = vpop.permute.xlu0 %1238
        %v1241 = vsel %vm1006, %v1234, 0
        %v1244 = vsel %vm1021, %v1239, 0
        %1246 = vmatpush.bf16.msra.mxu0 0
        %1247 = vmatpush.bf16.msra.mxu0 0
        %1248 = vmatpush.bf16.msra.mxu0 0
        %1249 = vmatpush.bf16.msra.mxu0 0
        %1250 = vmatpush.bf16.msra.mxu0 0
        %1251 = vmatpush.bf16.msra.mxu0 0
        %1252 = vmatpush.bf16.msra.mxu0 0
        %1253 = vmatpush.bf16.msra.mxu0 %v1244
        %1254 = vmatmul.bf16.gmra.mxu0 %v1241
        %v1255 = vpop.f32.mrf.mxu0
        %v1256 = vadd.f32 0.0, %v1255
        %v1257 = vpop.f32.mrf.mxu0
        %1258 = vdwg.mxu0
        %v1259 = vmul.f32 %v1256, %v1233
        %v1260 = vpack.c.bf16 %v1259, %v1259
        %1262 = vrot.lane.b32.xlu0 %v1260, 48
        %v1263 = vpop.permute.xlu0 %1262
        %vm1265 = vcmask 519552
        %1266 = vst.msk [vmem:[#allocation4] sm:$0xf] %vm1265, %v1263
        %v1267 = vld [vmem:[#allocation3] sm:$0xf]
        %v1268 = vld [vmem:[#allocation3 + $0x4] sm:$0xf]
        %v1269 = vld [vmem:[#allocation3 + $0x8] sm:$0xf]
        %v1271 = vunpack.c.l.b16 %v1267
        %v1272 = vpack.c.b16 %v1271, %v1271
        %1273 = vrot.lane.b32.xlu0 %v1272, 64
        %v1274 = vpop.permute.xlu0 %1273
        %v1276 = vunpack.c.l.b16 %v1268
        %v1277 = vpack.c.b16 %v1276, %v1276
        %1278 = vrot.lane.b32.xlu0 %v1277, 64
        %v1279 = vpop.permute.xlu0 %1278
        %v1281 = vsel %vm986, %v1274, 0
        %v1284 = vsel %vm986, %v1279, 0
        %1286 = vmatpush.bf16.xpose.msra.mxu0 0
        %1287 = vmatpush.bf16.xpose.msra.mxu0 0
        %1288 = vmatpush.bf16.xpose.msra.mxu0 0
        %1289 = vmatpush.bf16.xpose.msra.mxu0 0
        %1290 = vmatpush.bf16.xpose.msra.mxu0 0
        %1291 = vmatpush.bf16.xpose.msra.mxu0 0
        %1292 = vmatpush.bf16.xpose.msra.mxu0 0
        %1293 = vmatpush.bf16.xpose.msra.mxu0 %v1284
        %1294 = vmatmul.bf16.gmra.mxu0 %v1281
        %v1295 = vpop.f32.mrf.mxu0
        %v1296 = vadd.f32 0.0, %v1295
        %v1297 = vpop.f32.mrf.mxu0
        %1298 = vdwg.mxu0
        %v1299 = vsel %vm1006, %v1296, -inf
        %1300 = vmax.xlane.f32.xlu0 %v1299
        %v1301 = vpop.xlane.xlu0 %1300
        %v1302 = vsub.f32 %v1296, %v1301
        %v1303 = vmul.f32 %v1302, 1.442695
        %v1304 = vpow.pop %v1303
        %v1305 = vsel %vm1006, %v1304, 0.0
        %1306 = vadd.xlane.f32.xlu0 %v1305
        %v1307 = vpop.xlane.xlu0 %1306
        %v1308 = vrcp.pop %v1307
        %v1309 = vpack.c.bf16 %v1304, %v1304
        %v1311 = vunpack.c.l.b16 %v1269
        %v1312 = vpack.c.b16 %v1311, %v1311
        %1313 = vrot.lane.b32.xlu0 %v1312, 64
        %v1314 = vpop.permute.xlu0 %1313
        %v1316 = vsel %vm1006, %v1309, 0
        %v1319 = vsel %vm1021, %v1314, 0
        %1321 = vmatpush.bf16.msra.mxu0 0
        %1322 = vmatpush.bf16.msra.mxu0 0
        %1323 = vmatpush.bf16.msra.mxu0 0
        %1324 = vmatpush.bf16.msra.mxu0 0
        %1325 = vmatpush.bf16.msra.mxu0 0
        %1326 = vmatpush.bf16.msra.mxu0 0
        %1327 = vmatpush.bf16.msra.mxu0 0
        %1328 = vmatpush.bf16.msra.mxu0 %v1319
        %1329 = vmatmul.bf16.gmra.mxu0 %v1316
        %v1330 = vpop.f32.mrf.mxu0
        %v1331 = vadd.f32 0.0, %v1330
        %v1332 = vpop.f32.mrf.mxu0
        %1333 = vdwg.mxu0
        %v1334 = vmul.f32 %v1331, %v1308
        %v1335 = vpack.c.bf16 %v1334, %v1334
        %1337 = vrot.lane.b32.xlu0 %v1335, 64
        %v1338 = vpop.permute.xlu0 %1337
        %vm1340 = vcmask 650752
        %1341 = vst.msk [vmem:[#allocation4] sm:$0xf] %vm1340, %v1338
        %v1342 = vld [vmem:[#allocation3] sm:$0xf]
        %v1343 = vld [vmem:[#allocation3 + $0x4] sm:$0xf]
        %v1344 = vld [vmem:[#allocation3 + $0x8] sm:$0xf]
        %v1346 = vunpack.c.l.b16 %v1342
        %v1347 = vpack.c.b16 %v1346, %v1346
        %1348 = vrot.lane.b32.xlu0 %v1347, 48
        %v1349 = vpop.permute.xlu0 %1348
        %v1351 = vunpack.c.l.b16 %v1343
        %v1352 = vpack.c.b16 %v1351, %v1351
        %1353 = vrot.lane.b32.xlu0 %v1352, 48
        %v1354 = vpop.permute.xlu0 %1353
        %v1356 = vsel %vm986, %v1349, 0
        %v1359 = vsel %vm986, %v1354, 0
        %1361 = vmatpush.bf16.xpose.msra.mxu0 0
        %1362 = vmatpush.bf16.xpose.msra.mxu0 0
        %1363 = vmatpush.bf16.xpose.msra.mxu0 0
        %1364 = vmatpush.bf16.xpose.msra.mxu0 0
        %1365 = vmatpush.bf16.xpose.msra.mxu0 0
        %1366 = vmatpush.bf16.xpose.msra.mxu0 0
        %1367 = vmatpush.bf16.xpose.msra.mxu0 0
        %1368 = vmatpush.bf16.xpose.msra.mxu0 %v1359
        %1369 = vmatmul.bf16.gmra.mxu0 %v1356
        %v1370 = vpop.f32.mrf.mxu0
        %v1371 = vadd.f32 0.0, %v1370
        %v1372 = vpop.f32.mrf.mxu0
        %1373 = vdwg.mxu0
        %v1374 = vsel %vm1006, %v1371, -inf
        %1375 = vmax.xlane.f32.xlu0 %v1374
        %v1376 = vpop.xlane.xlu0 %1375
        %v1377 = vsub.f32 %v1371, %v1376
        %v1378 = vmul.f32 %v1377, 1.442695
        %v1379 = vpow.pop %v1378
        %v1380 = vsel %vm1006, %v1379, 0.0
        %1381 = vadd.xlane.f32.xlu0 %v1380
        %v1382 = vpop.xlane.xlu0 %1381
        %v1383 = vrcp.pop %v1382
        %v1384 = vpack.c.bf16 %v1379, %v1379
        %v1386 = vunpack.c.l.b16 %v1344
        %v1387 = vpack.c.b16 %v1386, %v1386
        %1388 = vrot.lane.b32.xlu0 %v1387, 48
        %v1389 = vpop.permute.xlu0 %1388
        %v1391 = vsel %vm1006, %v1384, 0
        %v1394 = vsel %vm1021, %v1389, 0
        %1396 = vmatpush.bf16.msra.mxu0 0
        %1397 = vmatpush.bf16.msra.mxu0 0
        %1398 = vmatpush.bf16.msra.mxu0 0
        %1399 = vmatpush.bf16.msra.mxu0 0
        %1400 = vmatpush.bf16.msra.mxu0 0
        %1401 = vmatpush.bf16.msra.mxu0 0
        %1402 = vmatpush.bf16.msra.mxu0 0
        %1403 = vmatpush.bf16.msra.mxu0 %v1394
        %1404 = vmatmul.bf16.gmra.mxu0 %v1391
        %v1405 = vpop.f32.mrf.mxu0
        %v1406 = vadd.f32 0.0, %v1405
        %v1407 = vpop.f32.mrf.mxu0
        %1408 = vdwg.mxu0
        %v1409 = vmul.f32 %v1406, %v1383
        %v1410 = vpack.c.bf16 %v1409, %v1409
        %1412 = vrot.lane.b32.xlu0 %v1410, 80
        %v1413 = vpop.permute.xlu0 %1412
        %vm1415 = vcmask 781952
        %1416 = vst.msk [vmem:[#allocation4] sm:$0xf] %vm1415, %v1413
        %v1417 = vld [vmem:[#allocation3] sm:$0xf]
        %v1418 = vld [vmem:[#allocation3 + $0x4] sm:$0xf]
        %v1419 = vld [vmem:[#allocation3 + $0x8] sm:$0xf]
        %v1421 = vunpack.c.l.b16 %v1417
        %v1422 = vpack.c.b16 %v1421, %v1421
        %1423 = vrot.lane.b32.xlu0 %v1422, 32
        %v1424 = vpop.permute.xlu0 %1423
        %v1426 = vunpack.c.l.b16 %v1418
        %v1427 = vpack.c.b16 %v1426, %v1426
        %1428 = vrot.lane.b32.xlu0 %v1427, 32
        %v1429 = vpop.permute.xlu0 %1428
        %v1431 = vsel %vm986, %v1424, 0
        %v1434 = vsel %vm986, %v1429, 0
        %1436 = vmatpush.bf16.xpose.msra.mxu0 0
        %1437 = vmatpush.bf16.xpose.msra.mxu0 0
        %1438 = vmatpush.bf16.xpose.msra.mxu0 0
        %1439 = vmatpush.bf16.xpose.msra.mxu0 0
        %1440 = vmatpush.bf16.xpose.msra.mxu0 0
        %1441 = vmatpush.bf16.xpose.msra.mxu0 0
        %1442 = vmatpush.bf16.xpose.msra.mxu0 0
        %1443 = vmatpush.bf16.xpose.msra.mxu0 %v1434
        %1444 = vmatmul.bf16.gmra.mxu0 %v1431
        %v1445 = vpop.f32.mrf.mxu0
        %v1446 = vadd.f32 0.0, %v1445
        %v1447 = vpop.f32.mrf.mxu0
        %1448 = vdwg.mxu0
        %v1449 = vsel %vm1006, %v1446, -inf
        %1450 = vmax.xlane.f32.xlu0 %v1449
        %v1451 = vpop.xlane.xlu0 %1450
        %v1452 = vsub.f32 %v1446, %v1451
        %v1453 = vmul.f32 %v1452, 1.442695
        %v1454 = vpow.pop %v1453
        %v1455 = vsel %vm1006, %v1454, 0.0
        %1456 = vadd.xlane.f32.xlu0 %v1455
        %v1457 = vpop.xlane.xlu0 %1456
        %v1458 = vrcp.pop %v1457
        %v1459 = vpack.c.bf16 %v1454, %v1454
        %v1461 = vunpack.c.l.b16 %v1419
        %v1462 = vpack.c.b16 %v1461, %v1461
        %1463 = vrot.lane.b32.xlu0 %v1462, 32
        %v1464 = vpop.permute.xlu0 %1463
        %v1466 = vsel %vm1006, %v1459, 0
        %v1469 = vsel %vm1021, %v1464, 0
        %1471 = vmatpush.bf16.msra.mxu0 0
        %1472 = vmatpush.bf16.msra.mxu0 0
        %1473 = vmatpush.bf16.msra.mxu0 0
        %1474 = vmatpush.bf16.msra.mxu0 0
        %1475 = vmatpush.bf16.msra.mxu0 0
        %1476 = vmatpush.bf16.msra.mxu0 0
        %1477 = vmatpush.bf16.msra.mxu0 0
        %1478 = vmatpush.bf16.msra.mxu0 %v1469
        %1479 = vmatmul.bf16.gmra.mxu0 %v1466
        %v1480 = vpop.f32.mrf.mxu0
        %v1481 = vadd.f32 0.0, %v1480
        %v1482 = vpop.f32.mrf.mxu0
        %1483 = vdwg.mxu0
        %v1484 = vmul.f32 %v1481, %v1458
        %v1485 = vpack.c.bf16 %v1484, %v1484
        %1487 = vrot.lane.b32.xlu0 %v1485, 96
        %v1488 = vpop.permute.xlu0 %1487
        %vm1490 = vcmask 913152
        %1491 = vst.msk [vmem:[#allocation4] sm:$0xf] %vm1490, %v1488
        %v1492 = vld [vmem:[#allocation3] sm:$0xf]
        %v1493 = vld [vmem:[#allocation3 + $0x4] sm:$0xf]
        %v1494 = vld [vmem:[#allocation3 + $0x8] sm:$0xf]
        %v1496 = vunpack.c.l.b16 %v1492
        %v1497 = vpack.c.b16 %v1496, %v1496
        %1498 = vrot.lane.b32.xlu0 %v1497, 16
        %v1499 = vpop.permute.xlu0 %1498
        %v1501 = vunpack.c.l.b16 %v1493
        %v1502 = vpack.c.b16 %v1501, %v1501
        %1503 = vrot.lane.b32.xlu0 %v1502, 16
        %v1504 = vpop.permute.xlu0 %1503
        %v1506 = vsel %vm986, %v1499, 0
        %v1509 = vsel %vm986, %v1504, 0
        %1511 = vmatpush.bf16.xpose.msra.mxu0 0
        %1512 = vmatpush.bf16.xpose.msra.mxu0 0
        %1513 = vmatpush.bf16.xpose.msra.mxu0 0
        %1514 = vmatpush.bf16.xpose.msra.mxu0 0
        %1515 = vmatpush.bf16.xpose.msra.mxu0 0
        %1516 = vmatpush.bf16.xpose.msra.mxu0 0
        %1517 = vmatpush.bf16.xpose.msra.mxu0 0
        %1518 = vmatpush.bf16.xpose.msra.mxu0 %v1509
        %1519 = vmatmul.bf16.gmra.mxu0 %v1506
        %v1520 = vpop.f32.mrf.mxu0
        %v1521 = vadd.f32 0.0, %v1520
        %v1522 = vpop.f32.mrf.mxu0
        %1523 = vdwg.mxu0
        %v1524 = vsel %vm1006, %v1521, -inf
        %1525 = vmax.xlane.f32.xlu0 %v1524
        %v1526 = vpop.xlane.xlu0 %1525
        %v1527 = vsub.f32 %v1521, %v1526
        %v1528 = vmul.f32 %v1527, 1.442695
        %v1529 = vpow.pop %v1528
        %v1530 = vsel %vm1006, %v1529, 0.0
        %1531 = vadd.xlane.f32.xlu0 %v1530
        %v1532 = vpop.xlane.xlu0 %1531
        %v1533 = vrcp.pop %v1532
        %v1534 = vpack.c.bf16 %v1529, %v1529
        %v1536 = vunpack.c.l.b16 %v1494
        %v1537 = vpack.c.b16 %v1536, %v1536
        %1538 = vrot.lane.b32.xlu0 %v1537, 16
        %v1539 = vpop.permute.xlu0 %1538
        %v1541 = vsel %vm1006, %v1534, 0
        %v1544 = vsel %vm1021, %v1539, 0
        %1546 = vmatpush.bf16.msra.mxu0 0
        %1547 = vmatpush.bf16.msra.mxu0 0
        %1548 = vmatpush.bf16.msra.mxu0 0
        %1549 = vmatpush.bf16.msra.mxu0 0
        %1550 = vmatpush.bf16.msra.mxu0 0
        %1551 = vmatpush.bf16.msra.mxu0 0
        %1552 = vmatpush.bf16.msra.mxu0 0
        %1553 = vmatpush.bf16.msra.mxu0 %v1544
        %1554 = vmatmul.bf16.gmra.mxu0 %v1541
        %v1555 = vpop.f32.mrf.mxu0
        %v1556 = vadd.f32 0.0, %v1555
        %v1557 = vpop.f32.mrf.mxu0
        %1558 = vdwg.mxu0
        %v1559 = vmul.f32 %v1556, %v1533
        %v1560 = vpack.c.bf16 %v1559, %v1559
        %1562 = vrot.lane.b32.xlu0 %v1560, 112
        %v1563 = vpop.permute.xlu0 %1562
        %vm1565 = vcmask 1044352
        %1566 = vst.msk [vmem:[#allocation4] sm:$0xf] %vm1565, %v1563
        %v1567 = vld [vmem:[#allocation4] sm:$0xf]
        %v1568 = vld [vmem:[%s736] sm:$0xf]
        %v1569 = vld [vmem:[%s736 + $0x4] sm:$0xf]
        %v1570 = vld [vmem:[%s736 + $0x8] sm:$0xf]
        %v1571 = vld [vmem:[%s736 + $0xc] sm:$0xf]
        %v1572 = vld [vmem:[%s736 + $0x10] sm:$0xf]
        %v1573 = vld [vmem:[%s736 + $0x14] sm:$0xf]
        %v1574 = vld [vmem:[%s736 + $0x18] sm:$0xf]
        %v1575 = vld [vmem:[%s736 + $0x1c] sm:$0xf]
        %v1576 = vld [vmem:[%s736 + $0x20] sm:$0xf]
        %v1577 = vld [vmem:[%s736 + $0x24] sm:$0xf]
        %v1578 = vld [vmem:[%s736 + $0x28] sm:$0xf]
        %v1579 = vld [vmem:[%s736 + $0x2c] sm:$0xf]
        %v1580 = vld [vmem:[%s736 + $0x30] sm:$0xf]
        %v1581 = vld [vmem:[%s736 + $0x34] sm:$0xf]
        %v1582 = vld [vmem:[%s736 + $0x38] sm:$0xf]
        %v1583 = vld [vmem:[%s736 + $0x3c] sm:$0xf]
        %v1584 = vld [vmem:[%s739] sm:$0x1]
        %v1586 = vperm.slane %v1584, 0
        %v1604 = vunpack.c.l.b16 %v1568
        %v1605 = vunpack.c.l.b16 %v1569
        %v1606 = vunpack.c.l.b16 %v1570
        %v1607 = vunpack.c.l.b16 %v1571
        %v1608 = vunpack.c.l.b16 %v1572
        %v1609 = vunpack.c.l.b16 %v1573
        %v1610 = vunpack.c.l.b16 %v1574
        %v1611 = vunpack.c.l.b16 %v1575
        %v1612 = vunpack.c.l.b16 %v1576
        %v1613 = vunpack.c.l.b16 %v1577
        %v1614 = vunpack.c.l.b16 %v1578
        %v1615 = vunpack.c.l.b16 %v1579
        %v1616 = vunpack.c.l.b16 %v1580
        %v1617 = vunpack.c.l.b16 %v1581
        %v1618 = vunpack.c.l.b16 %v1582
        %v1619 = vunpack.c.l.b16 %v1583
        %v1620 = vpack.c.b16 %v1605, %v1604
        %v1621 = vpack.c.b16 %v1607, %v1606
        %v1622 = vpack.c.b16 %v1609, %v1608
        %v1623 = vpack.c.b16 %v1611, %v1610
        %v1624 = vpack.c.b16 %v1613, %v1612
        %v1625 = vpack.c.b16 %v1615, %v1614
        %v1626 = vpack.c.b16 %v1617, %v1616
        %v1627 = vpack.c.b16 %v1619, %v1618
        %1636 = vmatpush.bf16.msra.mxu0 %v1627
        %1637 = vmatpush.bf16.msra.mxu0 %v1626
        %1638 = vmatpush.bf16.msra.mxu0 %v1625
        %1639 = vmatpush.bf16.msra.mxu0 %v1624
        %1640 = vmatpush.bf16.msra.mxu0 %v1623
        %1641 = vmatpush.bf16.msra.mxu0 %v1622
        %1642 = vmatpush.bf16.msra.mxu0 %v1621
        %1643 = vmatpush.bf16.msra.mxu0 %v1620
        %1644 = vmatmul.bf16.gmra.mxu0 %v1567
        %v1645 = vpop.f32.mrf.mxu0
        %v1646 = vadd.f32 %v1586, %v1645
        %v1647 = vpop.f32.mrf.mxu0
        %1648 = vdwg.mxu0
        %v1649 = vadd.f32 %v770, %v1646
        %v1650 = vld [vmem:[%s742] sm:$0x1]
        %v1651 = vld [vmem:[%s745] sm:$0x1]
        %1652 = vadd.xlane.f32.xlu0 %v1649
        %v1653 = vpop.xlane.xlu0 %1652
        %v1654 = vrcp.pop 128.0
        %v1655 = vmul.f32 128.0, %v1654
        %v1656 = vsub.f32 1.0, %v1655
        %v1657 = vmul.f32 %v1654, %v1656
        %v1658 = vadd.f32 %v1654, %v1657
        %vm1659 = vweird.f32 %v1654
        %v1660 = vsel %vm1659, %v1654, %v1658
        %v1661 = vmul.f32 %v1653, %v1660
        %v1662 = vsub.f32 %v1649, %v1661
        %v1663 = vmul.f32 %v1662, %v1662
        %1664 = vadd.xlane.f32.xlu0 %v1663
        %v1665 = vpop.xlane.xlu0 %1664
        %v1666 = vmul.f32 %v1665, %v1660
        %v1667 = vadd.f32 %v1666, 1e-05
        %v1668 = vrsqrt.pop %v1667
        %v1669 = vmul.f32 %v1668, %v1667
        %v1670 = vmul.f32 %v1669, %v1668
        %v1671 = vmul.f32 0.5, %v1670
        %v1672 = vsub.f32 1.5, %v1671
        %v1673 = vmul.f32 %v1668, %v1672
        %vm1674 = vweird.f32 %v1667
        %vm1675 = vweird.f32 %v1668
        %vm1676 = vmor %vm1674, %vm1675
        %v1677 = vsel %vm1676, %v1668, %v1673
        %v1678 = vmul.f32 %v1662, %v1677
        %v1680 = vperm.slane %v1650, 0
        %v1682 = vmul.f32 %v1678, %v1680
        %v1684 = vperm.slane %v1651, 0
        %v1686 = vadd.f32 %v1682, %v1684
        %v1687 = vpack.c.bf16 %v1686, %v1686
        %v1688 = vld [vmem:[%s622] sm:$0xff]
        %v1689 = vld [vmem:[%s622 + $0x8] sm:$0xff]
        %v1690 = vld [vmem:[%s622 + $0x10] sm:$0xff]
        %v1691 = vld [vmem:[%s622 + $0x18] sm:$0xff]
        %v1692 = vld [vmem:[%s622 + $0x20] sm:$0xff]
        %v1693 = vld [vmem:[%s622 + $0x28] sm:$0xff]
        %v1694 = vld [vmem:[%s622 + $0x30] sm:$0xff]
        %v1695 = vld [vmem:[%s622 + $0x38] sm:$0xff]
        %v1696 = vld [vmem:[%s622 + $0x40] sm:$0xff]
        %v1697 = vld [vmem:[%s622 + $0x48] sm:$0xff]
        %v1698 = vld [vmem:[%s622 + $0x50] sm:$0xff]
        %v1699 = vld [vmem:[%s622 + $0x58] sm:$0xff]
        %v1700 = vld [vmem:[%s622 + $0x60] sm:$0xff]
        %v1701 = vld [vmem:[%s622 + $0x68] sm:$0xff]
        %v1702 = vld [vmem:[%s622 + $0x70] sm:$0xff]
        %v1703 = vld [vmem:[%s622 + $0x78] sm:$0xff]
        %v1704 = vld [vmem:[%s622 + $0x80] sm:$0xff]
        %v1705 = vld [vmem:[%s622 + $0x88] sm:$0xff]
        %v1706 = vld [vmem:[%s622 + $0x90] sm:$0xff]
        %v1707 = vld [vmem:[%s622 + $0x98] sm:$0xff]
        %v1708 = vld [vmem:[%s622 + $0xa0] sm:$0xff]
        %v1709 = vld [vmem:[%s622 + $0xa8] sm:$0xff]
        %v1710 = vld [vmem:[%s622 + $0xb0] sm:$0xff]
        %v1711 = vld [vmem:[%s622 + $0xb8] sm:$0xff]
        %v1712 = vld [vmem:[%s622 + $0xc0] sm:$0xff]
        %v1713 = vld [vmem:[%s622 + $0xc8] sm:$0xff]
        %v1714 = vld [vmem:[%s622 + $0xd0] sm:$0xff]
        %v1715 = vld [vmem:[%s622 + $0xd8] sm:$0xff]
        %v1716 = vld [vmem:[%s622 + $0xe0] sm:$0xff]
        %v1717 = vld [vmem:[%s622 + $0xe8] sm:$0xff]
        %v1718 = vld [vmem:[%s622 + $0xf0] sm:$0xff]
        %v1719 = vld [vmem:[%s622 + $0xf8] sm:$0xff]
        %v1720 = vld [vmem:[%s749] sm:$0xf]
        %v1722 = vperm.slane %v1720, 0
        %v1723 = vperm.slane %v1720, 1
        %v1724 = vperm.slane %v1720, 2
        %v1725 = vperm.slane %v1720, 3
        %v1762 = vunpack.c.l.b16 %v1688
        %v1763 = vunpack.c.h.b16 %v1688
        %v1764 = vunpack.c.l.b16 %v1689
        %v1765 = vunpack.c.h.b16 %v1689
        %v1766 = vunpack.c.l.b16 %v1690
        %v1767 = vunpack.c.h.b16 %v1690
        %v1768 = vunpack.c.l.b16 %v1691
        %v1769 = vunpack.c.h.b16 %v1691
        %v1770 = vunpack.c.l.b16 %v1692
        %v1771 = vunpack.c.h.b16 %v1692
        %v1772 = vunpack.c.l.b16 %v1693
        %v1773 = vunpack.c.h.b16 %v1693
        %v1774 = vunpack.c.l.b16 %v1694
        %v1775 = vunpack.c.h.b16 %v1694
        %v1776 = vunpack.c.l.b16 %v1695
        %v1777 = vunpack.c.h.b16 %v1695
        %v1778 = vunpack.c.l.b16 %v1696
        %v1779 = vunpack.c.h.b16 %v1696
        %v1780 = vunpack.c.l.b16 %v1697
        %v1781 = vunpack.c.h.b16 %v1697
        %v1782 = vunpack.c.l.b16 %v1698
        %v1783 = vunpack.c.h.b16 %v1698
        %v1784 = vunpack.c.l.b16 %v1699
        %v1785 = vunpack.c.h.b16 %v1699
        %v1786 = vunpack.c.l.b16 %v1700
        %v1787 = vunpack.c.h.b16 %v1700
        %v1788 = vunpack.c.l.b16 %v1701
        %v1789 = vunpack.c.h.b16 %v1701
        %v1790 = vunpack.c.l.b16 %v1702
        %v1791 = vunpack.c.h.b16 %v1702
        %v1792 = vunpack.c.l.b16 %v1703
        %v1793 = vunpack.c.h.b16 %v1703
        %v1794 = vunpack.c.l.b16 %v1704
        %v1795 = vunpack.c.h.b16 %v1704
        %v1796 = vunpack.c.l.b16 %v1705
        %v1797 = vunpack.c.h.b16 %v1705
        %v1798 = vunpack.c.l.b16 %v1706
        %v1799 = vunpack.c.h.b16 %v1706
        %v1800 = vunpack.c.l.b16 %v1707
        %v1801 = vunpack.c.h.b16 %v1707
        %v1802 = vunpack.c.l.b16 %v1708
        %v1803 = vunpack.c.h.b16 %v1708
        %v1804 = vunpack.c.l.b16 %v1709
        %v1805 = vunpack.c.h.b16 %v1709
        %v1806 = vunpack.c.l.b16 %v1710
        %v1807 = vunpack.c.h.b16 %v1710
        %v1808 = vunpack.c.l.b16 %v1711
        %v1809 = vunpack.c.h.b16 %v1711
        %v1810 = vunpack.c.l.b16 %v1712
        %v1811 = vunpack.c.h.b16 %v1712
        %v1812 = vunpack.c.l.b16 %v1713
        %v1813 = vunpack.c.h.b16 %v1713
        %v1814 = vunpack.c.l.b16 %v1714
        %v1815 = vunpack.c.h.b16 %v1714
        %v1816 = vunpack.c.l.b16 %v1715
        %v1817 = vunpack.c.h.b16 %v1715
        %v1818 = vunpack.c.l.b16 %v1716
        %v1819 = vunpack.c.h.b16 %v1716
        %v1820 = vunpack.c.l.b16 %v1717
        %v1821 = vunpack.c.h.b16 %v1717
        %v1822 = vunpack.c.l.b16 %v1718
        %v1823 = vunpack.c.h.b16 %v1718
        %v1824 = vunpack.c.l.b16 %v1719
        %v1825 = vunpack.c.h.b16 %v1719
        %v1826 = vpack.c.b16 %v1766, %v1762
        %v1827 = vpack.c.b16 %v1767, %v1763
        %v1828 = vpack.c.b16 %v1768, %v1764
        %v1829 = vpack.c.b16 %v1769, %v1765
        %v1830 = vpack.c.b16 %v1774, %v1770
        %v1831 = vpack.c.b16 %v1775, %v1771
        %v1832 = vpack.c.b16 %v1776, %v1772
        %v1833 = vpack.c.b16 %v1777, %v1773
        %v1834 = vpack.c.b16 %v1782, %v1778
        %v1835 = vpack.c.b16 %v1783, %v1779
        %v1836 = vpack.c.b16 %v1784, %v1780
        %v1837 = vpack.c.b16 %v1785, %v1781
        %v1838 = vpack.c.b16 %v1790, %v1786
        %v1839 = vpack.c.b16 %v1791, %v1787
        %v1840 = vpack.c.b16 %v1792, %v1788
        %v1841 = vpack.c.b16 %v1793, %v1789
        %v1842 = vpack.c.b16 %v1798, %v1794
        %v1843 = vpack.c.b16 %v1799, %v1795
        %v1844 = vpack.c.b16 %v1800, %v1796
        %v1845 = vpack.c.b16 %v1801, %v1797
        %v1846 = vpack.c.b16 %v1806, %v1802
        %v1847 = vpack.c.b16 %v1807, %v1803
        %v1848 = vpack.c.b16 %v1808, %v1804
        %v1849 = vpack.c.b16 %v1809, %v1805
        %v1850 = vpack.c.b16 %v1814, %v1810
        %v1851 = vpack.c.b16 %v1815, %v1811
        %v1852 = vpack.c.b16 %v1816, %v1812
        %v1853 = vpack.c.b16 %v1817, %v1813
        %v1854 = vpack.c.b16 %v1822, %v1818
        %v1855 = vpack.c.b16 %v1823, %v1819
        %v1856 = vpack.c.b16 %v1824, %v1820
        %v1857 = vpack.c.b16 %v1825, %v1821
        %1890 = vmatpush.bf16.msra.mxu0 %v1854
        %1891 = vmatpush.bf16.msra.mxu0 %v1850
        %1892 = vmatpush.bf16.msra.mxu0 %v1846
        %1893 = vmatpush.bf16.msra.mxu0 %v1842
        %1894 = vmatpush.bf16.msra.mxu0 %v1838
        %1895 = vmatpush.bf16.msra.mxu0 %v1834
        %1896 = vmatpush.bf16.msra.mxu0 %v1830
        %1897 = vmatpush.bf16.msra.mxu0 %v1826
        %1898 = vmatmul.bf16.gmra.mxu0 %v1687
        %v1899 = vpop.f32.mrf.mxu0
        %v1900 = vadd.f32 %v1722, %v1899
        %v1901 = vpop.f32.mrf.mxu0
        %1902 = vdwg.mxu0
        %1903 = vmatpush.bf16.msra.mxu0 %v1855
        %1904 = vmatpush.bf16.msra.mxu0 %v1851
        %1905 = vmatpush.bf16.msra.mxu0 %v1847
        %1906 = vmatpush.bf16.msra.mxu0 %v1843
        %1907 = vmatpush.bf16.msra.mxu0 %v1839
        %1908 = vmatpush.bf16.msra.mxu0 %v1835
        %1909 = vmatpush.bf16.msra.mxu0 %v1831
        %1910 = vmatpush.bf16.msra.mxu0 %v1827
        %1911 = vmatmul.bf16.gmra.mxu0 %v1687
        %v1912 = vpop.f32.mrf.mxu0
        %v1913 = vadd.f32 %v1723, %v1912
        %v1914 = vpop.f32.mrf.mxu0
        %1915 = vdwg.mxu0
        %1916 = vmatpush.bf16.msra.mxu0 %v1856
        %1917 = vmatpush.bf16.msra.mxu0 %v1852
        %1918 = vmatpush.bf16.msra.mxu0 %v1848
        %1919 = vmatpush.bf16.msra.mxu0 %v1844
        %1920 = vmatpush.bf16.msra.mxu0 %v1840
        %1921 = vmatpush.bf16.msra.mxu0 %v1836
        %1922 = vmatpush.bf16.msra.mxu0 %v1832
        %1923 = vmatpush.bf16.msra.mxu0 %v1828
        %1924 = vmatmul.bf16.gmra.mxu0 %v1687
        %v1925 = vpop.f32.mrf.mxu0
        %v1926 = vadd.f32 %v1724, %v1925
        %v1927 = vpop.f32.mrf.mxu0
        %1928 = vdwg.mxu0
        %1929 = vmatpush.bf16.msra.mxu0 %v1857
        %1930 = vmatpush.bf16.msra.mxu0 %v1853
        %1931 = vmatpush.bf16.msra.mxu0 %v1849
        %1932 = vmatpush.bf16.msra.mxu0 %v1845
        %1933 = vmatpush.bf16.msra.mxu0 %v1841
        %1934 = vmatpush.bf16.msra.mxu0 %v1837
        %1935 = vmatpush.bf16.msra.mxu0 %v1833
        %1936 = vmatpush.bf16.msra.mxu0 %v1829
        %1937 = vmatmul.bf16.gmra.mxu0 %v1687
        %v1938 = vpop.f32.mrf.mxu0
        %v1939 = vadd.f32 %v1725, %v1938
        %v1940 = vpop.f32.mrf.mxu0
        %1941 = vdwg.mxu0
        %v1942 = vmax.f32 %v1900, 0.0
        %v1943 = vmax.f32 %v1913, 0.0
        %v1944 = vmax.f32 %v1926, 0.0
        %v1945 = vmax.f32 %v1939, 0.0
        %v1946 = vpack.c.bf16 %v1942, %v1942
        %v1947 = vpack.c.bf16 %v1943, %v1943
        %v1948 = vpack.c.bf16 %v1944, %v1944
        %v1949 = vpack.c.bf16 %v1945, %v1945
        %v1950 = vld [vmem:[%s632] sm:$0xf]
        %v1951 = vld [vmem:[%s632 + $0x4] sm:$0xf]
        %v1952 = vld [vmem:[%s632 + $0x8] sm:$0xf]
        %v1953 = vld [vmem:[%s632 + $0xc] sm:$0xf]
        %v1954 = vld [vmem:[%s632 + $0x10] sm:$0xf]
        %v1955 = vld [vmem:[%s632 + $0x14] sm:$0xf]
        %v1956 = vld [vmem:[%s632 + $0x18] sm:$0xf]
        %v1957 = vld [vmem:[%s632 + $0x1c] sm:$0xf]
        %v1958 = vld [vmem:[%s632 + $0x20] sm:$0xf]
        %v1959 = vld [vmem:[%s632 + $0x24] sm:$0xf]
        %v1960 = vld [vmem:[%s632 + $0x28] sm:$0xf]
        %v1961 = vld [vmem:[%s632 + $0x2c] sm:$0xf]
        %v1962 = vld [vmem:[%s632 + $0x30] sm:$0xf]
        %v1963 = vld [vmem:[%s632 + $0x34] sm:$0xf]
        %v1964 = vld [vmem:[%s632 + $0x38] sm:$0xf]
        %v1965 = vld [vmem:[%s632 + $0x3c] sm:$0xf]
        %v1966 = vld [vmem:[%s632 + $0x40] sm:$0xf]
        %v1967 = vld [vmem:[%s632 + $0x44] sm:$0xf]
        %v1968 = vld [vmem:[%s632 + $0x48] sm:$0xf]
        %v1969 = vld [vmem:[%s632 + $0x4c] sm:$0xf]
        %v1970 = vld [vmem:[%s632 + $0x50] sm:$0xf]
        %v1971 = vld [vmem:[%s632 + $0x54] sm:$0xf]
        %v1972 = vld [vmem:[%s632 + $0x58] sm:$0xf]
        %v1973 = vld [vmem:[%s632 + $0x5c] sm:$0xf]
        %v1974 = vld [vmem:[%s632 + $0x60] sm:$0xf]
        %v1975 = vld [vmem:[%s632 + $0x64] sm:$0xf]
        %v1976 = vld [vmem:[%s632 + $0x68] sm:$0xf]
        %v1977 = vld [vmem:[%s632 + $0x6c] sm:$0xf]
        %v1978 = vld [vmem:[%s632 + $0x70] sm:$0xf]
        %v1979 = vld [vmem:[%s632 + $0x74] sm:$0xf]
        %v1980 = vld [vmem:[%s632 + $0x78] sm:$0xf]
        %v1981 = vld [vmem:[%s632 + $0x7c] sm:$0xf]
        %v1982 = vld [vmem:[%s632 + $0x80] sm:$0xf]
        %v1983 = vld [vmem:[%s632 + $0x84] sm:$0xf]
        %v1984 = vld [vmem:[%s632 + $0x88] sm:$0xf]
        %v1985 = vld [vmem:[%s632 + $0x8c] sm:$0xf]
        %v1986 = vld [vmem:[%s632 + $0x90] sm:$0xf]
        %v1987 = vld [vmem:[%s632 + $0x94] sm:$0xf]
        %v1988 = vld [vmem:[%s632 + $0x98] sm:$0xf]
        %v1989 = vld [vmem:[%s632 + $0x9c] sm:$0xf]
        %v1990 = vld [vmem:[%s632 + $0xa0] sm:$0xf]
        %v1991 = vld [vmem:[%s632 + $0xa4] sm:$0xf]
        %v1992 = vld [vmem:[%s632 + $0xa8] sm:$0xf]
        %v1993 = vld [vmem:[%s632 + $0xac] sm:$0xf]
        %v1994 = vld [vmem:[%s632 + $0xb0] sm:$0xf]
        %v1995 = vld [vmem:[%s632 + $0xb4] sm:$0xf]
        %v1996 = vld [vmem:[%s632 + $0xb8] sm:$0xf]
        %v1997 = vld [vmem:[%s632 + $0xbc] sm:$0xf]
        %v1998 = vld [vmem:[%s632 + $0xc0] sm:$0xf]
        %v1999 = vld [vmem:[%s632 + $0xc4] sm:$0xf]
        %v2000 = vld [vmem:[%s632 + $0xc8] sm:$0xf]
        %v2001 = vld [vmem:[%s632 + $0xcc] sm:$0xf]
        %v2002 = vld [vmem:[%s632 + $0xd0] sm:$0xf]
        %v2003 = vld [vmem:[%s632 + $0xd4] sm:$0xf]
        %v2004 = vld [vmem:[%s632 + $0xd8] sm:$0xf]
        %v2005 = vld [vmem:[%s632 + $0xdc] sm:$0xf]
        %v2006 = vld [vmem:[%s632 + $0xe0] sm:$0xf]
        %v2007 = vld [vmem:[%s632 + $0xe4] sm:$0xf]
        %v2008 = vld [vmem:[%s632 + $0xe8] sm:$0xf]
        %v2009 = vld [vmem:[%s632 + $0xec] sm:$0xf]
        %v2010 = vld [vmem:[%s632 + $0xf0] sm:$0xf]
        %v2011 = vld [vmem:[%s632 + $0xf4] sm:$0xf]
        %v2012 = vld [vmem:[%s632 + $0xf8] sm:$0xf]
        %v2013 = vld [vmem:[%s632 + $0xfc] sm:$0xf]
        %v2014 = vld [vmem:[%s752] sm:$0x1]
        %v2016 = vperm.slane %v2014, 0
        %v2082 = vunpack.c.l.b16 %v1950
        %v2083 = vunpack.c.l.b16 %v1951
        %v2084 = vunpack.c.l.b16 %v1952
        %v2085 = vunpack.c.l.b16 %v1953
        %v2086 = vunpack.c.l.b16 %v1954
        %v2087 = vunpack.c.l.b16 %v1955
        %v2088 = vunpack.c.l.b16 %v1956
        %v2089 = vunpack.c.l.b16 %v1957
        %v2090 = vunpack.c.l.b16 %v1958
        %v2091 = vunpack.c.l.b16 %v1959
        %v2092 = vunpack.c.l.b16 %v1960
        %v2093 = vunpack.c.l.b16 %v1961
        %v2094 = vunpack.c.l.b16 %v1962
        %v2095 = vunpack.c.l.b16 %v1963
        %v2096 = vunpack.c.l.b16 %v1964
        %v2097 = vunpack.c.l.b16 %v1965
        %v2098 = vunpack.c.l.b16 %v1966
        %v2099 = vunpack.c.l.b16 %v1967
        %v2100 = vunpack.c.l.b16 %v1968
        %v2101 = vunpack.c.l.b16 %v1969
        %v2102 = vunpack.c.l.b16 %v1970
        %v2103 = vunpack.c.l.b16 %v1971
        %v2104 = vunpack.c.l.b16 %v1972
        %v2105 = vunpack.c.l.b16 %v1973
        %v2106 = vunpack.c.l.b16 %v1974
        %v2107 = vunpack.c.l.b16 %v1975
        %v2108 = vunpack.c.l.b16 %v1976
        %v2109 = vunpack.c.l.b16 %v1977
        %v2110 = vunpack.c.l.b16 %v1978
        %v2111 = vunpack.c.l.b16 %v1979
        %v2112 = vunpack.c.l.b16 %v1980
        %v2113 = vunpack.c.l.b16 %v1981
        %v2114 = vunpack.c.l.b16 %v1982
        %v2115 = vunpack.c.l.b16 %v1983
        %v2116 = vunpack.c.l.b16 %v1984
        %v2117 = vunpack.c.l.b16 %v1985
        %v2118 = vunpack.c.l.b16 %v1986
        %v2119 = vunpack.c.l.b16 %v1987
        %v2120 = vunpack.c.l.b16 %v1988
        %v2121 = vunpack.c.l.b16 %v1989
        %v2122 = vunpack.c.l.b16 %v1990
        %v2123 = vunpack.c.l.b16 %v1991
        %v2124 = vunpack.c.l.b16 %v1992
        %v2125 = vunpack.c.l.b16 %v1993
        %v2126 = vunpack.c.l.b16 %v1994
        %v2127 = vunpack.c.l.b16 %v1995
        %v2128 = vunpack.c.l.b16 %v1996
        %v2129 = vunpack.c.l.b16 %v1997
        %v2130 = vunpack.c.l.b16 %v1998
        %v2131 = vunpack.c.l.b16 %v1999
        %v2132 = vunpack.c.l.b16 %v2000
        %v2133 = vunpack.c.l.b16 %v2001
        %v2134 = vunpack.c.l.b16 %v2002
        %v2135 = vunpack.c.l.b16 %v2003
        %v2136 = vunpack.c.l.b16 %v2004
        %v2137 = vunpack.c.l.b16 %v2005
        %v2138 = vunpack.c.l.b16 %v2006
        %v2139 = vunpack.c.l.b16 %v2007
        %v2140 = vunpack.c.l.b16 %v2008
        %v2141 = vunpack.c.l.b16 %v2009
        %v2142 = vunpack.c.l.b16 %v2010
        %v2143 = vunpack.c.l.b16 %v2011
        %v2144 = vunpack.c.l.b16 %v2012
        %v2145 = vunpack.c.l.b16 %v2013
        %v2146 = vpack.c.b16 %v2083, %v2082
        %v2147 = vpack.c.b16 %v2085, %v2084
        %v2148 = vpack.c.b16 %v2087, %v2086
        %v2149 = vpack.c.b16 %v2089, %v2088
        %v2150 = vpack.c.b16 %v2091, %v2090
        %v2151 = vpack.c.b16 %v2093, %v2092
        %v2152 = vpack.c.b16 %v2095, %v2094
        %v2153 = vpack.c.b16 %v2097, %v2096
        %v2154 = vpack.c.b16 %v2099, %v2098
        %v2155 = vpack.c.b16 %v2101, %v2100
        %v2156 = vpack.c.b16 %v2103, %v2102
        %v2157 = vpack.c.b16 %v2105, %v2104
        %v2158 = vpack.c.b16 %v2107, %v2106
        %v2159 = vpack.c.b16 %v2109, %v2108
        %v2160 = vpack.c.b16 %v2111, %v2110
        %v2161 = vpack.c.b16 %v2113, %v2112
        %v2162 = vpack.c.b16 %v2115, %v2114
        %v2163 = vpack.c.b16 %v2117, %v2116
        %v2164 = vpack.c.b16 %v2119, %v2118
        %v2165 = vpack.c.b16 %v2121, %v2120
        %v2166 = vpack.c.b16 %v2123, %v2122
        %v2167 = vpack.c.b16 %v2125, %v2124
        %v2168 = vpack.c.b16 %v2127, %v2126
        %v2169 = vpack.c.b16 %v2129, %v2128
        %v2170 = vpack.c.b16 %v2131, %v2130
        %v2171 = vpack.c.b16 %v2133, %v2132
        %v2172 = vpack.c.b16 %v2135, %v2134
        %v2173 = vpack.c.b16 %v2137, %v2136
        %v2174 = vpack.c.b16 %v2139, %v2138
        %v2175 = vpack.c.b16 %v2141, %v2140
        %v2176 = vpack.c.b16 %v2143, %v2142
        %v2177 = vpack.c.b16 %v2145, %v2144
        %2210 = vmatpush.bf16.msra.mxu0 %v2153
        %2211 = vmatpush.bf16.msra.mxu0 %v2152
        %2212 = vmatpush.bf16.msra.mxu0 %v2151
        %2213 = vmatpush.bf16.msra.mxu0 %v2150
        %2214 = vmatpush.bf16.msra.mxu0 %v2149
        %2215 = vmatpush.bf16.msra.mxu0 %v2148
        %2216 = vmatpush.bf16.msra.mxu0 %v2147
        %2217 = vmatpush.bf16.msra.mxu0 %v2146
        %2218 = vmatmul.bf16.gmra.mxu0 %v1946
        %v2219 = vpop.f32.mrf.mxu0
        %v2220 = vadd.f32 %v2016, %v2219
        %v2221 = vpop.f32.mrf.mxu0
        %2222 = vdwg.mxu0
        %2223 = vmatpush.bf16.msra.mxu0 %v2161
        %2224 = vmatpush.bf16.msra.mxu0 %v2160
        %2225 = vmatpush.bf16.msra.mxu0 %v2159
        %2226 = vmatpush.bf16.msra.mxu0 %v2158
        %2227 = vmatpush.bf16.msra.mxu0 %v2157
        %2228 = vmatpush.bf16.msra.mxu0 %v2156
        %2229 = vmatpush.bf16.msra.mxu0 %v2155
        %2230 = vmatpush.bf16.msra.mxu0 %v2154
        %2231 = vmatmul.bf16.gmra.mxu0 %v1947
        %v2232 = vpop.f32.mrf.mxu0
        %v2233 = vadd.f32 %v2220, %v2232
        %v2234 = vpop.f32.mrf.mxu0
        %2235 = vdwg.mxu0
        %2236 = vmatpush.bf16.msra.mxu0 %v2169
        %2237 = vmatpush.bf16.msra.mxu0 %v2168
        %2238 = vmatpush.bf16.msra.mxu0 %v2167
        %2239 = vmatpush.bf16.msra.mxu0 %v2166
        %2240 = vmatpush.bf16.msra.mxu0 %v2165
        %2241 = vmatpush.bf16.msra.mxu0 %v2164
        %2242 = vmatpush.bf16.msra.mxu0 %v2163
        %2243 = vmatpush.bf16.msra.mxu0 %v2162
        %2244 = vmatmul.bf16.gmra.mxu0 %v1948
        %v2245 = vpop.f32.mrf.mxu0
        %v2246 = vadd.f32 %v2233, %v2245
        %v2247 = vpop.f32.mrf.mxu0
        %2248 = vdwg.mxu0
        %2249 = vmatpush.bf16.msra.mxu0 %v2177
        %2250 = vmatpush.bf16.msra.mxu0 %v2176
        %2251 = vmatpush.bf16.msra.mxu0 %v2175
        %2252 = vmatpush.bf16.msra.mxu0 %v2174
        %2253 = vmatpush.bf16.msra.mxu0 %v2173
        %2254 = vmatpush.bf16.msra.mxu0 %v2172
        %2255 = vmatpush.bf16.msra.mxu0 %v2171
        %2256 = vmatpush.bf16.msra.mxu0 %v2170
        %2257 = vmatmul.bf16.gmra.mxu0 %v1949
        %v2258 = vpop.f32.mrf.mxu0
        %v2259 = vadd.f32 %v2246, %v2258
        %v2260 = vpop.f32.mrf.mxu0
        %2261 = vdwg.mxu0
        %v2262 = vadd.f32 %v1686, %v2259
        %v2263 = vld [vmem:[%s755] sm:$0x1]
        %v2264 = vld [vmem:[%s758] sm:$0x1]
        %2265 = vadd.xlane.f32.xlu0 %v2262
        %v2266 = vpop.xlane.xlu0 %2265
        %v2267 = vmul.f32 %v2266, %v1660
        %v2268 = vsub.f32 %v2262, %v2267
        %v2269 = vmul.f32 %v2268, %v2268
        %2270 = vadd.xlane.f32.xlu0 %v2269
        %v2271 = vpop.xlane.xlu0 %2270
        %v2272 = vmul.f32 %v2271, %v1660
        %v2273 = vadd.f32 %v2272, 1e-05
        %v2274 = vrsqrt.pop %v2273
        %v2275 = vmul.f32 %v2274, %v2273
        %v2276 = vmul.f32 %v2275, %v2274
        %v2277 = vmul.f32 0.5, %v2276
        %v2278 = vsub.f32 1.5, %v2277
        %v2279 = vmul.f32 %v2274, %v2278
        %vm2280 = vweird.f32 %v2273
        %vm2281 = vweird.f32 %v2274
        %vm2282 = vmor %vm2280, %vm2281
        %v2283 = vsel %vm2282, %v2274, %v2279
        %v2284 = vmul.f32 %v2268, %v2283
        %v2286 = vperm.slane %v2263, 0
        %v2288 = vmul.f32 %v2284, %v2286
        %v2290 = vperm.slane %v2264, 0
        %v2292 = vadd.f32 %v2288, %v2290
        %2293 = vst [vmem:[#allocation2] sm:$0xff] %v2292
        %p2294 = scmp.eq.s32.totalorder %s37, 1
        // Predicated region
        $region97: #{forward.2} parent=79 // pred_check
          %p2295 = pneg %p2294
        $region98: #{forward.2} parent=79 // pred_check_branch
          %2297 = sbr.rel (%p2295) target = $region100
        $region99: #{forward.2} parent=79 // pred_region
          %v2298 = vld [vmem:[%s13] sm:$0x1]
          %v2299 = vld [vmem:[%s14] sm:$0x1]
          %2300 = vadd.xlane.f32.xlu0 %v2292
          %v2301 = vpop.xlane.xlu0 %2300
          %v2302 = vmul.f32 %v2301, %v1660
          %v2303 = vsub.f32 %v2292, %v2302
          %v2304 = vmul.f32 %v2303, %v2303
          %2305 = vadd.xlane.f32.xlu0 %v2304
          %v2306 = vpop.xlane.xlu0 %2305
          %v2307 = vmul.f32 %v2306, %v1660
          %v2308 = vadd.f32 %v2307, 1e-05
          %v2309 = vrsqrt.pop %v2308
          %v2310 = vmul.f32 %v2309, %v2308
          %v2311 = vmul.f32 %v2310, %v2309
          %v2312 = vmul.f32 0.5, %v2311
          %v2313 = vsub.f32 1.5, %v2312
          %v2314 = vmul.f32 %v2309, %v2313
          %vm2315 = vweird.f32 %v2308
          %vm2316 = vweird.f32 %v2309
          %vm2317 = vmor %vm2315, %vm2316
          %v2318 = vsel %vm2317, %v2309, %v2314
          %v2319 = vmul.f32 %v2303, %v2318
          %v2321 = vperm.slane %v2298, 0
          %v2323 = vmul.f32 %v2319, %v2321
          %v2325 = vperm.slane %v2299, 0
          %v2327 = vadd.f32 %v2323, %v2325
          %2328 = vst [vmem:[%s762] sm:$0xff] %v2327
        $region100: #{forward.2} parent=79 // pred_fallthru
          _
        %p2329 = scmp.lt.s32.totalorder %s36, 1
        %s2330 = scalar_select %p2329, %s36, 1
        %s2331 = smul.addr %s2330, 8
        %s2332 = scalar_lea.vmem %s15, %s2331
        // Predicated region
        $region101: #{forward.2} parent=79 // pred_check
          %p2333 = pneg %p442
        $region102: #{forward.2} parent=79 // pred_check_branch
          %2335 = sbr.rel (%p2333) target = $region104
        $region103: #{forward.2} parent=79 // pred_region
          _
        $region104: #{forward.2} parent=79 // pred_fallthru
          _
      $region80: #{forward.2} parent=5 // pred_fallthru
        _
      %p2336 = scmp.le.s32.totalorder 2, %s27
      // Predicated region
      $region105: #{forward.2} parent=5 // pred_check
        %p2337 = pneg %p2336
      $region106: #{forward.2} parent=5 // pred_check_branch
        %2339 = sbr.rel (%p2337) target = $region108
      $region107: #{forward.2} parent=5 // pred_region
        %s2340 = ssub.s32 %s27, 2
        // Predicated region
        $region109: #{forward.2} parent=107 // pred_check
          %p2341 = pneg %p448
        $region110: #{forward.2} parent=107 // pred_check_branch
          %2343 = sbr.rel (%p2341) target = $region112
        $region111: #{forward.2} parent=107 // pred_region
          %p2344 = scmp.lt.s32.totalorder %s38, 1
          %s2345 = scalar_select %p2344, %s38, 1
          %s2346 = smul.addr %s2345, 8
          %s2347 = scalar_lea.vmem %s15, %s2346
        $region112: #{forward.2} parent=107 // pred_fallthru
          _
      $region108: #{forward.2} parent=5 // pred_fallthru
        _
    $region6: #{forward.2} parent=1 // loop_footer
      %s31 = sadd.s32 1, %s27
    $region7: #{forward.2} parent=1 // loop_footer_branch
      %26 = sbr.rel target = $region3
    $region8: #{forward.2} parent=1 // loop_exit
      _
    %2348 = vsyncpa [#allocation6], 1
    %s2349 = scalar_lea.sflag [#allocation6], 1
    %2350 = vsyncpa %s2349, 1
    %2351 = vsyncpa [#allocation8], 1
    %s2352 = scalar_lea.sflag [#allocation8], 1
    %2353 = vsyncpa %s2352, 1

</llo_original>
